<compile_context>
chip_gen: v5e
topology: v5e:2x2
jax: 0.10.0
libtpu: 0.0.40
codegen_flags: <defaults>
</compile_context>

<pallas_src>
import functools

import jax
import jax.numpy as jnp
from jax import lax
from jax.experimental import pallas as pl
from jax.experimental.pallas import tpu as pltpu


# --------------------------------------------------------------------------- helpers
def _fs(shape):
    """Full-array BlockSpec for a grid=(1,) pallas_call (block == whole array)."""
    n = len(shape)
    return pl.BlockSpec(shape, lambda i, _n=n: (0,) * _n)


def _leaky(x):
    return jnp.where(x >= 0, x, 0.2 * x)


def _mm(a, b):
    return jnp.dot(a, b, preferred_element_type=jnp.float32)


def _gram(a, b):
    """a @ b.T on the MXU without materializing a transpose (contract last dims)."""
    return lax.dot_general(a, b, dimension_numbers=(((1,), (1,)), ((), ())),
                           preferred_element_type=jnp.float32)


# --------------------------------------------------------------------------- kernels
def _ae_encoder_kernel(x1_ref, x2_ref,
                       w1_ref, b1_ref, w2_ref, b2_ref,
                       w3_ref, b3_ref, wz_ref, bz_ref,
                       z1_ref, z2_ref, zavg_ref):
    def encode(x):
        h = _leaky(_mm(x, w1_ref[...]) + b1_ref[...])
        h = _leaky(_mm(h, w2_ref[...]) + b2_ref[...])
        h = _leaky(_mm(h, w3_ref[...]) + b3_ref[...])
        return _mm(h, wz_ref[...]) + bz_ref[...]

    z1 = encode(x1_ref[...])
    z2 = encode(x2_ref[...])
    z1_ref[...] = z1
    z2_ref[...] = z2
    zavg_ref[...] = (z1 + z2) * 0.5                      # Z_ae fused in


def _ae_decoder_kernel(z_ref,
                       w1_ref, b1_ref, w2_ref, b2_ref,
                       w3_ref, b3_ref, wx_ref, bx_ref,
                       xhat_ref):
    h = _leaky(_mm(z_ref[...], w1_ref[...]) + b1_ref[...])
    h = _leaky(_mm(h, w2_ref[...]) + b2_ref[...])
    h = _leaky(_mm(h, w3_ref[...]) + b3_ref[...])
    xhat_ref[...] = _mm(h, wx_ref[...]) + bx_ref[...]


def _igae_encoder_kernel(x1_ref, x2_ref, am_ref, ad_ref,
                         w1_ref, w2_ref, w3_ref,
                         zig1_ref, zig2_ref, sim_ref,
                         az0_ref, az1_ref, az2_ref,
                         zs0_ref, zs1_ref, zs2_ref):
    def encode(x, a):
        s1 = jnp.tanh(_mm(x, w1_ref[...]))
        o1 = _mm(a, s1)
        s2 = jnp.tanh(_mm(o1, w2_ref[...]))
        o2 = _mm(a, s2)
        s3 = _mm(o2, w3_ref[...])                        # last encoder layer: no act
        o3 = _mm(a, s3)
        adj = jax.nn.sigmoid(_gram(o3, o3))              # sigmoid(Z Z^T), in-kernel
        return (o1, o2, o3), (s1, s2, s3), adj

    (o11, o21, o31), (s11, s21, s31), adj1 = encode(x1_ref[...], am_ref[...])
    (o12, o22, o32), (s12, s22, s32), adj2 = encode(x2_ref[...], ad_ref[...])

    zig1_ref[...] = o31
    zig2_ref[...] = o32
    sim_ref[...] = (adj1 + adj2) * 0.5                   # sim fused in
    az0_ref[...] = (o11 + o12) * 0.5                     # AZ_en[0]
    az1_ref[...] = (o21 + o22) * 0.5                     # AZ_en[1]
    az2_ref[...] = (o31 + o32) * 0.5                     # AZ_en[2] == Z_igae
    zs0_ref[...] = (s11 + s12) * 0.5                     # Z_en[0]
    zs1_ref[...] = (s21 + s22) * 0.5                     # Z_en[1]
    zs2_ref[...] = (s31 + s32) * 0.5                     # Z_en[2]


def _igae_decoder_kernel(z_ref, am_ref, sim_ref,
                         w1_ref, w2_ref, w3_ref,
                         zhat_ref, zadj_ref, ahat_ref,
                         az0_ref, az1_ref,
                         zs0_ref, zs1_ref, zs2_ref):
    a = am_ref[...]
    s1 = jnp.tanh(_mm(z_ref[...], w1_ref[...]))
    o1 = _mm(a, s1)
    s2 = jnp.tanh(_mm(o1, w2_ref[...]))
    o2 = _mm(a, s2)
    s3 = jnp.tanh(_mm(o2, w3_ref[...]))
    o3 = _mm(a, s3)
    zadj = jax.nn.sigmoid(_gram(o3, o3))

    zhat_ref[...] = o3
    zadj_ref[...] = zadj
    ahat_ref[...] = sim_ref[...] + zadj                  # A_hat fused in
    az0_ref[...] = o1                                    # AZ_de[0]
    az1_ref[...] = o2                                    # AZ_de[1]  (AZ_de[2] = Z_hat)
    zs0_ref[...] = s1
    zs1_ref[...] = s2
    zs2_ref[...] = s3


def _fusion_q_kernel(zae_ref, zig_ref, a_ref, b_ref, am_ref, cl_ref, alpha_ref,
                     z_ref, q_ref, qae_ref, qig_ref):
    z_ae = zae_ref[...]
    z_ig = zig_ref[...]

    # Z_i = a * Z_ae + b * Z_igae ; Z_l = Am @ Z_i
    z_i = a_ref[...] * z_ae + b_ref[...] * z_ig
    z_l = _mm(am_ref[...], z_i)

    # S = softmax(Z_l Z_l^T, axis=1); Z = alpha * (S Z_l) + Z_l
    s = _gram(z_l, z_l)
    m = jnp.max(s, axis=-1, keepdims=True)
    e = jnp.exp(s - m)
    p = e * pl.reciprocal(jnp.sum(e, axis=-1, keepdims=True), approx=True)
    z_g = _mm(p, z_l)
    z = alpha_ref[0, 0] * z_g + z_l
    z_ref[...] = z

    # Student-t soft assignments for (Z, Z_ae, Z_igae) vs. the cluster centers.
    c = cl_ref[...]                                      # (K, D)
    ones_row = jnp.ones((1, c.shape[1]), jnp.float32)
    c2 = _gram(ones_row, c * c)                          # (1, K): ||c_k||^2 (no transpose)

    def q_of(emb):
        e2 = jnp.sum(emb * emb, axis=1, keepdims=True)   # (N, 1)
        cross = _gram(emb, c)                            # (N, K)
        d2 = jnp.maximum(e2 - 2.0 * cross + c2, 0.0)
        q = pl.reciprocal(1.0 + d2, approx=True)
        return q * pl.reciprocal(jnp.sum(q, axis=1, keepdims=True), approx=True)

    q_ref[...] = q_of(z)
    qae_ref[...] = q_of(z_ae)
    qig_ref[...] = q_of(z_ig)


# --------------------------------------------------------------------------- wrappers
def ae_encode_fused(x1, x2, p):
    N = x1.shape[0]
    n_z = p["ae_z_w"].shape[1]
    args = [x1, x2,
            p["ae_enc1_w"], p["ae_enc1_b"].reshape(1, -1),
            p["ae_enc2_w"], p["ae_enc2_b"].reshape(1, -1),
            p["ae_enc3_w"], p["ae_enc3_b"].reshape(1, -1),
            p["ae_z_w"], p["ae_z_b"].reshape(1, -1)]
    out_shapes = tuple(jax.ShapeDtypeStruct((N, n_z), jnp.float32) for _ in range(3))
    return pl.pallas_call(
        _ae_encoder_kernel,
        out_shape=out_shapes,
        grid=(1,),
        in_specs=[_fs(a.shape) for a in args],
        out_specs=tuple(_fs(s.shape) for s in out_shapes),
    )(*args)                                             # (Z_ae1, Z_ae2, Z_ae)


def ae_decode_fused(z, p):
    N = z.shape[0]
    n_input = p["ae_xbar_w"].shape[1]
    args = [z,
            p["ae_dec1_w"], p["ae_dec1_b"].reshape(1, -1),
            p["ae_dec2_w"], p["ae_dec2_b"].reshape(1, -1),
            p["ae_dec3_w"], p["ae_dec3_b"].reshape(1, -1),
            p["ae_xbar_w"], p["ae_xbar_b"].reshape(1, -1)]
    return pl.pallas_call(
        _ae_decoder_kernel,
        out_shape=jax.ShapeDtypeStruct((N, n_input), jnp.float32),
        grid=(1,),
        in_specs=[_fs(a.shape) for a in args],
        out_specs=_fs((N, n_input)),
    )(*args)


def igae_encode_fused(x1, x2, am, ad, p):
    N = x1.shape[0]
    f1 = p["gae_enc1_w"].shape[1]
    f2 = p["gae_enc2_w"].shape[1]
    f3 = p["gae_enc3_w"].shape[1]
    args = [x1, x2, am, ad, p["gae_enc1_w"], p["gae_enc2_w"], p["gae_enc3_w"]]
    out_shapes = (
        jax.ShapeDtypeStruct((N, f3), jnp.float32),      # Z_igae1
        jax.ShapeDtypeStruct((N, f3), jnp.float32),      # Z_igae2
        jax.ShapeDtypeStruct((N, N), jnp.float32),       # sim
        jax.ShapeDtypeStruct((N, f1), jnp.float32),      # AZ_en[0]
        jax.ShapeDtypeStruct((N, f2), jnp.float32),      # AZ_en[1]
        jax.ShapeDtypeStruct((N, f3), jnp.float32),      # AZ_en[2] == Z_igae
        jax.ShapeDtypeStruct((N, f1), jnp.float32),      # Z_en[0]
        jax.ShapeDtypeStruct((N, f2), jnp.float32),      # Z_en[1]
        jax.ShapeDtypeStruct((N, f3), jnp.float32),      # Z_en[2]
    )
    outs = pl.pallas_call(
        _igae_encoder_kernel,
        out_shape=out_shapes,
        grid=(1,),
        in_specs=[_fs(a.shape) for a in args],
        out_specs=tuple(_fs(s.shape) for s in out_shapes),
    )(*args)
    zig1, zig2, sim, az0, az1, az2, zs0, zs1, zs2 = outs
    return zig1, zig2, sim, [az0, az1, az2], [zs0, zs1, zs2]


def igae_decode_fused(z, am, sim, p):
    N = z.shape[0]
    f1 = p["gae_dec1_w"].shape[1]
    f2 = p["gae_dec2_w"].shape[1]
    f3 = p["gae_dec3_w"].shape[1]
    args = [z, am, sim, p["gae_dec1_w"], p["gae_dec2_w"], p["gae_dec3_w"]]
    out_shapes = (
        jax.ShapeDtypeStruct((N, f3), jnp.float32),      # Z_hat
        jax.ShapeDtypeStruct((N, N), jnp.float32),       # Z_adj_hat
        jax.ShapeDtypeStruct((N, N), jnp.float32),       # A_hat
        jax.ShapeDtypeStruct((N, f1), jnp.float32),      # AZ_de[0]
        jax.ShapeDtypeStruct((N, f2), jnp.float32),      # AZ_de[1]
        jax.ShapeDtypeStruct((N, f1), jnp.float32),      # Z_de[0]
        jax.ShapeDtypeStruct((N, f2), jnp.float32),      # Z_de[1]
        jax.ShapeDtypeStruct((N, f3), jnp.float32),      # Z_de[2]
    )
    outs = pl.pallas_call(
        _igae_decoder_kernel,
        out_shape=out_shapes,
        grid=(1,),
        in_specs=[_fs(a.shape) for a in args],
        out_specs=tuple(_fs(s.shape) for s in out_shapes),
    )(*args)
    z_hat, z_adj, a_hat, az0, az1, zs0, zs1, zs2 = outs
    return z_hat, z_adj, a_hat, [az0, az1, z_hat], [zs0, zs1, zs2]


def fusion_and_q(z_ae, z_igae, a, b, am, cluster, alpha):
    N, D = z_ae.shape
    K = cluster.shape[0]
    args = [z_ae, z_igae, a, b, am, cluster, alpha.reshape(1, 1)]
    in_specs = [_fs(z_ae.shape), _fs(z_igae.shape), _fs(a.shape), _fs(b.shape),
                _fs(am.shape), _fs(cluster.shape),
                pl.BlockSpec(memory_space=pltpu.MemorySpace.SMEM)]   # alpha scalar
    out_shapes = (jax.ShapeDtypeStruct((N, D), jnp.float32),
                  jax.ShapeDtypeStruct((N, K), jnp.float32),
                  jax.ShapeDtypeStruct((N, K), jnp.float32),
                  jax.ShapeDtypeStruct((N, K), jnp.float32))
    z, q, q_ae, q_igae = pl.pallas_call(
        _fusion_q_kernel,
        out_shape=out_shapes,
        grid=(1,),
        in_specs=in_specs,
        out_specs=tuple(_fs(s.shape) for s in out_shapes),
    )(*args)
    return z, [q, q_ae, q_igae]


def readout(Z, K):
    # Readout: K group means, concatenated into a (1, K*d) row.  Plain-JAX glue.
    # TODO(synk): assumes K divides n_node (true for the demo and reference usage).
    n_node, d = Z.shape
    step = n_node // K
    return jnp.mean(Z[:K * step].reshape(K, step, d), axis=1).reshape(1, K * d)


# --------------------------------------------------------------------------- model
def dcrn_forward(params, X_tilde1, Am, X_tilde2, Ad, K):
    p = params

    # 1) AE encoder (both views fused) and 2) IGAE encoder (both views fused).
    Z_ae1, Z_ae2, Z_ae = ae_encode_fused(X_tilde1, X_tilde2, p)
    Z_igae1, Z_igae2, sim, AZ_en, Z_en = igae_encode_fused(X_tilde1, X_tilde2, Am, Ad, p)
    Z_igae = AZ_en[2]                                   # (Z_igae1 + Z_igae2) / 2

    # Readouts (plain-JAX reshape-mean glue).
    Z_tilde_ae1 = readout(Z_ae1, K)
    Z_tilde_ae2 = readout(Z_ae2, K)
    Z_tilde_igae1 = readout(Z_igae1, K)
    Z_tilde_igae2 = readout(Z_igae2, K)

    # 3) Fusion (gated sum, Am @ Z_i, self-similarity softmax) + the 3 Q matrices.
    Z, Q = fusion_and_q(Z_ae, Z_igae, p["a"], p["b"], Am, p["cluster_layer"], p["alpha"])

    # 4) AE decoder and 5) IGAE decoder (A_hat = sim + Z_adj_hat fused inside).
    X_hat = ae_decode_fused(Z, p)
    Z_hat, Z_adj_hat, A_hat, AZ_de, Z_de = igae_decode_fused(Z, Am, sim, p)

    Z_ae_all = [Z_ae1, Z_ae2, Z_tilde_ae1, Z_tilde_ae2]
    Z_gae_all = [Z_igae1, Z_igae2, Z_tilde_igae1, Z_tilde_igae2]
    AZ_all = [AZ_en, AZ_de]
    Z_all = [Z_en, Z_de]

    return (X_hat, Z_hat, A_hat, sim, Z_ae_all, Z_gae_all, Q, Z, AZ_all, Z_all)


# --------------------------------------------------------------------------- params
def init_params(key, d, n_input, n_z, n_clusters, n_node):
    ks = iter(jax.random.split(key, 32))

    def lin(fan_in, fan_out):
        bound = 1.0 / (fan_in ** 0.5)
        w = jax.random.uniform(next(ks), (fan_in, fan_out), jnp.float32, -bound, bound)
        b = jax.random.uniform(next(ks), (fan_out,), jnp.float32, -bound, bound)
        return w, b

    def xavier(fan_in, fan_out):
        bound = (6.0 / (fan_in + fan_out)) ** 0.5
        return jax.random.uniform(next(ks), (fan_in, fan_out), jnp.float32, -bound, bound)

    params = {}
    params["ae_enc1_w"], params["ae_enc1_b"] = lin(n_input, d["ae_n_enc_1"])
    params["ae_enc2_w"], params["ae_enc2_b"] = lin(d["ae_n_enc_1"], d["ae_n_enc_2"])
    params["ae_enc3_w"], params["ae_enc3_b"] = lin(d["ae_n_enc_2"], d["ae_n_enc_3"])
    params["ae_z_w"], params["ae_z_b"] = lin(d["ae_n_enc_3"], n_z)
    params["ae_dec1_w"], params["ae_dec1_b"] = lin(n_z, d["ae_n_dec_1"])
    params["ae_dec2_w"], params["ae_dec2_b"] = lin(d["ae_n_dec_1"], d["ae_n_dec_2"])
    params["ae_dec3_w"], params["ae_dec3_b"] = lin(d["ae_n_dec_2"], d["ae_n_dec_3"])
    params["ae_xbar_w"], params["ae_xbar_b"] = lin(d["ae_n_dec_3"], n_input)
    params["gae_enc1_w"] = xavier(n_input, d["gae_n_enc_1"])
    params["gae_enc2_w"] = xavier(d["gae_n_enc_1"], d["gae_n_enc_2"])
    params["gae_enc3_w"] = xavier(d["gae_n_enc_2"], d["gae_n_enc_3"])
    params["gae_dec1_w"] = xavier(d["gae_n_dec_1"], d["gae_n_dec_2"])
    params["gae_dec2_w"] = xavier(d["gae_n_dec_2"], d["gae_n_dec_3"])
    params["gae_dec3_w"] = xavier(d["gae_n_dec_3"], n_input)
    params["a"] = jnp.full((n_node, n_z), 0.5, jnp.float32)
    params["b"] = jnp.full((n_node, n_z), 0.5, jnp.float32)
    params["alpha"] = jnp.zeros((1, 1), jnp.float32)
    params["cluster_layer"] = (jax.random.normal(next(ks), (n_clusters, n_z), jnp.float32)
                               * (2.0 / (n_clusters + n_z)) ** 0.5)
    return params


def make_adj(key, n):
    a = (jax.random.uniform(key, (n, n)) < 0.1).astype(jnp.float32)
    a = jnp.minimum(a + a.T + jnp.eye(n, dtype=jnp.float32), 1.0)
    return a / jnp.sum(a, axis=1, keepdims=True)   # row-normalized dense adjacency


# --------------------------------------------------------------------------- main
if __name__ == "__main__":
    n_node, n_input, n_z, n_clusters = 64, 32, 8, 4
    dims = dict(ae_n_enc_1=32, ae_n_enc_2=16, ae_n_enc_3=16,
                ae_n_dec_1=16, ae_n_dec_2=16, ae_n_dec_3=32,
                gae_n_enc_1=32, gae_n_enc_2=16, gae_n_enc_3=n_z,
                gae_n_dec_1=n_z, gae_n_dec_2=16, gae_n_dec_3=32)

    root = jax.random.PRNGKey(0)
    kp, kx1, kx2, ka1, ka2 = jax.random.split(root, 5)

    params = init_params(kp, dims, n_input, n_z, n_clusters, n_node)
    X_tilde1 = jax.random.normal(kx1, (n_node, n_input), jnp.float32)
    X_tilde2 = jax.random.normal(kx2, (n_node, n_input), jnp.float32)
    Am = make_adj(ka1, n_node)
    Ad = make_adj(ka2, n_node)

    fwd = jax.jit(functools.partial(dcrn_forward, K=n_clusters))
    out = fwd(params, X_tilde1, Am, X_tilde2, Ad)
    jax.tree_util.tree_map(lambda x: x.block_until_ready(), out)
    print("KERNEL_OK")
</pallas_src>

<mosaic_0001>
module attributes {stable_mosaic.version = 11 : i64} {
  func.func @_ae_encoder_kernel(%arg0: i32, %arg1: memref<64x32xf32, #tpu.memory_space<vmem>>, %arg2: memref<64x32xf32, #tpu.memory_space<vmem>>, %arg3: memref<32x32xf32, #tpu.memory_space<vmem>>, %arg4: memref<1x32xf32, #tpu.memory_space<vmem>>, %arg5: memref<32x16xf32, #tpu.memory_space<vmem>>, %arg6: memref<1x16xf32, #tpu.memory_space<vmem>>, %arg7: memref<16x16xf32, #tpu.memory_space<vmem>>, %arg8: memref<1x16xf32, #tpu.memory_space<vmem>>, %arg9: memref<16x8xf32, #tpu.memory_space<vmem>>, %arg10: memref<1x8xf32, #tpu.memory_space<vmem>>, %arg11: memref<64x8xf32, #tpu.memory_space<vmem>>, %arg12: memref<64x8xf32, #tpu.memory_space<vmem>>, %arg13: memref<64x8xf32, #tpu.memory_space<vmem>>) attributes {dimension_semantics = [#tpu.dimension_semantics<arbitrary>], iteration_bounds = array<i64: 1>, scalar_prefetch = 0 : i64, scratch_operands = 0 : i64, tpu.core_type = #tpu.core_type<tc>, window_params = [{pipeline_mode = #tpu.pipeline_mode<synchronous>, transform_indices = @transform_0, window_bounds = array<i64: 64, 32>}, {pipeline_mode = #tpu.pipeline_mode<synchronous>, transform_indices = @transform_1, window_bounds = array<i64: 64, 32>}, {pipeline_mode = #tpu.pipeline_mode<synchronous>, transform_indices = @transform_2, window_bounds = array<i64: 32, 32>}, {pipeline_mode = #tpu.pipeline_mode<synchronous>, transform_indices = @transform_3, window_bounds = array<i64: 1, 32>}, {pipeline_mode = #tpu.pipeline_mode<synchronous>, transform_indices = @transform_4, window_bounds = array<i64: 32, 16>}, {pipeline_mode = #tpu.pipeline_mode<synchronous>, transform_indices = @transform_5, window_bounds = array<i64: 1, 16>}, {pipeline_mode = #tpu.pipeline_mode<synchronous>, transform_indices = @transform_6, window_bounds = array<i64: 16, 16>}, {pipeline_mode = #tpu.pipeline_mode<synchronous>, transform_indices = @transform_7, window_bounds = array<i64: 1, 16>}, {pipeline_mode = #tpu.pipeline_mode<synchronous>, transform_indices = @transform_8, window_bounds = array<i64: 16, 8>}, {pipeline_mode = #tpu.pipeline_mode<synchronous>, transform_indices = @transform_9, window_bounds = array<i64: 1, 8>}, {pipeline_mode = #tpu.pipeline_mode<synchronous>, transform_indices = @transform_10, window_bounds = array<i64: 64, 8>}, {pipeline_mode = #tpu.pipeline_mode<synchronous>, transform_indices = @transform_11, window_bounds = array<i64: 64, 8>}, {pipeline_mode = #tpu.pipeline_mode<synchronous>, transform_indices = @transform_12, window_bounds = array<i64: 64, 8>}]} {
    %c0 = arith.constant 0 : index
    %c0_0 = arith.constant 0 : index
    %0 = vector.load %arg1[%c0, %c0_0] : memref<64x32xf32, #tpu.memory_space<vmem>>, vector<64x32xf32>
    %c0_1 = arith.constant 0 : index
    %c0_2 = arith.constant 0 : index
    %1 = vector.load %arg3[%c0_1, %c0_2] : memref<32x32xf32, #tpu.memory_space<vmem>>, vector<32x32xf32>
    %cst = arith.constant dense<0.000000e+00> : vector<64x32xf32>
    %2 = tpu.matmul %0, %1, %cst {dimension_numbers = #tpu.dot_dimension_numbers<[1], [0], [0], [1], [0, 0, 1, 1], [], []>} : vector<64x32xf32>, vector<32x32xf32>, vector<64x32xf32> -> vector<64x32xf32>
    %c0_3 = arith.constant 0 : index
    %c0_4 = arith.constant 0 : index
    %3 = vector.load %arg4[%c0_3, %c0_4] : memref<1x32xf32, #tpu.memory_space<vmem>>, vector<1x32xf32>
    %4 = vector.broadcast %3 : vector<1x32xf32> to vector<64x32xf32>
    %5 = arith.addf %2, %4 : vector<64x32xf32>
    %cst_5 = arith.constant 0.000000e+00 : f32
    %6 = vector.broadcast %cst_5 : f32 to vector<64x32xf32>
    %7 = arith.cmpf oge, %5, %6 : vector<64x32xf32>
    %cst_6 = arith.constant 2.000000e-01 : f32
    %8 = vector.broadcast %cst_6 : f32 to vector<64x32xf32>
    %9 = arith.mulf %8, %5 : vector<64x32xf32>
    %10 = arith.select %7, %5, %9 : vector<64x32xi1>, vector<64x32xf32>
    %c0_7 = arith.constant 0 : index
    %c0_8 = arith.constant 0 : index
    %11 = vector.load %arg5[%c0_7, %c0_8] : memref<32x16xf32, #tpu.memory_space<vmem>>, vector<32x16xf32>
    %cst_9 = arith.constant dense<0.000000e+00> : vector<64x16xf32>
    %12 = tpu.matmul %10, %11, %cst_9 {dimension_numbers = #tpu.dot_dimension_numbers<[1], [0], [0], [1], [0, 0, 1, 1], [], []>} : vector<64x32xf32>, vector<32x16xf32>, vector<64x16xf32> -> vector<64x16xf32>
    %c0_10 = arith.constant 0 : index
    %c0_11 = arith.constant 0 : index
    %13 = vector.load %arg6[%c0_10, %c0_11] : memref<1x16xf32, #tpu.memory_space<vmem>>, vector<1x16xf32>
    %14 = vector.broadcast %13 : vector<1x16xf32> to vector<64x16xf32>
    %15 = arith.addf %12, %14 : vector<64x16xf32>
    %cst_12 = arith.constant 0.000000e+00 : f32
    %16 = vector.broadcast %cst_12 : f32 to vector<64x16xf32>
    %17 = arith.cmpf oge, %15, %16 : vector<64x16xf32>
    %cst_13 = arith.constant 2.000000e-01 : f32
    %18 = vector.broadcast %cst_13 : f32 to vector<64x16xf32>
    %19 = arith.mulf %18, %15 : vector<64x16xf32>
    %20 = arith.select %17, %15, %19 : vector<64x16xi1>, vector<64x16xf32>
    %c0_14 = arith.constant 0 : index
    %c0_15 = arith.constant 0 : index
    %21 = vector.load %arg7[%c0_14, %c0_15] : memref<16x16xf32, #tpu.memory_space<vmem>>, vector<16x16xf32>
    %cst_16 = arith.constant dense<0.000000e+00> : vector<64x16xf32>
    %22 = tpu.matmul %20, %21, %cst_16 {dimension_numbers = #tpu.dot_dimension_numbers<[1], [0], [0], [1], [0, 0, 1, 1], [], []>} : vector<64x16xf32>, vector<16x16xf32>, vector<64x16xf32> -> vector<64x16xf32>
    %c0_17 = arith.constant 0 : index
    %c0_18 = arith.constant 0 : index
    %23 = vector.load %arg8[%c0_17, %c0_18] : memref<1x16xf32, #tpu.memory_space<vmem>>, vector<1x16xf32>
    %24 = vector.broadcast %23 : vector<1x16xf32> to vector<64x16xf32>
    %25 = arith.addf %22, %24 : vector<64x16xf32>
    %cst_19 = arith.constant 0.000000e+00 : f32
    %26 = vector.broadcast %cst_19 : f32 to vector<64x16xf32>
    %27 = arith.cmpf oge, %25, %26 : vector<64x16xf32>
    %cst_20 = arith.constant 2.000000e-01 : f32
    %28 = vector.broadcast %cst_20 : f32 to vector<64x16xf32>
    %29 = arith.mulf %28, %25 : vector<64x16xf32>
    %30 = arith.select %27, %25, %29 : vector<64x16xi1>, vector<64x16xf32>
    %c0_21 = arith.constant 0 : index
    %c0_22 = arith.constant 0 : index
    %31 = vector.load %arg9[%c0_21, %c0_22] : memref<16x8xf32, #tpu.memory_space<vmem>>, vector<16x8xf32>
    %cst_23 = arith.constant dense<0.000000e+00> : vector<64x8xf32>
    %32 = tpu.matmul %30, %31, %cst_23 {dimension_numbers = #tpu.dot_dimension_numbers<[1], [0], [0], [1], [0, 0, 1, 1], [], []>} : vector<64x16xf32>, vector<16x8xf32>, vector<64x8xf32> -> vector<64x8xf32>
    %c0_24 = arith.constant 0 : index
    %c0_25 = arith.constant 0 : index
    %33 = vector.load %arg10[%c0_24, %c0_25] : memref<1x8xf32, #tpu.memory_space<vmem>>, vector<1x8xf32>
    %34 = vector.broadcast %33 : vector<1x8xf32> to vector<64x8xf32>
    %35 = arith.addf %32, %34 : vector<64x8xf32>
    %c0_26 = arith.constant 0 : index
    %c0_27 = arith.constant 0 : index
    %36 = vector.load %arg2[%c0_26, %c0_27] : memref<64x32xf32, #tpu.memory_space<vmem>>, vector<64x32xf32>
    %c0_28 = arith.constant 0 : index
    %c0_29 = arith.constant 0 : index
    %37 = vector.load %arg3[%c0_28, %c0_29] : memref<32x32xf32, #tpu.memory_space<vmem>>, vector<32x32xf32>
    %cst_30 = arith.constant dense<0.000000e+00> : vector<64x32xf32>
    %38 = tpu.matmul %36, %37, %cst_30 {dimension_numbers = #tpu.dot_dimension_numbers<[1], [0], [0], [1], [0, 0, 1, 1], [], []>} : vector<64x32xf32>, vector<32x32xf32>, vector<64x32xf32> -> vector<64x32xf32>
    %c0_31 = arith.constant 0 : index
    %c0_32 = arith.constant 0 : index
    %39 = vector.load %arg4[%c0_31, %c0_32] : memref<1x32xf32, #tpu.memory_space<vmem>>, vector<1x32xf32>
    %40 = vector.broadcast %39 : vector<1x32xf32> to vector<64x32xf32>
    %41 = arith.addf %38, %40 : vector<64x32xf32>
    %cst_33 = arith.constant 0.000000e+00 : f32
    %42 = vector.broadcast %cst_33 : f32 to vector<64x32xf32>
    %43 = arith.cmpf oge, %41, %42 : vector<64x32xf32>
    %cst_34 = arith.constant 2.000000e-01 : f32
    %44 = vector.broadcast %cst_34 : f32 to vector<64x32xf32>
    %45 = arith.mulf %44, %41 : vector<64x32xf32>
    %46 = arith.select %43, %41, %45 : vector<64x32xi1>, vector<64x32xf32>
    %c0_35 = arith.constant 0 : index
    %c0_36 = arith.constant 0 : index
    %47 = vector.load %arg5[%c0_35, %c0_36] : memref<32x16xf32, #tpu.memory_space<vmem>>, vector<32x16xf32>
    %cst_37 = arith.constant dense<0.000000e+00> : vector<64x16xf32>
    %48 = tpu.matmul %46, %47, %cst_37 {dimension_numbers = #tpu.dot_dimension_numbers<[1], [0], [0], [1], [0, 0, 1, 1], [], []>} : vector<64x32xf32>, vector<32x16xf32>, vector<64x16xf32> -> vector<64x16xf32>
    %c0_38 = arith.constant 0 : index
    %c0_39 = arith.constant 0 : index
    %49 = vector.load %arg6[%c0_38, %c0_39] : memref<1x16xf32, #tpu.memory_space<vmem>>, vector<1x16xf32>
    %50 = vector.broadcast %49 : vector<1x16xf32> to vector<64x16xf32>
    %51 = arith.addf %48, %50 : vector<64x16xf32>
    %cst_40 = arith.constant 0.000000e+00 : f32
    %52 = vector.broadcast %cst_40 : f32 to vector<64x16xf32>
    %53 = arith.cmpf oge, %51, %52 : vector<64x16xf32>
    %cst_41 = arith.constant 2.000000e-01 : f32
    %54 = vector.broadcast %cst_41 : f32 to vector<64x16xf32>
    %55 = arith.mulf %54, %51 : vector<64x16xf32>
    %56 = arith.select %53, %51, %55 : vector<64x16xi1>, vector<64x16xf32>
    %c0_42 = arith.constant 0 : index
    %c0_43 = arith.constant 0 : index
    %57 = vector.load %arg7[%c0_42, %c0_43] : memref<16x16xf32, #tpu.memory_space<vmem>>, vector<16x16xf32>
    %cst_44 = arith.constant dense<0.000000e+00> : vector<64x16xf32>
    %58 = tpu.matmul %56, %57, %cst_44 {dimension_numbers = #tpu.dot_dimension_numbers<[1], [0], [0], [1], [0, 0, 1, 1], [], []>} : vector<64x16xf32>, vector<16x16xf32>, vector<64x16xf32> -> vector<64x16xf32>
    %c0_45 = arith.constant 0 : index
    %c0_46 = arith.constant 0 : index
    %59 = vector.load %arg8[%c0_45, %c0_46] : memref<1x16xf32, #tpu.memory_space<vmem>>, vector<1x16xf32>
    %60 = vector.broadcast %59 : vector<1x16xf32> to vector<64x16xf32>
    %61 = arith.addf %58, %60 : vector<64x16xf32>
    %cst_47 = arith.constant 0.000000e+00 : f32
    %62 = vector.broadcast %cst_47 : f32 to vector<64x16xf32>
    %63 = arith.cmpf oge, %61, %62 : vector<64x16xf32>
    %cst_48 = arith.constant 2.000000e-01 : f32
    %64 = vector.broadcast %cst_48 : f32 to vector<64x16xf32>
    %65 = arith.mulf %64, %61 : vector<64x16xf32>
    %66 = arith.select %63, %61, %65 : vector<64x16xi1>, vector<64x16xf32>
    %c0_49 = arith.constant 0 : index
    %c0_50 = arith.constant 0 : index
    %67 = vector.load %arg9[%c0_49, %c0_50] : memref<16x8xf32, #tpu.memory_space<vmem>>, vector<16x8xf32>
    %cst_51 = arith.constant dense<0.000000e+00> : vector<64x8xf32>
    %68 = tpu.matmul %66, %67, %cst_51 {dimension_numbers = #tpu.dot_dimension_numbers<[1], [0], [0], [1], [0, 0, 1, 1], [], []>} : vector<64x16xf32>, vector<16x8xf32>, vector<64x8xf32> -> vector<64x8xf32>
    %c0_52 = arith.constant 0 : index
    %c0_53 = arith.constant 0 : index
    %69 = vector.load %arg10[%c0_52, %c0_53] : memref<1x8xf32, #tpu.memory_space<vmem>>, vector<1x8xf32>
    %70 = vector.broadcast %69 : vector<1x8xf32> to vector<64x8xf32>
    %71 = arith.addf %68, %70 : vector<64x8xf32>
    %c0_54 = arith.constant 0 : index
    %c0_55 = arith.constant 0 : index
    %72 = vector.load %arg11[%c0_54, %c0_55] : memref<64x8xf32, #tpu.memory_space<vmem>>, vector<64x8xf32>
    tpu.vector_store %arg11[%c0_54, %c0_55], %35 {strides = array<i32>} : memref<64x8xf32, #tpu.memory_space<vmem>>, vector<64x8xf32>,
    %c0_56 = arith.constant 0 : index
    %c0_57 = arith.constant 0 : index
    %73 = vector.load %arg12[%c0_56, %c0_57] : memref<64x8xf32, #tpu.memory_space<vmem>>, vector<64x8xf32>
    tpu.vector_store %arg12[%c0_56, %c0_57], %71 {strides = array<i32>} : memref<64x8xf32, #tpu.memory_space<vmem>>, vector<64x8xf32>,
    %74 = arith.addf %35, %71 : vector<64x8xf32>
    %cst_58 = arith.constant 5.000000e-01 : f32
    %75 = vector.broadcast %cst_58 : f32 to vector<64x8xf32>
    %76 = arith.mulf %74, %75 : vector<64x8xf32>
    %c0_59 = arith.constant 0 : index
    %c0_60 = arith.constant 0 : index
    %77 = vector.load %arg13[%c0_59, %c0_60] : memref<64x8xf32, #tpu.memory_space<vmem>>, vector<64x8xf32>
    tpu.vector_store %arg13[%c0_59, %c0_60], %76 {strides = array<i32>} : memref<64x8xf32, #tpu.memory_space<vmem>>, vector<64x8xf32>,
    return
  }
  func.func @transform_0(%arg0: i32) -> (i32, i32) {
    %c0_i32 = arith.constant 0 : i32
    %c0_i32_0 = arith.constant 0 : i32
    %c0_i32_1 = arith.constant 0 : i32
    return %c0_i32, %c0_i32_0 : i32, i32
  }
  func.func @transform_1(%arg0: i32) -> (i32, i32) {
    %c0_i32 = arith.constant 0 : i32
    %c0_i32_0 = arith.constant 0 : i32
    %c0_i32_1 = arith.constant 0 : i32
    return %c0_i32, %c0_i32_0 : i32, i32
  }
  func.func @transform_2(%arg0: i32) -> (i32, i32) {
    %c0_i32 = arith.constant 0 : i32
    %c0_i32_0 = arith.constant 0 : i32
    %c0_i32_1 = arith.constant 0 : i32
    return %c0_i32, %c0_i32_0 : i32, i32
  }
  func.func @transform_3(%arg0: i32) -> (i32, i32) {
    %c0_i32 = arith.constant 0 : i32
    %c0_i32_0 = arith.constant 0 : i32
    %c0_i32_1 = arith.constant 0 : i32
    return %c0_i32, %c0_i32_0 : i32, i32
  }
  func.func @transform_4(%arg0: i32) -> (i32, i32) {
    %c0_i32 = arith.constant 0 : i32
    %c0_i32_0 = arith.constant 0 : i32
    %c0_i32_1 = arith.constant 0 : i32
    return %c0_i32, %c0_i32_0 : i32, i32
  }
  func.func @transform_5(%arg0: i32) -> (i32, i32) {
    %c0_i32 = arith.constant 0 : i32
    %c0_i32_0 = arith.constant 0 : i32
    %c0_i32_1 = arith.constant 0 : i32
    return %c0_i32, %c0_i32_0 : i32, i32
  }
  func.func @transform_6(%arg0: i32) -> (i32, i32) {
    %c0_i32 = arith.constant 0 : i32
    %c0_i32_0 = arith.constant 0 : i32
    %c0_i32_1 = arith.constant 0 : i32
    return %c0_i32, %c0_i32_0 : i32, i32
  }
  func.func @transform_7(%arg0: i32) -> (i32, i32) {
    %c0_i32 = arith.constant 0 : i32
    %c0_i32_0 = arith.constant 0 : i32
    %c0_i32_1 = arith.constant 0 : i32
    return %c0_i32, %c0_i32_0 : i32, i32
  }
  func.func @transform_8(%arg0: i32) -> (i32, i32) {
    %c0_i32 = arith.constant 0 : i32
    %c0_i32_0 = arith.constant 0 : i32
    %c0_i32_1 = arith.constant 0 : i32
    return %c0_i32, %c0_i32_0 : i32, i32
  }
  func.func @transform_9(%arg0: i32) -> (i32, i32) {
    %c0_i32 = arith.constant 0 : i32
    %c0_i32_0 = arith.constant 0 : i32
    %c0_i32_1 = arith.constant 0 : i32
    return %c0_i32, %c0_i32_0 : i32, i32
  }
  func.func @transform_10(%arg0: i32) -> (i32, i32) {
    %c0_i32 = arith.constant 0 : i32
    %c0_i32_0 = arith.constant 0 : i32
    %c0_i32_1 = arith.constant 0 : i32
    return %c0_i32, %c0_i32_0 : i32, i32
  }
  func.func @transform_11(%arg0: i32) -> (i32, i32) {
    %c0_i32 = arith.constant 0 : i32
    %c0_i32_0 = arith.constant 0 : i32
    %c0_i32_1 = arith.constant 0 : i32
    return %c0_i32, %c0_i32_0 : i32, i32
  }
  func.func @transform_12(%arg0: i32) -> (i32, i32) {
    %c0_i32 = arith.constant 0 : i32
    %c0_i32_0 = arith.constant 0 : i32
    %c0_i32_1 = arith.constant 0 : i32
    return %c0_i32, %c0_i32_0 : i32, i32
  }
}

module attributes {stable_mosaic.version = 11 : i64} {
  func.func @_igae_encoder_kernel(%arg0: i32, %arg1: memref<64x32xf32, #tpu.memory_space<vmem>>, %arg2: memref<64x32xf32, #tpu.memory_space<vmem>>, %arg3: memref<64x64xf32, #tpu.memory_space<vmem>>, %arg4: memref<64x64xf32, #tpu.memory_space<vmem>>, %arg5: memref<32x32xf32, #tpu.memory_space<vmem>>, %arg6: memref<32x16xf32, #tpu.memory_space<vmem>>, %arg7: memref<16x8xf32, #tpu.memory_space<vmem>>, %arg8: memref<64x8xf32, #tpu.memory_space<vmem>>, %arg9: memref<64x8xf32, #tpu.memory_space<vmem>>, %arg10: memref<64x64xf32, #tpu.memory_space<vmem>>, %arg11: memref<64x32xf32, #tpu.memory_space<vmem>>, %arg12: memref<64x16xf32, #tpu.memory_space<vmem>>, %arg13: memref<64x8xf32, #tpu.memory_space<vmem>>, %arg14: memref<64x32xf32, #tpu.memory_space<vmem>>, %arg15: memref<64x16xf32, #tpu.memory_space<vmem>>, %arg16: memref<64x8xf32, #tpu.memory_space<vmem>>) attributes {dimension_semantics = [#tpu.dimension_semantics<arbitrary>], iteration_bounds = array<i64: 1>, scalar_prefetch = 0 : i64, scratch_operands = 0 : i64, tpu.core_type = #tpu.core_type<tc>, window_params = [{pipeline_mode = #tpu.pipeline_mode<synchronous>, transform_indices = @transform_0, window_bounds = array<i64: 64, 32>}, {pipeline_mode = #tpu.pipeline_mode<synchronous>, transform_indices = @transform_1, window_bounds = array<i64: 64, 32>}, {pipeline_mode = #tpu.pipeline_mode<synchronous>, transform_indices = @transform_2, window_bounds = array<i64: 64, 64>}, {pipeline_mode = #tpu.pipeline_mode<synchronous>, transform_indices = @transform_3, window_bounds = array<i64: 64, 64>}, {pipeline_mode = #tpu.pipeline_mode<synchronous>, transform_indices = @transform_4, window_bounds = array<i64: 32, 32>}, {pipeline_mode = #tpu.pipeline_mode<synchronous>, transform_indices = @transform_5, window_bounds = array<i64: 32, 16>}, {pipeline_mode = #tpu.pipeline_mode<synchronous>, transform_indices = @transform_6, window_bounds = array<i64: 16, 8>}, {pipeline_mode = #tpu.pipeline_mode<synchronous>, transform_indices = @transform_7, window_bounds = array<i64: 64, 8>}, {pipeline_mode = #tpu.pipeline_mode<synchronous>, transform_indices = @transform_8, window_bounds = array<i64: 64, 8>}, {pipeline_mode = #tpu.pipeline_mode<synchronous>, transform_indices = @transform_9, window_bounds = array<i64: 64, 64>}, {pipeline_mode = #tpu.pipeline_mode<synchronous>, transform_indices = @transform_10, window_bounds = array<i64: 64, 32>}, {pipeline_mode = #tpu.pipeline_mode<synchronous>, transform_indices = @transform_11, window_bounds = array<i64: 64, 16>}, {pipeline_mode = #tpu.pipeline_mode<synchronous>, transform_indices = @transform_12, window_bounds = array<i64: 64, 8>}, {pipeline_mode = #tpu.pipeline_mode<synchronous>, transform_indices = @transform_13, window_bounds = array<i64: 64, 32>}, {pipeline_mode = #tpu.pipeline_mode<synchronous>, transform_indices = @transform_14, window_bounds = array<i64: 64, 16>}, {pipeline_mode = #tpu.pipeline_mode<synchronous>, transform_indices = @transform_15, window_bounds = array<i64: 64, 8>}]} {
    %c0 = arith.constant 0 : index
    %c0_0 = arith.constant 0 : index
    %0 = vector.load %arg1[%c0, %c0_0] : memref<64x32xf32, #tpu.memory_space<vmem>>, vector<64x32xf32>
    %c0_1 = arith.constant 0 : index
    %c0_2 = arith.constant 0 : index
    %1 = vector.load %arg3[%c0_1, %c0_2] : memref<64x64xf32, #tpu.memory_space<vmem>>, vector<64x64xf32>
    %c0_3 = arith.constant 0 : index
    %c0_4 = arith.constant 0 : index
    %2 = vector.load %arg5[%c0_3, %c0_4] : memref<32x32xf32, #tpu.memory_space<vmem>>, vector<32x32xf32>
    %cst = arith.constant dense<0.000000e+00> : vector<64x32xf32>
    %3 = tpu.matmul %0, %2, %cst {dimension_numbers = #tpu.dot_dimension_numbers<[1], [0], [0], [1], [0, 0, 1, 1], [], []>} : vector<64x32xf32>, vector<32x32xf32>, vector<64x32xf32> -> vector<64x32xf32>
    %4 = math.tanh %3 : vector<64x32xf32>
    %cst_5 = arith.constant dense<0.000000e+00> : vector<64x32xf32>
    %5 = tpu.matmul %1, %4, %cst_5 {dimension_numbers = #tpu.dot_dimension_numbers<[1], [0], [0], [1], [0, 0, 1, 1], [], []>} : vector<64x64xf32>, vector<64x32xf32>, vector<64x32xf32> -> vector<64x32xf32>
    %c0_6 = arith.constant 0 : index
    %c0_7 = arith.constant 0 : index
    %6 = vector.load %arg6[%c0_6, %c0_7] : memref<32x16xf32, #tpu.memory_space<vmem>>, vector<32x16xf32>
    %cst_8 = arith.constant dense<0.000000e+00> : vector<64x16xf32>
    %7 = tpu.matmul %5, %6, %cst_8 {dimension_numbers = #tpu.dot_dimension_numbers<[1], [0], [0], [1], [0, 0, 1, 1], [], []>} : vector<64x32xf32>, vector<32x16xf32>, vector<64x16xf32> -> vector<64x16xf32>
    %8 = math.tanh %7 : vector<64x16xf32>
    %cst_9 = arith.constant dense<0.000000e+00> : vector<64x16xf32>
    %9 = tpu.matmul %1, %8, %cst_9 {dimension_numbers = #tpu.dot_dimension_numbers<[1], [0], [0], [1], [0, 0, 1, 1], [], []>} : vector<64x64xf32>, vector<64x16xf32>, vector<64x16xf32> -> vector<64x16xf32>
    %c0_10 = arith.constant 0 : index
    %c0_11 = arith.constant 0 : index
    %10 = vector.load %arg7[%c0_10, %c0_11] : memref<16x8xf32, #tpu.memory_space<vmem>>, vector<16x8xf32>
    %cst_12 = arith.constant dense<0.000000e+00> : vector<64x8xf32>
    %11 = tpu.matmul %9, %10, %cst_12 {dimension_numbers = #tpu.dot_dimension_numbers<[1], [0], [0], [1], [0, 0, 1, 1], [], []>} : vector<64x16xf32>, vector<16x8xf32>, vector<64x8xf32> -> vector<64x8xf32>
    %cst_13 = arith.constant dense<0.000000e+00> : vector<64x8xf32>
    %12 = tpu.matmul %1, %11, %cst_13 {dimension_numbers = #tpu.dot_dimension_numbers<[1], [0], [0], [1], [0, 0, 1, 1], [], []>} : vector<64x64xf32>, vector<64x8xf32>, vector<64x8xf32> -> vector<64x8xf32>
    %cst_14 = arith.constant dense<0.000000e+00> : vector<64x64xf32>
    %13 = tpu.matmul %12, %12, %cst_14 {dimension_numbers = #tpu.dot_dimension_numbers<[1], [1], [0], [0], [0, 0, 1, 0], [], []>} : vector<64x8xf32>, vector<64x8xf32>, vector<64x64xf32> -> vector<64x64xf32>
    %14 = arith.negf %13 : vector<64x64xf32>
    %15 = math.exp %14 : vector<64x64xf32>
    %cst_15 = arith.constant 1.000000e+00 : f32
    %16 = vector.broadcast %cst_15 : f32 to vector<64x64xf32>
    %17 = arith.addf %16, %15 : vector<64x64xf32>
    %18 = arith.divf %16, %17 : vector<64x64xf32>
    %c0_16 = arith.constant 0 : index
    %c0_17 = arith.constant 0 : index
    %19 = vector.load %arg2[%c0_16, %c0_17] : memref<64x32xf32, #tpu.memory_space<vmem>>, vector<64x32xf32>
    %c0_18 = arith.constant 0 : index
    %c0_19 = arith.constant 0 : index
    %20 = vector.load %arg4[%c0_18, %c0_19] : memref<64x64xf32, #tpu.memory_space<vmem>>, vector<64x64xf32>
    %c0_20 = arith.constant 0 : index
    %c0_21 = arith.constant 0 : index
    %21 = vector.load %arg5[%c0_20, %c0_21] : memref<32x32xf32, #tpu.memory_space<vmem>>, vector<32x32xf32>
    %cst_22 = arith.constant dense<0.000000e+00> : vector<64x32xf32>
    %22 = tpu.matmul %19, %21, %cst_22 {dimension_numbers = #tpu.dot_dimension_numbers<[1], [0], [0], [1], [0, 0, 1, 1], [], []>} : vector<64x32xf32>, vector<32x32xf32>, vector<64x32xf32> -> vector<64x32xf32>
    %23 = math.tanh %22 : vector<64x32xf32>
    %cst_23 = arith.constant dense<0.000000e+00> : vector<64x32xf32>
    %24 = tpu.matmul %20, %23, %cst_23 {dimension_numbers = #tpu.dot_dimension_numbers<[1], [0], [0], [1], [0, 0, 1, 1], [], []>} : vector<64x64xf32>, vector<64x32xf32>, vector<64x32xf32> -> vector<64x32xf32>
    %c0_24 = arith.constant 0 : index
    %c0_25 = arith.constant 0 : index
    %25 = vector.load %arg6[%c0_24, %c0_25] : memref<32x16xf32, #tpu.memory_space<vmem>>, vector<32x16xf32>
    %cst_26 = arith.constant dense<0.000000e+00> : vector<64x16xf32>
    %26 = tpu.matmul %24, %25, %cst_26 {dimension_numbers = #tpu.dot_dimension_numbers<[1], [0], [0], [1], [0, 0, 1, 1], [], []>} : vector<64x32xf32>, vector<32x16xf32>, vector<64x16xf32> -> vector<64x16xf32>
    %27 = math.tanh %26 : vector<64x16xf32>
    %cst_27 = arith.constant dense<0.000000e+00> : vector<64x16xf32>
    %28 = tpu.matmul %20, %27, %cst_27 {dimension_numbers = #tpu.dot_dimension_numbers<[1], [0], [0], [1], [0, 0, 1, 1], [], []>} : vector<64x64xf32>, vector<64x16xf32>, vector<64x16xf32> -> vector<64x16xf32>
    %c0_28 = arith.constant 0 : index
    %c0_29 = arith.constant 0 : index
    %29 = vector.load %arg7[%c0_28, %c0_29] : memref<16x8xf32, #tpu.memory_space<vmem>>, vector<16x8xf32>
    %cst_30 = arith.constant dense<0.000000e+00> : vector<64x8xf32>
    %30 = tpu.matmul %28, %29, %cst_30 {dimension_numbers = #tpu.dot_dimension_numbers<[1], [0], [0], [1], [0, 0, 1, 1], [], []>} : vector<64x16xf32>, vector<16x8xf32>, vector<64x8xf32> -> vector<64x8xf32>
    %cst_31 = arith.constant dense<0.000000e+00> : vector<64x8xf32>
    %31 = tpu.matmul %20, %30, %cst_31 {dimension_numbers = #tpu.dot_dimension_numbers<[1], [0], [0], [1], [0, 0, 1, 1], [], []>} : vector<64x64xf32>, vector<64x8xf32>, vector<64x8xf32> -> vector<64x8xf32>
    %cst_32 = arith.constant dense<0.000000e+00> : vector<64x64xf32>
    %32 = tpu.matmul %31, %31, %cst_32 {dimension_numbers = #tpu.dot_dimension_numbers<[1], [1], [0], [0], [0, 0, 1, 0], [], []>} : vector<64x8xf32>, vector<64x8xf32>, vector<64x64xf32> -> vector<64x64xf32>
    %33 = arith.negf %32 : vector<64x64xf32>
    %34 = math.exp %33 : vector<64x64xf32>
    %cst_33 = arith.constant 1.000000e+00 : f32
    %35 = vector.broadcast %cst_33 : f32 to vector<64x64xf32>
    %36 = arith.addf %35, %34 : vector<64x64xf32>
    %37 = arith.divf %35, %36 : vector<64x64xf32>
    %c0_34 = arith.constant 0 : index
    %c0_35 = arith.constant 0 : index
    %38 = vector.load %arg8[%c0_34, %c0_35] : memref<64x8xf32, #tpu.memory_space<vmem>>, vector<64x8xf32>
    tpu.vector_store %arg8[%c0_34, %c0_35], %12 {strides = array<i32>} : memref<64x8xf32, #tpu.memory_space<vmem>>, vector<64x8xf32>,
    %c0_36 = arith.constant 0 : index
    %c0_37 = arith.constant 0 : index
    %39 = vector.load %arg9[%c0_36, %c0_37] : memref<64x8xf32, #tpu.memory_space<vmem>>, vector<64x8xf32>
    tpu.vector_store %arg9[%c0_36, %c0_37], %31 {strides = array<i32>} : memref<64x8xf32, #tpu.memory_space<vmem>>, vector<64x8xf32>,
    %40 = arith.addf %18, %37 : vector<64x64xf32>
    %cst_38 = arith.constant 5.000000e-01 : f32
    %41 = vector.broadcast %cst_38 : f32 to vector<64x64xf32>
    %42 = arith.mulf %40, %41 : vector<64x64xf32>
    %c0_39 = arith.constant 0 : index
    %c0_40 = arith.constant 0 : index
    %43 = vector.load %arg10[%c0_39, %c0_40] : memref<64x64xf32, #tpu.memory_space<vmem>>, vector<64x64xf32>
    tpu.vector_store %arg10[%c0_39, %c0_40], %42 {strides = array<i32>} : memref<64x64xf32, #tpu.memory_space<vmem>>, vector<64x64xf32>,
    %44 = arith.addf %5, %24 : vector<64x32xf32>
    %cst_41 = arith.constant 5.000000e-01 : f32
    %45 = vector.broadcast %cst_41 : f32 to vector<64x32xf32>
    %46 = arith.mulf %44, %45 : vector<64x32xf32>
    %c0_42 = arith.constant 0 : index
    %c0_43 = arith.constant 0 : index
    %47 = vector.load %arg11[%c0_42, %c0_43] : memref<64x32xf32, #tpu.memory_space<vmem>>, vector<64x32xf32>
    tpu.vector_store %arg11[%c0_42, %c0_43], %46 {strides = array<i32>} : memref<64x32xf32, #tpu.memory_space<vmem>>, vector<64x32xf32>,
    %48 = arith.addf %9, %28 : vector<64x16xf32>
    %cst_44 = arith.constant 5.000000e-01 : f32
    %49 = vector.broadcast %cst_44 : f32 to vector<64x16xf32>
    %50 = arith.mulf %48, %49 : vector<64x16xf32>
    %c0_45 = arith.constant 0 : index
    %c0_46 = arith.constant 0 : index
    %51 = vector.load %arg12[%c0_45, %c0_46] : memref<64x16xf32, #tpu.memory_space<vmem>>, vector<64x16xf32>
    tpu.vector_store %arg12[%c0_45, %c0_46], %50 {strides = array<i32>} : memref<64x16xf32, #tpu.memory_space<vmem>>, vector<64x16xf32>,
    %52 = arith.addf %12, %31 : vector<64x8xf32>
    %cst_47 = arith.constant 5.000000e-01 : f32
    %53 = vector.broadcast %cst_47 : f32 to vector<64x8xf32>
    %54 = arith.mulf %52, %53 : vector<64x8xf32>
    %c0_48 = arith.constant 0 : index
    %c0_49 = arith.constant 0 : index
    %55 = vector.load %arg13[%c0_48, %c0_49] : memref<64x8xf32, #tpu.memory_space<vmem>>, vector<64x8xf32>
    tpu.vector_store %arg13[%c0_48, %c0_49], %54 {strides = array<i32>} : memref<64x8xf32, #tpu.memory_space<vmem>>, vector<64x8xf32>,
    %56 = arith.addf %4, %23 : vector<64x32xf32>
    %cst_50 = arith.constant 5.000000e-01 : f32
    %57 = vector.broadcast %cst_50 : f32 to vector<64x32xf32>
    %58 = arith.mulf %56, %57 : vector<64x32xf32>
    %c0_51 = arith.constant 0 : index
    %c0_52 = arith.constant 0 : index
    %59 = vector.load %arg14[%c0_51, %c0_52] : memref<64x32xf32, #tpu.memory_space<vmem>>, vector<64x32xf32>
    tpu.vector_store %arg14[%c0_51, %c0_52], %58 {strides = array<i32>} : memref<64x32xf32, #tpu.memory_space<vmem>>, vector<64x32xf32>,
    %60 = arith.addf %8, %27 : vector<64x16xf32>
    %cst_53 = arith.constant 5.000000e-01 : f32
    %61 = vector.broadcast %cst_53 : f32 to vector<64x16xf32>
    %62 = arith.mulf %60, %61 : vector<64x16xf32>
    %c0_54 = arith.constant 0 : index
    %c0_55 = arith.constant 0 : index
    %63 = vector.load %arg15[%c0_54, %c0_55] : memref<64x16xf32, #tpu.memory_space<vmem>>, vector<64x16xf32>
    tpu.vector_store %arg15[%c0_54, %c0_55], %62 {strides = array<i32>} : memref<64x16xf32, #tpu.memory_space<vmem>>, vector<64x16xf32>,
    %64 = arith.addf %11, %30 : vector<64x8xf32>
    %cst_56 = arith.constant 5.000000e-01 : f32
    %65 = vector.broadcast %cst_56 : f32 to vector<64x8xf32>
    %66 = arith.mulf %64, %65 : vector<64x8xf32>
    %c0_57 = arith.constant 0 : index
    %c0_58 = arith.constant 0 : index
    %67 = vector.load %arg16[%c0_57, %c0_58] : memref<64x8xf32, #tpu.memory_space<vmem>>, vector<64x8xf32>
    tpu.vector_store %arg16[%c0_57, %c0_58], %66 {strides = array<i32>} : memref<64x8xf32, #tpu.memory_space<vmem>>, vector<64x8xf32>,
    return
  }
  func.func @transform_0(%arg0: i32) -> (i32, i32) {
    %c0_i32 = arith.constant 0 : i32
    %c0_i32_0 = arith.constant 0 : i32
    %c0_i32_1 = arith.constant 0 : i32
    return %c0_i32, %c0_i32_0 : i32, i32
  }
  func.func @transform_1(%arg0: i32) -> (i32, i32) {
    %c0_i32 = arith.constant 0 : i32
    %c0_i32_0 = arith.constant 0 : i32
    %c0_i32_1 = arith.constant 0 : i32
    return %c0_i32, %c0_i32_0 : i32, i32
  }
  func.func @transform_2(%arg0: i32) -> (i32, i32) {
    %c0_i32 = arith.constant 0 : i32
    %c0_i32_0 = arith.constant 0 : i32
    %c0_i32_1 = arith.constant 0 : i32
    return %c0_i32, %c0_i32_0 : i32, i32
  }
  func.func @transform_3(%arg0: i32) -> (i32, i32) {
    %c0_i32 = arith.constant 0 : i32
    %c0_i32_0 = arith.constant 0 : i32
    %c0_i32_1 = arith.constant 0 : i32
    return %c0_i32, %c0_i32_0 : i32, i32
  }
  func.func @transform_4(%arg0: i32) -> (i32, i32) {
    %c0_i32 = arith.constant 0 : i32
    %c0_i32_0 = arith.constant 0 : i32
    %c0_i32_1 = arith.constant 0 : i32
    return %c0_i32, %c0_i32_0 : i32, i32
  }
  func.func @transform_5(%arg0: i32) -> (i32, i32) {
    %c0_i32 = arith.constant 0 : i32
    %c0_i32_0 = arith.constant 0 : i32
    %c0_i32_1 = arith.constant 0 : i32
    return %c0_i32, %c0_i32_0 : i32, i32
  }
  func.func @transform_6(%arg0: i32) -> (i32, i32) {
    %c0_i32 = arith.constant 0 : i32
    %c0_i32_0 = arith.constant 0 : i32
    %c0_i32_1 = arith.constant 0 : i32
    return %c0_i32, %c0_i32_0 : i32, i32
  }
  func.func @transform_7(%arg0: i32) -> (i32, i32) {
    %c0_i32 = arith.constant 0 : i32
    %c0_i32_0 = arith.constant 0 : i32
    %c0_i32_1 = arith.constant 0 : i32
    return %c0_i32, %c0_i32_0 : i32, i32
  }
  func.func @transform_8(%arg0: i32) -> (i32, i32) {
    %c0_i32 = arith.constant 0 : i32
    %c0_i32_0 = arith.constant 0 : i32
    %c0_i32_1 = arith.constant 0 : i32
    return %c0_i32, %c0_i32_0 : i32, i32
  }
  func.func @transform_9(%arg0: i32) -> (i32, i32) {
    %c0_i32 = arith.constant 0 : i32
    %c0_i32_0 = arith.constant 0 : i32
    %c0_i32_1 = arith.constant 0 : i32
    return %c0_i32, %c0_i32_0 : i32, i32
  }
  func.func @transform_10(%arg0: i32) -> (i32, i32) {
    %c0_i32 = arith.constant 0 : i32
    %c0_i32_0 = arith.constant 0 : i32
    %c0_i32_1 = arith.constant 0 : i32
    return %c0_i32, %c0_i32_0 : i32, i32
  }
  func.func @transform_11(%arg0: i32) -> (i32, i32) {
    %c0_i32 = arith.constant 0 : i32
    %c0_i32_0 = arith.constant 0 : i32
    %c0_i32_1 = arith.constant 0 : i32
    return %c0_i32, %c0_i32_0 : i32, i32
  }
  func.func @transform_12(%arg0: i32) -> (i32, i32) {
    %c0_i32 = arith.constant 0 : i32
    %c0_i32_0 = arith.constant 0 : i32
    %c0_i32_1 = arith.constant 0 : i32
    return %c0_i32, %c0_i32_0 : i32, i32
  }
  func.func @transform_13(%arg0: i32) -> (i32, i32) {
    %c0_i32 = arith.constant 0 : i32
    %c0_i32_0 = arith.constant 0 : i32
    %c0_i32_1 = arith.constant 0 : i32
    return %c0_i32, %c0_i32_0 : i32, i32
  }
  func.func @transform_14(%arg0: i32) -> (i32, i32) {
    %c0_i32 = arith.constant 0 : i32
    %c0_i32_0 = arith.constant 0 : i32
    %c0_i32_1 = arith.constant 0 : i32
    return %c0_i32, %c0_i32_0 : i32, i32
  }
  func.func @transform_15(%arg0: i32) -> (i32, i32) {
    %c0_i32 = arith.constant 0 : i32
    %c0_i32_0 = arith.constant 0 : i32
    %c0_i32_1 = arith.constant 0 : i32
    return %c0_i32, %c0_i32_0 : i32, i32
  }
}

module attributes {stable_mosaic.version = 11 : i64} {
  func.func @_fusion_q_kernel(%arg0: i32, %arg1: memref<64x8xf32, #tpu.memory_space<vmem>>, %arg2: memref<64x8xf32, #tpu.memory_space<vmem>>, %arg3: memref<64x8xf32, #tpu.memory_space<vmem>>, %arg4: memref<64x8xf32, #tpu.memory_space<vmem>>, %arg5: memref<64x64xf32, #tpu.memory_space<vmem>>, %arg6: memref<4x8xf32, #tpu.memory_space<vmem>>, %arg7: memref<1x1xf32, #tpu.memory_space<smem>>, %arg8: memref<64x8xf32, #tpu.memory_space<vmem>>, %arg9: memref<64x4xf32, #tpu.memory_space<vmem>>, %arg10: memref<64x4xf32, #tpu.memory_space<vmem>>, %arg11: memref<64x4xf32, #tpu.memory_space<vmem>>) attributes {dimension_semantics = [#tpu.dimension_semantics<arbitrary>], iteration_bounds = array<i64: 1>, scalar_prefetch = 0 : i64, scratch_operands = 0 : i64, tpu.core_type = #tpu.core_type<tc>, window_params = [{pipeline_mode = #tpu.pipeline_mode<synchronous>, transform_indices = @transform_0, window_bounds = array<i64: 64, 8>}, {pipeline_mode = #tpu.pipeline_mode<synchronous>, transform_indices = @transform_1, window_bounds = array<i64: 64, 8>}, {pipeline_mode = #tpu.pipeline_mode<synchronous>, transform_indices = @transform_2, window_bounds = array<i64: 64, 8>}, {pipeline_mode = #tpu.pipeline_mode<synchronous>, transform_indices = @transform_3, window_bounds = array<i64: 64, 8>}, {pipeline_mode = #tpu.pipeline_mode<synchronous>, transform_indices = @transform_4, window_bounds = array<i64: 64, 64>}, {pipeline_mode = #tpu.pipeline_mode<synchronous>, transform_indices = @transform_5, window_bounds = array<i64: 4, 8>}, {transform_indices = @transform_6, window_bounds = array<i64: 1, 1>}, {pipeline_mode = #tpu.pipeline_mode<synchronous>, transform_indices = @transform_7, window_bounds = array<i64: 64, 8>}, {pipeline_mode = #tpu.pipeline_mode<synchronous>, transform_indices = @transform_8, window_bounds = array<i64: 64, 4>}, {pipeline_mode = #tpu.pipeline_mode<synchronous>, transform_indices = @transform_9, window_bounds = array<i64: 64, 4>}, {pipeline_mode = #tpu.pipeline_mode<synchronous>, transform_indices = @transform_10, window_bounds = array<i64: 64, 4>}]} {
    %c0 = arith.constant 0 : index
    %c0_0 = arith.constant 0 : index
    %0 = vector.load %arg1[%c0, %c0_0] : memref<64x8xf32, #tpu.memory_space<vmem>>, vector<64x8xf32>
    %c0_1 = arith.constant 0 : index
    %c0_2 = arith.constant 0 : index
    %1 = vector.load %arg2[%c0_1, %c0_2] : memref<64x8xf32, #tpu.memory_space<vmem>>, vector<64x8xf32>
    %c0_3 = arith.constant 0 : index
    %c0_4 = arith.constant 0 : index
    %2 = vector.load %arg3[%c0_3, %c0_4] : memref<64x8xf32, #tpu.memory_space<vmem>>, vector<64x8xf32>
    %3 = arith.mulf %2, %0 : vector<64x8xf32>
    %c0_5 = arith.constant 0 : index
    %c0_6 = arith.constant 0 : index
    %4 = vector.load %arg4[%c0_5, %c0_6] : memref<64x8xf32, #tpu.memory_space<vmem>>, vector<64x8xf32>
    %5 = arith.mulf %4, %1 : vector<64x8xf32>
    %6 = arith.addf %3, %5 : vector<64x8xf32>
    %c0_7 = arith.constant 0 : index
    %c0_8 = arith.constant 0 : index
    %7 = vector.load %arg5[%c0_7, %c0_8] : memref<64x64xf32, #tpu.memory_space<vmem>>, vector<64x64xf32>
    %cst = arith.constant dense<0.000000e+00> : vector<64x8xf32>
    %8 = tpu.matmul %7, %6, %cst {dimension_numbers = #tpu.dot_dimension_numbers<[1], [0], [0], [1], [0, 0, 1, 1], [], []>} : vector<64x64xf32>, vector<64x8xf32>, vector<64x8xf32> -> vector<64x8xf32>
    %cst_9 = arith.constant dense<0.000000e+00> : vector<64x64xf32>
    %9 = tpu.matmul %8, %8, %cst_9 {dimension_numbers = #tpu.dot_dimension_numbers<[1], [1], [0], [0], [0, 0, 1, 0], [], []>} : vector<64x8xf32>, vector<64x8xf32>, vector<64x64xf32> -> vector<64x64xf32>
    %cst_10 = arith.constant dense<0xFF800000> : vector<64xf32>
    %10 = vector.multi_reduction <maximumf>, %9, %cst_10 [1] : vector<64x64xf32> to vector<64xf32>
    %11 = vector.shape_cast %10 : vector<64xf32> to vector<64x1xf32>
    %12 = vector.broadcast %11 : vector<64x1xf32> to vector<64x64xf32>
    %13 = arith.subf %9, %12 : vector<64x64xf32>
    %14 = math.exp %13 : vector<64x64xf32>
    %cst_11 = arith.constant dense<0.000000e+00> : vector<64xf32>
    %15 = vector.multi_reduction <add>, %14, %cst_11 [1] : vector<64x64xf32> to vector<64xf32>
    %16 = vector.shape_cast %15 : vector<64xf32> to vector<64x1xf32>
    %17 = tpu.reciprocal %16 {approx = true} : vector<64x1xf32> -> vector<64x1xf32>
    %18 = vector.broadcast %17 : vector<64x1xf32> to vector<64x64xf32>
    %19 = arith.mulf %14, %18 : vector<64x64xf32>
    %cst_12 = arith.constant dense<0.000000e+00> : vector<64x8xf32>
    %20 = tpu.matmul %19, %8, %cst_12 {dimension_numbers = #tpu.dot_dimension_numbers<[1], [0], [0], [1], [0, 0, 1, 1], [], []>} : vector<64x64xf32>, vector<64x8xf32>, vector<64x8xf32> -> vector<64x8xf32>
    %c0_13 = arith.constant 0 : index
    %c0_14 = arith.constant 0 : index
    %21 = memref.load %arg7[%c0_13, %c0_14] : memref<1x1xf32, #tpu.memory_space<smem>>
    %22 = vector.broadcast %21 : f32 to vector<64x8xf32>
    %23 = arith.mulf %22, %20 : vector<64x8xf32>
    %24 = arith.addf %23, %8 : vector<64x8xf32>
    %c0_15 = arith.constant 0 : index
    %c0_16 = arith.constant 0 : index
    %25 = vector.load %arg8[%c0_15, %c0_16] : memref<64x8xf32, #tpu.memory_space<vmem>>, vector<64x8xf32>
    tpu.vector_store %arg8[%c0_15, %c0_16], %24 {strides = array<i32>} : memref<64x8xf32, #tpu.memory_space<vmem>>, vector<64x8xf32>,
    %c0_17 = arith.constant 0 : index
    %c0_18 = arith.constant 0 : index
    %26 = vector.load %arg6[%c0_17, %c0_18] : memref<4x8xf32, #tpu.memory_space<vmem>>, vector<4x8xf32>
    %cst_19 = arith.constant 1.000000e+00 : f32
    %27 = vector.broadcast %cst_19 : f32 to vector<1x8xf32>
    %28 = arith.mulf %26, %26 : vector<4x8xf32>
    %cst_20 = arith.constant dense<0.000000e+00> : vector<1x4xf32>
    %29 = tpu.matmul %27, %28, %cst_20 {dimension_numbers = #tpu.dot_dimension_numbers<[1], [1], [0], [0], [0, 0, 1, 0], [], []>} : vector<1x8xf32>, vector<4x8xf32>, vector<1x4xf32> -> vector<1x4xf32>
    %30 = arith.mulf %24, %24 : vector<64x8xf32>
    %cst_21 = arith.constant dense<0.000000e+00> : vector<64xf32>
    %31 = vector.multi_reduction <add>, %30, %cst_21 [1] : vector<64x8xf32> to vector<64xf32>
    %32 = vector.shape_cast %31 : vector<64xf32> to vector<64x1xf32>
    %cst_22 = arith.constant dense<0.000000e+00> : vector<64x4xf32>
    %33 = tpu.matmul %24, %26, %cst_22 {dimension_numbers = #tpu.dot_dimension_numbers<[1], [1], [0], [0], [0, 0, 1, 0], [], []>} : vector<64x8xf32>, vector<4x8xf32>, vector<64x4xf32> -> vector<64x4xf32>
    %cst_23 = arith.constant 2.000000e+00 : f32
    %34 = vector.broadcast %cst_23 : f32 to vector<64x4xf32>
    %35 = arith.mulf %34, %33 : vector<64x4xf32>
    %36 = vector.broadcast %32 : vector<64x1xf32> to vector<64x4xf32>
    %37 = arith.subf %36, %35 : vector<64x4xf32>
    %38 = vector.broadcast %29 : vector<1x4xf32> to vector<64x4xf32>
    %39 = arith.addf %37, %38 : vector<64x4xf32>
    %cst_24 = arith.constant 0.000000e+00 : f32
    %40 = vector.broadcast %cst_24 : f32 to vector<64x4xf32>
    %41 = arith.maximumf %39, %40 : vector<64x4xf32>
    %cst_25 = arith.constant 1.000000e+00 : f32
    %42 = vector.broadcast %cst_25 : f32 to vector<64x4xf32>
    %43 = arith.addf %42, %41 : vector<64x4xf32>
    %44 = tpu.reciprocal %43 {approx = true} : vector<64x4xf32> -> vector<64x4xf32>
    %cst_26 = arith.constant dense<0.000000e+00> : vector<64xf32>
    %45 = vector.multi_reduction <add>, %44, %cst_26 [1] : vector<64x4xf32> to vector<64xf32>
    %46 = vector.shape_cast %45 : vector<64xf32> to vector<64x1xf32>
    %47 = tpu.reciprocal %46 {approx = true} : vector<64x1xf32> -> vector<64x1xf32>
    %48 = vector.broadcast %47 : vector<64x1xf32> to vector<64x4xf32>
    %49 = arith.mulf %44, %48 : vector<64x4xf32>
    %c0_27 = arith.constant 0 : index
    %c0_28 = arith.constant 0 : index
    %50 = vector.load %arg9[%c0_27, %c0_28] : memref<64x4xf32, #tpu.memory_space<vmem>>, vector<64x4xf32>
    tpu.vector_store %arg9[%c0_27, %c0_28], %49 {strides = array<i32>} : memref<64x4xf32, #tpu.memory_space<vmem>>, vector<64x4xf32>,
    %51 = arith.mulf %0, %0 : vector<64x8xf32>
    %cst_29 = arith.constant dense<0.000000e+00> : vector<64xf32>
    %52 = vector.multi_reduction <add>, %51, %cst_29 [1] : vector<64x8xf32> to vector<64xf32>
    %53 = vector.shape_cast %52 : vector<64xf32> to vector<64x1xf32>
    %cst_30 = arith.constant dense<0.000000e+00> : vector<64x4xf32>
    %54 = tpu.matmul %0, %26, %cst_30 {dimension_numbers = #tpu.dot_dimension_numbers<[1], [1], [0], [0], [0, 0, 1, 0], [], []>} : vector<64x8xf32>, vector<4x8xf32>, vector<64x4xf32> -> vector<64x4xf32>
    %cst_31 = arith.constant 2.000000e+00 : f32
    %55 = vector.broadcast %cst_31 : f32 to vector<64x4xf32>
    %56 = arith.mulf %55, %54 : vector<64x4xf32>
    %57 = vector.broadcast %53 : vector<64x1xf32> to vector<64x4xf32>
    %58 = arith.subf %57, %56 : vector<64x4xf32>
    %59 = vector.broadcast %29 : vector<1x4xf32> to vector<64x4xf32>
    %60 = arith.addf %58, %59 : vector<64x4xf32>
    %cst_32 = arith.constant 0.000000e+00 : f32
    %61 = vector.broadcast %cst_32 : f32 to vector<64x4xf32>
    %62 = arith.maximumf %60, %61 : vector<64x4xf32>
    %cst_33 = arith.constant 1.000000e+00 : f32
    %63 = vector.broadcast %cst_33 : f32 to vector<64x4xf32>
    %64 = arith.addf %63, %62 : vector<64x4xf32>
    %65 = tpu.reciprocal %64 {approx = true} : vector<64x4xf32> -> vector<64x4xf32>
    %cst_34 = arith.constant dense<0.000000e+00> : vector<64xf32>
    %66 = vector.multi_reduction <add>, %65, %cst_34 [1] : vector<64x4xf32> to vector<64xf32>
    %67 = vector.shape_cast %66 : vector<64xf32> to vector<64x1xf32>
    %68 = tpu.reciprocal %67 {approx = true} : vector<64x1xf32> -> vector<64x1xf32>
    %69 = vector.broadcast %68 : vector<64x1xf32> to vector<64x4xf32>
    %70 = arith.mulf %65, %69 : vector<64x4xf32>
    %c0_35 = arith.constant 0 : index
    %c0_36 = arith.constant 0 : index
    %71 = vector.load %arg10[%c0_35, %c0_36] : memref<64x4xf32, #tpu.memory_space<vmem>>, vector<64x4xf32>
    tpu.vector_store %arg10[%c0_35, %c0_36], %70 {strides = array<i32>} : memref<64x4xf32, #tpu.memory_space<vmem>>, vector<64x4xf32>,
    %72 = arith.mulf %1, %1 : vector<64x8xf32>
    %cst_37 = arith.constant dense<0.000000e+00> : vector<64xf32>
    %73 = vector.multi_reduction <add>, %72, %cst_37 [1] : vector<64x8xf32> to vector<64xf32>
    %74 = vector.shape_cast %73 : vector<64xf32> to vector<64x1xf32>
    %cst_38 = arith.constant dense<0.000000e+00> : vector<64x4xf32>
    %75 = tpu.matmul %1, %26, %cst_38 {dimension_numbers = #tpu.dot_dimension_numbers<[1], [1], [0], [0], [0, 0, 1, 0], [], []>} : vector<64x8xf32>, vector<4x8xf32>, vector<64x4xf32> -> vector<64x4xf32>
    %cst_39 = arith.constant 2.000000e+00 : f32
    %76 = vector.broadcast %cst_39 : f32 to vector<64x4xf32>
    %77 = arith.mulf %76, %75 : vector<64x4xf32>
    %78 = vector.broadcast %74 : vector<64x1xf32> to vector<64x4xf32>
    %79 = arith.subf %78, %77 : vector<64x4xf32>
    %80 = vector.broadcast %29 : vector<1x4xf32> to vector<64x4xf32>
    %81 = arith.addf %79, %80 : vector<64x4xf32>
    %cst_40 = arith.constant 0.000000e+00 : f32
    %82 = vector.broadcast %cst_40 : f32 to vector<64x4xf32>
    %83 = arith.maximumf %81, %82 : vector<64x4xf32>
    %cst_41 = arith.constant 1.000000e+00 : f32
    %84 = vector.broadcast %cst_41 : f32 to vector<64x4xf32>
    %85 = arith.addf %84, %83 : vector<64x4xf32>
    %86 = tpu.reciprocal %85 {approx = true} : vector<64x4xf32> -> vector<64x4xf32>
    %cst_42 = arith.constant dense<0.000000e+00> : vector<64xf32>
    %87 = vector.multi_reduction <add>, %86, %cst_42 [1] : vector<64x4xf32> to vector<64xf32>
    %88 = vector.shape_cast %87 : vector<64xf32> to vector<64x1xf32>
    %89 = tpu.reciprocal %88 {approx = true} : vector<64x1xf32> -> vector<64x1xf32>
    %90 = vector.broadcast %89 : vector<64x1xf32> to vector<64x4xf32>
    %91 = arith.mulf %86, %90 : vector<64x4xf32>
    %c0_43 = arith.constant 0 : index
    %c0_44 = arith.constant 0 : index
    %92 = vector.load %arg11[%c0_43, %c0_44] : memref<64x4xf32, #tpu.memory_space<vmem>>, vector<64x4xf32>
    tpu.vector_store %arg11[%c0_43, %c0_44], %91 {strides = array<i32>} : memref<64x4xf32, #tpu.memory_space<vmem>>, vector<64x4xf32>,
    return
  }
  func.func @transform_0(%arg0: i32) -> (i32, i32) {
    %c0_i32 = arith.constant 0 : i32
    %c0_i32_0 = arith.constant 0 : i32
    %c0_i32_1 = arith.constant 0 : i32
    return %c0_i32, %c0_i32_0 : i32, i32
  }
  func.func @transform_1(%arg0: i32) -> (i32, i32) {
    %c0_i32 = arith.constant 0 : i32
    %c0_i32_0 = arith.constant 0 : i32
    %c0_i32_1 = arith.constant 0 : i32
    return %c0_i32, %c0_i32_0 : i32, i32
  }
  func.func @transform_2(%arg0: i32) -> (i32, i32) {
    %c0_i32 = arith.constant 0 : i32
    %c0_i32_0 = arith.constant 0 : i32
    %c0_i32_1 = arith.constant 0 : i32
    return %c0_i32, %c0_i32_0 : i32, i32
  }
  func.func @transform_3(%arg0: i32) -> (i32, i32) {
    %c0_i32 = arith.constant 0 : i32
    %c0_i32_0 = arith.constant 0 : i32
    %c0_i32_1 = arith.constant 0 : i32
    return %c0_i32, %c0_i32_0 : i32, i32
  }
  func.func @transform_4(%arg0: i32) -> (i32, i32) {
    %c0_i32 = arith.constant 0 : i32
    %c0_i32_0 = arith.constant 0 : i32
    %c0_i32_1 = arith.constant 0 : i32
    return %c0_i32, %c0_i32_0 : i32, i32
  }
  func.func @transform_5(%arg0: i32) -> (i32, i32) {
    %c0_i32 = arith.constant 0 : i32
    %c0_i32_0 = arith.constant 0 : i32
    %c0_i32_1 = arith.constant 0 : i32
    return %c0_i32, %c0_i32_0 : i32, i32
  }
  func.func @transform_6(%arg0: i32) -> (i32, i32) {
    %c0_i32 = arith.constant 0 : i32
    %c0_i32_0 = arith.constant 0 : i32
    %c0_i32_1 = arith.constant 0 : i32
    return %c0_i32, %c0_i32_0 : i32, i32
  }
  func.func @transform_7(%arg0: i32) -> (i32, i32) {
    %c0_i32 = arith.constant 0 : i32
    %c0_i32_0 = arith.constant 0 : i32
    %c0_i32_1 = arith.constant 0 : i32
    return %c0_i32, %c0_i32_0 : i32, i32
  }
  func.func @transform_8(%arg0: i32) -> (i32, i32) {
    %c0_i32 = arith.constant 0 : i32
    %c0_i32_0 = arith.constant 0 : i32
    %c0_i32_1 = arith.constant 0 : i32
    return %c0_i32, %c0_i32_0 : i32, i32
  }
  func.func @transform_9(%arg0: i32) -> (i32, i32) {
    %c0_i32 = arith.constant 0 : i32
    %c0_i32_0 = arith.constant 0 : i32
    %c0_i32_1 = arith.constant 0 : i32
    return %c0_i32, %c0_i32_0 : i32, i32
  }
  func.func @transform_10(%arg0: i32) -> (i32, i32) {
    %c0_i32 = arith.constant 0 : i32
    %c0_i32_0 = arith.constant 0 : i32
    %c0_i32_1 = arith.constant 0 : i32
    return %c0_i32, %c0_i32_0 : i32, i32
  }
}

module attributes {stable_mosaic.version = 11 : i64} {
  func.func @_ae_decoder_kernel(%arg0: i32, %arg1: memref<64x8xf32, #tpu.memory_space<vmem>>, %arg2: memref<8x16xf32, #tpu.memory_space<vmem>>, %arg3: memref<1x16xf32, #tpu.memory_space<vmem>>, %arg4: memref<16x16xf32, #tpu.memory_space<vmem>>, %arg5: memref<1x16xf32, #tpu.memory_space<vmem>>, %arg6: memref<16x32xf32, #tpu.memory_space<vmem>>, %arg7: memref<1x32xf32, #tpu.memory_space<vmem>>, %arg8: memref<32x32xf32, #tpu.memory_space<vmem>>, %arg9: memref<1x32xf32, #tpu.memory_space<vmem>>, %arg10: memref<64x32xf32, #tpu.memory_space<vmem>>) attributes {dimension_semantics = [#tpu.dimension_semantics<arbitrary>], iteration_bounds = array<i64: 1>, scalar_prefetch = 0 : i64, scratch_operands = 0 : i64, tpu.core_type = #tpu.core_type<tc>, window_params = [{pipeline_mode = #tpu.pipeline_mode<synchronous>, transform_indices = @transform_0, window_bounds = array<i64: 64, 8>}, {pipeline_mode = #tpu.pipeline_mode<synchronous>, transform_indices = @transform_1, window_bounds = array<i64: 8, 16>}, {pipeline_mode = #tpu.pipeline_mode<synchronous>, transform_indices = @transform_2, window_bounds = array<i64: 1, 16>}, {pipeline_mode = #tpu.pipeline_mode<synchronous>, transform_indices = @transform_3, window_bounds = array<i64: 16, 16>}, {pipeline_mode = #tpu.pipeline_mode<synchronous>, transform_indices = @transform_4, window_bounds = array<i64: 1, 16>}, {pipeline_mode = #tpu.pipeline_mode<synchronous>, transform_indices = @transform_5, window_bounds = array<i64: 16, 32>}, {pipeline_mode = #tpu.pipeline_mode<synchronous>, transform_indices = @transform_6, window_bounds = array<i64: 1, 32>}, {pipeline_mode = #tpu.pipeline_mode<synchronous>, transform_indices = @transform_7, window_bounds = array<i64: 32, 32>}, {pipeline_mode = #tpu.pipeline_mode<synchronous>, transform_indices = @transform_8, window_bounds = array<i64: 1, 32>}, {pipeline_mode = #tpu.pipeline_mode<synchronous>, transform_indices = @transform_9, window_bounds = array<i64: 64, 32>}]} {
    %c0 = arith.constant 0 : index
    %c0_0 = arith.constant 0 : index
    %0 = vector.load %arg1[%c0, %c0_0] : memref<64x8xf32, #tpu.memory_space<vmem>>, vector<64x8xf32>
    %c0_1 = arith.constant 0 : index
    %c0_2 = arith.constant 0 : index
    %1 = vector.load %arg2[%c0_1, %c0_2] : memref<8x16xf32, #tpu.memory_space<vmem>>, vector<8x16xf32>
    %cst = arith.constant dense<0.000000e+00> : vector<64x16xf32>
    %2 = tpu.matmul %0, %1, %cst {dimension_numbers = #tpu.dot_dimension_numbers<[1], [0], [0], [1], [0, 0, 1, 1], [], []>} : vector<64x8xf32>, vector<8x16xf32>, vector<64x16xf32> -> vector<64x16xf32>
    %c0_3 = arith.constant 0 : index
    %c0_4 = arith.constant 0 : index
    %3 = vector.load %arg3[%c0_3, %c0_4] : memref<1x16xf32, #tpu.memory_space<vmem>>, vector<1x16xf32>
    %4 = vector.broadcast %3 : vector<1x16xf32> to vector<64x16xf32>
    %5 = arith.addf %2, %4 : vector<64x16xf32>
    %cst_5 = arith.constant 0.000000e+00 : f32
    %6 = vector.broadcast %cst_5 : f32 to vector<64x16xf32>
    %7 = arith.cmpf oge, %5, %6 : vector<64x16xf32>
    %cst_6 = arith.constant 2.000000e-01 : f32
    %8 = vector.broadcast %cst_6 : f32 to vector<64x16xf32>
    %9 = arith.mulf %8, %5 : vector<64x16xf32>
    %10 = arith.select %7, %5, %9 : vector<64x16xi1>, vector<64x16xf32>
    %c0_7 = arith.constant 0 : index
    %c0_8 = arith.constant 0 : index
    %11 = vector.load %arg4[%c0_7, %c0_8] : memref<16x16xf32, #tpu.memory_space<vmem>>, vector<16x16xf32>
    %cst_9 = arith.constant dense<0.000000e+00> : vector<64x16xf32>
    %12 = tpu.matmul %10, %11, %cst_9 {dimension_numbers = #tpu.dot_dimension_numbers<[1], [0], [0], [1], [0, 0, 1, 1], [], []>} : vector<64x16xf32>, vector<16x16xf32>, vector<64x16xf32> -> vector<64x16xf32>
    %c0_10 = arith.constant 0 : index
    %c0_11 = arith.constant 0 : index
    %13 = vector.load %arg5[%c0_10, %c0_11] : memref<1x16xf32, #tpu.memory_space<vmem>>, vector<1x16xf32>
    %14 = vector.broadcast %13 : vector<1x16xf32> to vector<64x16xf32>
    %15 = arith.addf %12, %14 : vector<64x16xf32>
    %cst_12 = arith.constant 0.000000e+00 : f32
    %16 = vector.broadcast %cst_12 : f32 to vector<64x16xf32>
    %17 = arith.cmpf oge, %15, %16 : vector<64x16xf32>
    %cst_13 = arith.constant 2.000000e-01 : f32
    %18 = vector.broadcast %cst_13 : f32 to vector<64x16xf32>
    %19 = arith.mulf %18, %15 : vector<64x16xf32>
    %20 = arith.select %17, %15, %19 : vector<64x16xi1>, vector<64x16xf32>
    %c0_14 = arith.constant 0 : index
    %c0_15 = arith.constant 0 : index
    %21 = vector.load %arg6[%c0_14, %c0_15] : memref<16x32xf32, #tpu.memory_space<vmem>>, vector<16x32xf32>
    %cst_16 = arith.constant dense<0.000000e+00> : vector<64x32xf32>
    %22 = tpu.matmul %20, %21, %cst_16 {dimension_numbers = #tpu.dot_dimension_numbers<[1], [0], [0], [1], [0, 0, 1, 1], [], []>} : vector<64x16xf32>, vector<16x32xf32>, vector<64x32xf32> -> vector<64x32xf32>
    %c0_17 = arith.constant 0 : index
    %c0_18 = arith.constant 0 : index
    %23 = vector.load %arg7[%c0_17, %c0_18] : memref<1x32xf32, #tpu.memory_space<vmem>>, vector<1x32xf32>
    %24 = vector.broadcast %23 : vector<1x32xf32> to vector<64x32xf32>
    %25 = arith.addf %22, %24 : vector<64x32xf32>
    %cst_19 = arith.constant 0.000000e+00 : f32
    %26 = vector.broadcast %cst_19 : f32 to vector<64x32xf32>
    %27 = arith.cmpf oge, %25, %26 : vector<64x32xf32>
    %cst_20 = arith.constant 2.000000e-01 : f32
    %28 = vector.broadcast %cst_20 : f32 to vector<64x32xf32>
    %29 = arith.mulf %28, %25 : vector<64x32xf32>
    %30 = arith.select %27, %25, %29 : vector<64x32xi1>, vector<64x32xf32>
    %c0_21 = arith.constant 0 : index
    %c0_22 = arith.constant 0 : index
    %31 = vector.load %arg8[%c0_21, %c0_22] : memref<32x32xf32, #tpu.memory_space<vmem>>, vector<32x32xf32>
    %cst_23 = arith.constant dense<0.000000e+00> : vector<64x32xf32>
    %32 = tpu.matmul %30, %31, %cst_23 {dimension_numbers = #tpu.dot_dimension_numbers<[1], [0], [0], [1], [0, 0, 1, 1], [], []>} : vector<64x32xf32>, vector<32x32xf32>, vector<64x32xf32> -> vector<64x32xf32>
    %c0_24 = arith.constant 0 : index
    %c0_25 = arith.constant 0 : index
    %33 = vector.load %arg9[%c0_24, %c0_25] : memref<1x32xf32, #tpu.memory_space<vmem>>, vector<1x32xf32>
    %34 = vector.broadcast %33 : vector<1x32xf32> to vector<64x32xf32>
    %35 = arith.addf %32, %34 : vector<64x32xf32>
    %c0_26 = arith.constant 0 : index
    %c0_27 = arith.constant 0 : index
    %36 = vector.load %arg10[%c0_26, %c0_27] : memref<64x32xf32, #tpu.memory_space<vmem>>, vector<64x32xf32>
    tpu.vector_store %arg10[%c0_26, %c0_27], %35 {strides = array<i32>} : memref<64x32xf32, #tpu.memory_space<vmem>>, vector<64x32xf32>,
    return
  }
  func.func @transform_0(%arg0: i32) -> (i32, i32) {
    %c0_i32 = arith.constant 0 : i32
    %c0_i32_0 = arith.constant 0 : i32
    %c0_i32_1 = arith.constant 0 : i32
    return %c0_i32, %c0_i32_0 : i32, i32
  }
  func.func @transform_1(%arg0: i32) -> (i32, i32) {
    %c0_i32 = arith.constant 0 : i32
    %c0_i32_0 = arith.constant 0 : i32
    %c0_i32_1 = arith.constant 0 : i32
    return %c0_i32, %c0_i32_0 : i32, i32
  }
  func.func @transform_2(%arg0: i32) -> (i32, i32) {
    %c0_i32 = arith.constant 0 : i32
    %c0_i32_0 = arith.constant 0 : i32
    %c0_i32_1 = arith.constant 0 : i32
    return %c0_i32, %c0_i32_0 : i32, i32
  }
  func.func @transform_3(%arg0: i32) -> (i32, i32) {
    %c0_i32 = arith.constant 0 : i32
    %c0_i32_0 = arith.constant 0 : i32
    %c0_i32_1 = arith.constant 0 : i32
    return %c0_i32, %c0_i32_0 : i32, i32
  }
  func.func @transform_4(%arg0: i32) -> (i32, i32) {
    %c0_i32 = arith.constant 0 : i32
    %c0_i32_0 = arith.constant 0 : i32
    %c0_i32_1 = arith.constant 0 : i32
    return %c0_i32, %c0_i32_0 : i32, i32
  }
  func.func @transform_5(%arg0: i32) -> (i32, i32) {
    %c0_i32 = arith.constant 0 : i32
    %c0_i32_0 = arith.constant 0 : i32
    %c0_i32_1 = arith.constant 0 : i32
    return %c0_i32, %c0_i32_0 : i32, i32
  }
  func.func @transform_6(%arg0: i32) -> (i32, i32) {
    %c0_i32 = arith.constant 0 : i32
    %c0_i32_0 = arith.constant 0 : i32
    %c0_i32_1 = arith.constant 0 : i32
    return %c0_i32, %c0_i32_0 : i32, i32
  }
  func.func @transform_7(%arg0: i32) -> (i32, i32) {
    %c0_i32 = arith.constant 0 : i32
    %c0_i32_0 = arith.constant 0 : i32
    %c0_i32_1 = arith.constant 0 : i32
    return %c0_i32, %c0_i32_0 : i32, i32
  }
  func.func @transform_8(%arg0: i32) -> (i32, i32) {
    %c0_i32 = arith.constant 0 : i32
    %c0_i32_0 = arith.constant 0 : i32
    %c0_i32_1 = arith.constant 0 : i32
    return %c0_i32, %c0_i32_0 : i32, i32
  }
  func.func @transform_9(%arg0: i32) -> (i32, i32) {
    %c0_i32 = arith.constant 0 : i32
    %c0_i32_0 = arith.constant 0 : i32
    %c0_i32_1 = arith.constant 0 : i32
    return %c0_i32, %c0_i32_0 : i32, i32
  }
}

module attributes {stable_mosaic.version = 11 : i64} {
  func.func @_igae_decoder_kernel(%arg0: i32, %arg1: memref<64x8xf32, #tpu.memory_space<vmem>>, %arg2: memref<64x64xf32, #tpu.memory_space<vmem>>, %arg3: memref<64x64xf32, #tpu.memory_space<vmem>>, %arg4: memref<8x16xf32, #tpu.memory_space<vmem>>, %arg5: memref<16x32xf32, #tpu.memory_space<vmem>>, %arg6: memref<32x32xf32, #tpu.memory_space<vmem>>, %arg7: memref<64x32xf32, #tpu.memory_space<vmem>>, %arg8: memref<64x64xf32, #tpu.memory_space<vmem>>, %arg9: memref<64x64xf32, #tpu.memory_space<vmem>>, %arg10: memref<64x16xf32, #tpu.memory_space<vmem>>, %arg11: memref<64x32xf32, #tpu.memory_space<vmem>>, %arg12: memref<64x16xf32, #tpu.memory_space<vmem>>, %arg13: memref<64x32xf32, #tpu.memory_space<vmem>>, %arg14: memref<64x32xf32, #tpu.memory_space<vmem>>) attributes {dimension_semantics = [#tpu.dimension_semantics<arbitrary>], iteration_bounds = array<i64: 1>, scalar_prefetch = 0 : i64, scratch_operands = 0 : i64, tpu.core_type = #tpu.core_type<tc>, window_params = [{pipeline_mode = #tpu.pipeline_mode<synchronous>, transform_indices = @transform_0, window_bounds = array<i64: 64, 8>}, {pipeline_mode = #tpu.pipeline_mode<synchronous>, transform_indices = @transform_1, window_bounds = array<i64: 64, 64>}, {pipeline_mode = #tpu.pipeline_mode<synchronous>, transform_indices = @transform_2, window_bounds = array<i64: 64, 64>}, {pipeline_mode = #tpu.pipeline_mode<synchronous>, transform_indices = @transform_3, window_bounds = array<i64: 8, 16>}, {pipeline_mode = #tpu.pipeline_mode<synchronous>, transform_indices = @transform_4, window_bounds = array<i64: 16, 32>}, {pipeline_mode = #tpu.pipeline_mode<synchronous>, transform_indices = @transform_5, window_bounds = array<i64: 32, 32>}, {pipeline_mode = #tpu.pipeline_mode<synchronous>, transform_indices = @transform_6, window_bounds = array<i64: 64, 32>}, {pipeline_mode = #tpu.pipeline_mode<synchronous>, transform_indices = @transform_7, window_bounds = array<i64: 64, 64>}, {pipeline_mode = #tpu.pipeline_mode<synchronous>, transform_indices = @transform_8, window_bounds = array<i64: 64, 64>}, {pipeline_mode = #tpu.pipeline_mode<synchronous>, transform_indices = @transform_9, window_bounds = array<i64: 64, 16>}, {pipeline_mode = #tpu.pipeline_mode<synchronous>, transform_indices = @transform_10, window_bounds = array<i64: 64, 32>}, {pipeline_mode = #tpu.pipeline_mode<synchronous>, transform_indices = @transform_11, window_bounds = array<i64: 64, 16>}, {pipeline_mode = #tpu.pipeline_mode<synchronous>, transform_indices = @transform_12, window_bounds = array<i64: 64, 32>}, {pipeline_mode = #tpu.pipeline_mode<synchronous>, transform_indices = @transform_13, window_bounds = array<i64: 64, 32>}]} {
    %c0 = arith.constant 0 : index
    %c0_0 = arith.constant 0 : index
    %0 = vector.load %arg2[%c0, %c0_0] : memref<64x64xf32, #tpu.memory_space<vmem>>, vector<64x64xf32>
    %c0_1 = arith.constant 0 : index
    %c0_2 = arith.constant 0 : index
    %1 = vector.load %arg1[%c0_1, %c0_2] : memref<64x8xf32, #tpu.memory_space<vmem>>, vector<64x8xf32>
    %c0_3 = arith.constant 0 : index
    %c0_4 = arith.constant 0 : index
    %2 = vector.load %arg4[%c0_3, %c0_4] : memref<8x16xf32, #tpu.memory_space<vmem>>, vector<8x16xf32>
    %cst = arith.constant dense<0.000000e+00> : vector<64x16xf32>
    %3 = tpu.matmul %1, %2, %cst {dimension_numbers = #tpu.dot_dimension_numbers<[1], [0], [0], [1], [0, 0, 1, 1], [], []>} : vector<64x8xf32>, vector<8x16xf32>, vector<64x16xf32> -> vector<64x16xf32>
    %4 = math.tanh %3 : vector<64x16xf32>
    %cst_5 = arith.constant dense<0.000000e+00> : vector<64x16xf32>
    %5 = tpu.matmul %0, %4, %cst_5 {dimension_numbers = #tpu.dot_dimension_numbers<[1], [0], [0], [1], [0, 0, 1, 1], [], []>} : vector<64x64xf32>, vector<64x16xf32>, vector<64x16xf32> -> vector<64x16xf32>
    %c0_6 = arith.constant 0 : index
    %c0_7 = arith.constant 0 : index
    %6 = vector.load %arg5[%c0_6, %c0_7] : memref<16x32xf32, #tpu.memory_space<vmem>>, vector<16x32xf32>
    %cst_8 = arith.constant dense<0.000000e+00> : vector<64x32xf32>
    %7 = tpu.matmul %5, %6, %cst_8 {dimension_numbers = #tpu.dot_dimension_numbers<[1], [0], [0], [1], [0, 0, 1, 1], [], []>} : vector<64x16xf32>, vector<16x32xf32>, vector<64x32xf32> -> vector<64x32xf32>
    %8 = math.tanh %7 : vector<64x32xf32>
    %cst_9 = arith.constant dense<0.000000e+00> : vector<64x32xf32>
    %9 = tpu.matmul %0, %8, %cst_9 {dimension_numbers = #tpu.dot_dimension_numbers<[1], [0], [0], [1], [0, 0, 1, 1], [], []>} : vector<64x64xf32>, vector<64x32xf32>, vector<64x32xf32> -> vector<64x32xf32>
    %c0_10 = arith.constant 0 : index
    %c0_11 = arith.constant 0 : index
    %10 = vector.load %arg6[%c0_10, %c0_11] : memref<32x32xf32, #tpu.memory_space<vmem>>, vector<32x32xf32>
    %cst_12 = arith.constant dense<0.000000e+00> : vector<64x32xf32>
    %11 = tpu.matmul %9, %10, %cst_12 {dimension_numbers = #tpu.dot_dimension_numbers<[1], [0], [0], [1], [0, 0, 1, 1], [], []>} : vector<64x32xf32>, vector<32x32xf32>, vector<64x32xf32> -> vector<64x32xf32>
    %12 = math.tanh %11 : vector<64x32xf32>
    %cst_13 = arith.constant dense<0.000000e+00> : vector<64x32xf32>
    %13 = tpu.matmul %0, %12, %cst_13 {dimension_numbers = #tpu.dot_dimension_numbers<[1], [0], [0], [1], [0, 0, 1, 1], [], []>} : vector<64x64xf32>, vector<64x32xf32>, vector<64x32xf32> -> vector<64x32xf32>
    %cst_14 = arith.constant dense<0.000000e+00> : vector<64x64xf32>
    %14 = tpu.matmul %13, %13, %cst_14 {dimension_numbers = #tpu.dot_dimension_numbers<[1], [1], [0], [0], [0, 0, 1, 0], [], []>} : vector<64x32xf32>, vector<64x32xf32>, vector<64x64xf32> -> vector<64x64xf32>
    %15 = arith.negf %14 : vector<64x64xf32>
    %16 = math.exp %15 : vector<64x64xf32>
    %cst_15 = arith.constant 1.000000e+00 : f32
    %17 = vector.broadcast %cst_15 : f32 to vector<64x64xf32>
    %18 = arith.addf %17, %16 : vector<64x64xf32>
    %19 = arith.divf %17, %18 : vector<64x64xf32>
    %c0_16 = arith.constant 0 : index
    %c0_17 = arith.constant 0 : index
    %20 = vector.load %arg7[%c0_16, %c0_17] : memref<64x32xf32, #tpu.memory_space<vmem>>, vector<64x32xf32>
    tpu.vector_store %arg7[%c0_16, %c0_17], %13 {strides = array<i32>} : memref<64x32xf32, #tpu.memory_space<vmem>>, vector<64x32xf32>,
    %c0_18 = arith.constant 0 : index
    %c0_19 = arith.constant 0 : index
    %21 = vector.load %arg8[%c0_18, %c0_19] : memref<64x64xf32, #tpu.memory_space<vmem>>, vector<64x64xf32>
    tpu.vector_store %arg8[%c0_18, %c0_19], %19 {strides = array<i32>} : memref<64x64xf32, #tpu.memory_space<vmem>>, vector<64x64xf32>,
    %c0_20 = arith.constant 0 : index
    %c0_21 = arith.constant 0 : index
    %22 = vector.load %arg3[%c0_20, %c0_21] : memref<64x64xf32, #tpu.memory_space<vmem>>, vector<64x64xf32>
    %23 = arith.addf %22, %19 : vector<64x64xf32>
    %c0_22 = arith.constant 0 : index
    %c0_23 = arith.constant 0 : index
    %24 = vector.load %arg9[%c0_22, %c0_23] : memref<64x64xf32, #tpu.memory_space<vmem>>, vector<64x64xf32>
    tpu.vector_store %arg9[%c0_22, %c0_23], %23 {strides = array<i32>} : memref<64x64xf32, #tpu.memory_space<vmem>>, vector<64x64xf32>,
    %c0_24 = arith.constant 0 : index
    %c0_25 = arith.constant 0 : index
    %25 = vector.load %arg10[%c0_24, %c0_25] : memref<64x16xf32, #tpu.memory_space<vmem>>, vector<64x16xf32>
    tpu.vector_store %arg10[%c0_24, %c0_25], %5 {strides = array<i32>} : memref<64x16xf32, #tpu.memory_space<vmem>>, vector<64x16xf32>,
    %c0_26 = arith.constant 0 : index
    %c0_27 = arith.constant 0 : index
    %26 = vector.load %arg11[%c0_26, %c0_27] : memref<64x32xf32, #tpu.memory_space<vmem>>, vector<64x32xf32>
    tpu.vector_store %arg11[%c0_26, %c0_27], %9 {strides = array<i32>} : memref<64x32xf32, #tpu.memory_space<vmem>>, vector<64x32xf32>,
    %c0_28 = arith.constant 0 : index
    %c0_29 = arith.constant 0 : index
    %27 = vector.load %arg12[%c0_28, %c0_29] : memref<64x16xf32, #tpu.memory_space<vmem>>, vector<64x16xf32>
    tpu.vector_store %arg12[%c0_28, %c0_29], %4 {strides = array<i32>} : memref<64x16xf32, #tpu.memory_space<vmem>>, vector<64x16xf32>,
    %c0_30 = arith.constant 0 : index
    %c0_31 = arith.constant 0 : index
    %28 = vector.load %arg13[%c0_30, %c0_31] : memref<64x32xf32, #tpu.memory_space<vmem>>, vector<64x32xf32>
    tpu.vector_store %arg13[%c0_30, %c0_31], %8 {strides = array<i32>} : memref<64x32xf32, #tpu.memory_space<vmem>>, vector<64x32xf32>,
    %c0_32 = arith.constant 0 : index
    %c0_33 = arith.constant 0 : index
    %29 = vector.load %arg14[%c0_32, %c0_33] : memref<64x32xf32, #tpu.memory_space<vmem>>, vector<64x32xf32>
    tpu.vector_store %arg14[%c0_32, %c0_33], %12 {strides = array<i32>} : memref<64x32xf32, #tpu.memory_space<vmem>>, vector<64x32xf32>,
    return
  }
  func.func @transform_0(%arg0: i32) -> (i32, i32) {
    %c0_i32 = arith.constant 0 : i32
    %c0_i32_0 = arith.constant 0 : i32
    %c0_i32_1 = arith.constant 0 : i32
    return %c0_i32, %c0_i32_0 : i32, i32
  }
  func.func @transform_1(%arg0: i32) -> (i32, i32) {
    %c0_i32 = arith.constant 0 : i32
    %c0_i32_0 = arith.constant 0 : i32
    %c0_i32_1 = arith.constant 0 : i32
    return %c0_i32, %c0_i32_0 : i32, i32
  }
  func.func @transform_2(%arg0: i32) -> (i32, i32) {
    %c0_i32 = arith.constant 0 : i32
    %c0_i32_0 = arith.constant 0 : i32
    %c0_i32_1 = arith.constant 0 : i32
    return %c0_i32, %c0_i32_0 : i32, i32
  }
  func.func @transform_3(%arg0: i32) -> (i32, i32) {
    %c0_i32 = arith.constant 0 : i32
    %c0_i32_0 = arith.constant 0 : i32
    %c0_i32_1 = arith.constant 0 : i32
    return %c0_i32, %c0_i32_0 : i32, i32
  }
  func.func @transform_4(%arg0: i32) -> (i32, i32) {
    %c0_i32 = arith.constant 0 : i32
    %c0_i32_0 = arith.constant 0 : i32
    %c0_i32_1 = arith.constant 0 : i32
    return %c0_i32, %c0_i32_0 : i32, i32
  }
  func.func @transform_5(%arg0: i32) -> (i32, i32) {
    %c0_i32 = arith.constant 0 : i32
    %c0_i32_0 = arith.constant 0 : i32
    %c0_i32_1 = arith.constant 0 : i32
    return %c0_i32, %c0_i32_0 : i32, i32
  }
  func.func @transform_6(%arg0: i32) -> (i32, i32) {
    %c0_i32 = arith.constant 0 : i32
    %c0_i32_0 = arith.constant 0 : i32
    %c0_i32_1 = arith.constant 0 : i32
    return %c0_i32, %c0_i32_0 : i32, i32
  }
  func.func @transform_7(%arg0: i32) -> (i32, i32) {
    %c0_i32 = arith.constant 0 : i32
    %c0_i32_0 = arith.constant 0 : i32
    %c0_i32_1 = arith.constant 0 : i32
    return %c0_i32, %c0_i32_0 : i32, i32
  }
  func.func @transform_8(%arg0: i32) -> (i32, i32) {
    %c0_i32 = arith.constant 0 : i32
    %c0_i32_0 = arith.constant 0 : i32
    %c0_i32_1 = arith.constant 0 : i32
    return %c0_i32, %c0_i32_0 : i32, i32
  }
  func.func @transform_9(%arg0: i32) -> (i32, i32) {
    %c0_i32 = arith.constant 0 : i32
    %c0_i32_0 = arith.constant 0 : i32
    %c0_i32_1 = arith.constant 0 : i32
    return %c0_i32, %c0_i32_0 : i32, i32
  }
  func.func @transform_10(%arg0: i32) -> (i32, i32) {
    %c0_i32 = arith.constant 0 : i32
    %c0_i32_0 = arith.constant 0 : i32
    %c0_i32_1 = arith.constant 0 : i32
    return %c0_i32, %c0_i32_0 : i32, i32
  }
  func.func @transform_11(%arg0: i32) -> (i32, i32) {
    %c0_i32 = arith.constant 0 : i32
    %c0_i32_0 = arith.constant 0 : i32
    %c0_i32_1 = arith.constant 0 : i32
    return %c0_i32, %c0_i32_0 : i32, i32
  }
  func.func @transform_12(%arg0: i32) -> (i32, i32) {
    %c0_i32 = arith.constant 0 : i32
    %c0_i32_0 = arith.constant 0 : i32
    %c0_i32_1 = arith.constant 0 : i32
    return %c0_i32, %c0_i32_0 : i32, i32
  }
  func.func @transform_13(%arg0: i32) -> (i32, i32) {
    %c0_i32 = arith.constant 0 : i32
    %c0_i32_0 = arith.constant 0 : i32
    %c0_i32_1 = arith.constant 0 : i32
    return %c0_i32, %c0_i32_0 : i32, i32
  }
}

</mosaic_0001>

<llo_original>
// kernel: dcrn_forward.8
$region0: #{dcrn_forward.8}
  #allocation0 [shape = 'u32[]', space=smem, size = 0x4, offset = 0x4, fixed_abs, tag = 'smem constant byte address 0x4 - core index']
  #allocation1 [shape = 'u32[72,128]{1,0:T(1,128)}', space=vmem, size = 0x9000, scoped, tag = 'internal scratch']
  %s0 = inlined_call_operand.vmem [shape: f32[64,8], index: 0, kind: input, shape index: {}]
  %s1 = inlined_call_operand.vmem [shape: f32[8,16], index: 1, kind: input, shape index: {}]
  %s2 = inlined_call_operand.vmem [shape: f32[1,16], index: 2, kind: input, shape index: {}]
  %s3 = inlined_call_operand.vmem [shape: f32[16,16], index: 3, kind: input, shape index: {}]
  %s4 = inlined_call_operand.vmem [shape: f32[1,16], index: 4, kind: input, shape index: {}]
  %s5 = inlined_call_operand.vmem [shape: f32[16,32], index: 5, kind: input, shape index: {}]
  %s6 = inlined_call_operand.vmem [shape: f32[1,32], index: 6, kind: input, shape index: {}]
  %s7 = inlined_call_operand.vmem [shape: f32[32,32], index: 7, kind: input, shape index: {}]
  %s8 = inlined_call_operand.vmem [shape: f32[1,32], index: 8, kind: input, shape index: {}]
  %s9 = inlined_call_operand.vmem [shape: f32[64,32], index: 9, kind: output, shape index: {}]
  %s10 = sld [smem:[#allocation0]]
  $region46: #{dcrn_forward.8} parent=0
    _
  %s12 = ssub.s32 1, %s10
  %s13 = scalar_select 0, %s12, %s10
  // Predicated region
  $region2: #{dcrn_forward.8} parent=0 // pred_check
    _
  $region3: #{dcrn_forward.8} parent=0 // pred_check_branch
    %15 = sbr.rel (0) target = $region5
  $region4: #{dcrn_forward.8} parent=0 // pred_region
    _
  $region5: #{dcrn_forward.8} parent=0 // pred_fallthru
    _
  // Predicated region
  $region6: #{dcrn_forward.8} parent=0 // pred_check
    _
  $region7: #{dcrn_forward.8} parent=0 // pred_check_branch
    %17 = sbr.rel (0) target = $region9
  $region8: #{dcrn_forward.8} parent=0 // pred_region
    _
  $region9: #{dcrn_forward.8} parent=0 // pred_fallthru
    _
  // Predicated region
  $region10: #{dcrn_forward.8} parent=0 // pred_check
    _
  $region11: #{dcrn_forward.8} parent=0 // pred_check_branch
    %19 = sbr.rel (0) target = $region13
  $region12: #{dcrn_forward.8} parent=0 // pred_region
    _
  $region13: #{dcrn_forward.8} parent=0 // pred_fallthru
    _
  // Predicated region
  $region14: #{dcrn_forward.8} parent=0 // pred_check
    _
  $region15: #{dcrn_forward.8} parent=0 // pred_check_branch
    %21 = sbr.rel (0) target = $region17
  $region16: #{dcrn_forward.8} parent=0 // pred_region
    _
  $region17: #{dcrn_forward.8} parent=0 // pred_fallthru
    _
  // Predicated region
  $region18: #{dcrn_forward.8} parent=0 // pred_check
    _
  $region19: #{dcrn_forward.8} parent=0 // pred_check_branch
    %23 = sbr.rel (0) target = $region21
  $region20: #{dcrn_forward.8} parent=0 // pred_region
    _
  $region21: #{dcrn_forward.8} parent=0 // pred_fallthru
    _
  // Predicated region
  $region22: #{dcrn_forward.8} parent=0 // pred_check
    _
  $region23: #{dcrn_forward.8} parent=0 // pred_check_branch
    %25 = sbr.rel (0) target = $region25
  $region24: #{dcrn_forward.8} parent=0 // pred_region
    _
  $region25: #{dcrn_forward.8} parent=0 // pred_fallthru
    _
  // Predicated region
  $region26: #{dcrn_forward.8} parent=0 // pred_check
    _
  $region27: #{dcrn_forward.8} parent=0 // pred_check_branch
    %27 = sbr.rel (0) target = $region29
  $region28: #{dcrn_forward.8} parent=0 // pred_region
    _
  $region29: #{dcrn_forward.8} parent=0 // pred_fallthru
    _
  // Predicated region
  $region30: #{dcrn_forward.8} parent=0 // pred_check
    _
  $region31: #{dcrn_forward.8} parent=0 // pred_check_branch
    %29 = sbr.rel (0) target = $region33
  $region32: #{dcrn_forward.8} parent=0 // pred_region
    _
  $region33: #{dcrn_forward.8} parent=0 // pred_fallthru
    _
  // Predicated region
  $region34: #{dcrn_forward.8} parent=0 // pred_check
    _
  $region35: #{dcrn_forward.8} parent=0 // pred_check_branch
    %31 = sbr.rel (0) target = $region37
  $region36: #{dcrn_forward.8} parent=0 // pred_region
    _
  $region37: #{dcrn_forward.8} parent=0 // pred_fallthru
    _
  %v32 = vld [vmem:[%s0] sm:$0xff]
  %v33 = vld [vmem:[%s0 + $0x8] sm:$0xff]
  %v34 = vld [vmem:[%s0 + $0x10] sm:$0xff]
  %v35 = vld [vmem:[%s0 + $0x18] sm:$0xff]
  %v36 = vld [vmem:[%s0 + $0x20] sm:$0xff]
  %v37 = vld [vmem:[%s0 + $0x28] sm:$0xff]
  %v38 = vld [vmem:[%s0 + $0x30] sm:$0xff]
  %v39 = vld [vmem:[%s0 + $0x38] sm:$0xff]
  %v40 = vld [vmem:[%s1] sm:$0xff]
  %v41 = vld [vmem:[%s2] sm:$0x1]
  %v43 = vperm.slane %v41, 0
  %vm45 = vcmask 64512
  %v47 = vsel %vm45, %v32, 0
  %v50 = vsel %vm45, %v33, 0
  %v53 = vsel %vm45, %v34, 0
  %v56 = vsel %vm45, %v35, 0
  %v59 = vsel %vm45, %v36, 0
  %v62 = vsel %vm45, %v37, 0
  %v65 = vsel %vm45, %v38, 0
  %v68 = vsel %vm45, %v39, 0
  %70 = vmatpush.msra.mxu0 0.0
  %71 = vmatpush.msra.mxu0 0.0
  %72 = vmatpush.msra.mxu0 0.0
  %73 = vmatpush.msra.mxu0 0.0
  %74 = vmatpush.msra.mxu0 0.0
  %75 = vmatpush.msra.mxu0 0.0
  %76 = vmatpush.msra.mxu0 0.0
  %77 = vmatpush.msra.mxu0 0.0
  %78 = vmatpush.msra.mxu0 0.0
  %79 = vmatpush.msra.mxu0 0.0
  %80 = vmatpush.msra.mxu0 0.0
  %81 = vmatpush.msra.mxu0 0.0
  %82 = vmatpush.msra.mxu0 0.0
  %83 = vmatpush.msra.mxu0 0.0
  %84 = vmatpush.msra.mxu0 0.0
  %85 = vmatpush.msra.mxu0 %v40
  %86 = vmatmul.f32.gmra.mxu0 %v47
  %v87 = vpop.f32.mrf.mxu0
  %v88 = vadd.f32 %v43, %v87
  %89 = vmatmul.f32.gmra.mxu0 %v50
  %v90 = vpop.f32.mrf.mxu0
  %v91 = vadd.f32 %v43, %v90
  %92 = vmatmul.f32.gmra.mxu0 %v53
  %v93 = vpop.f32.mrf.mxu0
  %v94 = vadd.f32 %v43, %v93
  %95 = vmatmul.f32.gmra.mxu0 %v56
  %v96 = vpop.f32.mrf.mxu0
  %v97 = vadd.f32 %v43, %v96
  %98 = vmatmul.f32.gmra.mxu0 %v59
  %v99 = vpop.f32.mrf.mxu0
  %v100 = vadd.f32 %v43, %v99
  %101 = vmatmul.f32.gmra.mxu0 %v62
  %v102 = vpop.f32.mrf.mxu0
  %v103 = vadd.f32 %v43, %v102
  %104 = vmatmul.f32.gmra.mxu0 %v65
  %v105 = vpop.f32.mrf.mxu0
  %v106 = vadd.f32 %v43, %v105
  %107 = vmatmul.f32.gmra.mxu0 %v68
  %v108 = vpop.f32.mrf.mxu0
  %v109 = vadd.f32 %v43, %v108
  %110 = vdwg.mxu0
  %vm111 = vcmp.ge.f32.partialorder %v88, 0.0
  %vm112 = vcmp.ge.f32.partialorder %v91, 0.0
  %vm113 = vcmp.ge.f32.partialorder %v94, 0.0
  %vm114 = vcmp.ge.f32.partialorder %v97, 0.0
  %vm115 = vcmp.ge.f32.partialorder %v100, 0.0
  %vm116 = vcmp.ge.f32.partialorder %v103, 0.0
  %vm117 = vcmp.ge.f32.partialorder %v106, 0.0
  %vm118 = vcmp.ge.f32.partialorder %v109, 0.0
  %v119 = vmul.f32 %v88, 0.2
  %v120 = vmul.f32 %v91, 0.2
  %v121 = vmul.f32 %v94, 0.2
  %v122 = vmul.f32 %v97, 0.2
  %v123 = vmul.f32 %v100, 0.2
  %v124 = vmul.f32 %v103, 0.2
  %v125 = vmul.f32 %v106, 0.2
  %v126 = vmul.f32 %v109, 0.2
  %v127 = vsel %vm111, %v88, %v119
  %v128 = vsel %vm112, %v91, %v120
  %v129 = vsel %vm113, %v94, %v121
  %v130 = vsel %vm114, %v97, %v122
  %v131 = vsel %vm115, %v100, %v123
  %v132 = vsel %vm116, %v103, %v124
  %v133 = vsel %vm117, %v106, %v125
  %v134 = vsel %vm118, %v109, %v126
  %v135 = vld [vmem:[%s3] sm:$0xff]
  %v136 = vld [vmem:[%s3 + $0x8] sm:$0xff]
  %v137 = vld [vmem:[%s4] sm:$0x1]
  %v139 = vperm.slane %v137, 0
  %vm141 = vcmask 130048
  %v143 = vsel %vm141, %v127, 0
  %v146 = vsel %vm141, %v128, 0
  %v149 = vsel %vm141, %v129, 0
  %v152 = vsel %vm141, %v130, 0
  %v155 = vsel %vm141, %v131, 0
  %v158 = vsel %vm141, %v132, 0
  %v161 = vsel %vm141, %v133, 0
  %v164 = vsel %vm141, %v134, 0
  %166 = vmatpush.msra.mxu0 0.0
  %167 = vmatpush.msra.mxu0 0.0
  %168 = vmatpush.msra.mxu0 0.0
  %169 = vmatpush.msra.mxu0 0.0
  %170 = vmatpush.msra.mxu0 0.0
  %171 = vmatpush.msra.mxu0 0.0
  %172 = vmatpush.msra.mxu0 0.0
  %173 = vmatpush.msra.mxu0 0.0
  %174 = vmatpush.msra.mxu0 0.0
  %175 = vmatpush.msra.mxu0 0.0
  %176 = vmatpush.msra.mxu0 0.0
  %177 = vmatpush.msra.mxu0 0.0
  %178 = vmatpush.msra.mxu0 0.0
  %179 = vmatpush.msra.mxu0 0.0
  %180 = vmatpush.msra.mxu0 %v136
  %181 = vmatpush.msra.mxu0 %v135
  %182 = vmatmul.f32.gmra.mxu0 %v143
  %v183 = vpop.f32.mrf.mxu0
  %v184 = vadd.f32 %v139, %v183
  %185 = vmatmul.f32.gmra.mxu0 %v146
  %v186 = vpop.f32.mrf.mxu0
  %v187 = vadd.f32 %v139, %v186
  %188 = vmatmul.f32.gmra.mxu0 %v149
  %v189 = vpop.f32.mrf.mxu0
  %v190 = vadd.f32 %v139, %v189
  %191 = vmatmul.f32.gmra.mxu0 %v152
  %v192 = vpop.f32.mrf.mxu0
  %v193 = vadd.f32 %v139, %v192
  %194 = vmatmul.f32.gmra.mxu0 %v155
  %v195 = vpop.f32.mrf.mxu0
  %v196 = vadd.f32 %v139, %v195
  %197 = vmatmul.f32.gmra.mxu0 %v158
  %v198 = vpop.f32.mrf.mxu0
  %v199 = vadd.f32 %v139, %v198
  %200 = vmatmul.f32.gmra.mxu0 %v161
  %v201 = vpop.f32.mrf.mxu0
  %v202 = vadd.f32 %v139, %v201
  %203 = vmatmul.f32.gmra.mxu0 %v164
  %v204 = vpop.f32.mrf.mxu0
  %v205 = vadd.f32 %v139, %v204
  %206 = vdwg.mxu0
  %vm207 = vcmp.ge.f32.partialorder %v184, 0.0
  %vm208 = vcmp.ge.f32.partialorder %v187, 0.0
  %vm209 = vcmp.ge.f32.partialorder %v190, 0.0
  %vm210 = vcmp.ge.f32.partialorder %v193, 0.0
  %vm211 = vcmp.ge.f32.partialorder %v196, 0.0
  %vm212 = vcmp.ge.f32.partialorder %v199, 0.0
  %vm213 = vcmp.ge.f32.partialorder %v202, 0.0
  %vm214 = vcmp.ge.f32.partialorder %v205, 0.0
  %v215 = vmul.f32 %v184, 0.2
  %v216 = vmul.f32 %v187, 0.2
  %v217 = vmul.f32 %v190, 0.2
  %v218 = vmul.f32 %v193, 0.2
  %v219 = vmul.f32 %v196, 0.2
  %v220 = vmul.f32 %v199, 0.2
  %v221 = vmul.f32 %v202, 0.2
  %v222 = vmul.f32 %v205, 0.2
  %v223 = vsel %vm207, %v184, %v215
  %v224 = vsel %vm208, %v187, %v216
  %v225 = vsel %vm209, %v190, %v217
  %v226 = vsel %vm210, %v193, %v218
  %v227 = vsel %vm211, %v196, %v219
  %v228 = vsel %vm212, %v199, %v220
  %v229 = vsel %vm213, %v202, %v221
  %v230 = vsel %vm214, %v205, %v222
  %v231 = vld [vmem:[%s5] sm:$0xff]
  %v232 = vld [vmem:[%s5 + $0x8] sm:$0xff]
  %v233 = vld [vmem:[%s6] sm:$0x1]
  %v235 = vperm.slane %v233, 0
  %v238 = vsel %vm141, %v223, 0
  %v241 = vsel %vm141, %v224, 0
  %v244 = vsel %vm141, %v225, 0
  %v247 = vsel %vm141, %v226, 0
  %v250 = vsel %vm141, %v227, 0
  %v253 = vsel %vm141, %v228, 0
  %v256 = vsel %vm141, %v229, 0
  %v259 = vsel %vm141, %v230, 0
  %261 = vmatpush.msra.mxu0 0.0
  %262 = vmatpush.msra.mxu0 0.0
  %263 = vmatpush.msra.mxu0 0.0
  %264 = vmatpush.msra.mxu0 0.0
  %265 = vmatpush.msra.mxu0 0.0
  %266 = vmatpush.msra.mxu0 0.0
  %267 = vmatpush.msra.mxu0 0.0
  %268 = vmatpush.msra.mxu0 0.0
  %269 = vmatpush.msra.mxu0 0.0
  %270 = vmatpush.msra.mxu0 0.0
  %271 = vmatpush.msra.mxu0 0.0
  %272 = vmatpush.msra.mxu0 0.0
  %273 = vmatpush.msra.mxu0 0.0
  %274 = vmatpush.msra.mxu0 0.0
  %275 = vmatpush.msra.mxu0 %v232
  %276 = vmatpush.msra.mxu0 %v231
  %277 = vmatmul.f32.gmra.mxu0 %v238
  %v278 = vpop.f32.mrf.mxu0
  %v279 = vadd.f32 %v235, %v278
  %280 = vmatmul.f32.gmra.mxu0 %v241
  %v281 = vpop.f32.mrf.mxu0
  %v282 = vadd.f32 %v235, %v281
  %283 = vmatmul.f32.gmra.mxu0 %v244
  %v284 = vpop.f32.mrf.mxu0
  %v285 = vadd.f32 %v235, %v284
  %286 = vmatmul.f32.gmra.mxu0 %v247
  %v287 = vpop.f32.mrf.mxu0
  %v288 = vadd.f32 %v235, %v287
  %289 = vmatmul.f32.gmra.mxu0 %v250
  %v290 = vpop.f32.mrf.mxu0
  %v291 = vadd.f32 %v235, %v290
  %292 = vmatmul.f32.gmra.mxu0 %v253
  %v293 = vpop.f32.mrf.mxu0
  %v294 = vadd.f32 %v235, %v293
  %295 = vmatmul.f32.gmra.mxu0 %v256
  %v296 = vpop.f32.mrf.mxu0
  %v297 = vadd.f32 %v235, %v296
  %298 = vmatmul.f32.gmra.mxu0 %v259
  %v299 = vpop.f32.mrf.mxu0
  %v300 = vadd.f32 %v235, %v299
  %301 = vdwg.mxu0
  %vm302 = vcmp.ge.f32.partialorder %v279, 0.0
  %vm303 = vcmp.ge.f32.partialorder %v282, 0.0
  %vm304 = vcmp.ge.f32.partialorder %v285, 0.0
  %vm305 = vcmp.ge.f32.partialorder %v288, 0.0
  %vm306 = vcmp.ge.f32.partialorder %v291, 0.0
  %vm307 = vcmp.ge.f32.partialorder %v294, 0.0
  %vm308 = vcmp.ge.f32.partialorder %v297, 0.0
  %vm309 = vcmp.ge.f32.partialorder %v300, 0.0
  %v310 = vmul.f32 %v279, 0.2
  %v311 = vmul.f32 %v282, 0.2
  %v312 = vmul.f32 %v285, 0.2
  %v313 = vmul.f32 %v288, 0.2
  %v314 = vmul.f32 %v291, 0.2
  %v315 = vmul.f32 %v294, 0.2
  %v316 = vmul.f32 %v297, 0.2
  %v317 = vmul.f32 %v300, 0.2
  %v318 = vsel %vm302, %v279, %v310
  %v319 = vsel %vm303, %v282, %v311
  %v320 = vsel %vm304, %v285, %v312
  %v321 = vsel %vm305, %v288, %v313
  %v322 = vsel %vm306, %v291, %v314
  %v323 = vsel %vm307, %v294, %v315
  %v324 = vsel %vm308, %v297, %v316
  %v325 = vsel %vm309, %v300, %v317
  %v326 = vld [vmem:[%s7] sm:$0xff]
  %v327 = vld [vmem:[%s7 + $0x8] sm:$0xff]
  %v328 = vld [vmem:[%s7 + $0x10] sm:$0xff]
  %v329 = vld [vmem:[%s7 + $0x18] sm:$0xff]
  %v330 = vld [vmem:[%s8] sm:$0x1]
  %v332 = vperm.slane %v330, 0
  %vm334 = vcmask 261120
  %v336 = vsel %vm334, %v318, 0
  %v339 = vsel %vm334, %v319, 0
  %v342 = vsel %vm334, %v320, 0
  %v345 = vsel %vm334, %v321, 0
  %v348 = vsel %vm334, %v322, 0
  %v351 = vsel %vm334, %v323, 0
  %v354 = vsel %vm334, %v324, 0
  %v357 = vsel %vm334, %v325, 0
  %359 = vmatpush.msra.mxu0 0.0
  %360 = vmatpush.msra.mxu0 0.0
  %361 = vmatpush.msra.mxu0 0.0
  %362 = vmatpush.msra.mxu0 0.0
  %363 = vmatpush.msra.mxu0 0.0
  %364 = vmatpush.msra.mxu0 0.0
  %365 = vmatpush.msra.mxu0 0.0
  %366 = vmatpush.msra.mxu0 0.0
  %367 = vmatpush.msra.mxu0 0.0
  %368 = vmatpush.msra.mxu0 0.0
  %369 = vmatpush.msra.mxu0 0.0
  %370 = vmatpush.msra.mxu0 0.0
  %371 = vmatpush.msra.mxu0 %v329
  %372 = vmatpush.msra.mxu0 %v328
  %373 = vmatpush.msra.mxu0 %v327
  %374 = vmatpush.msra.mxu0 %v326
  %375 = vmatmul.f32.gmra.mxu0 %v336
  %v376 = vpop.f32.mrf.mxu0
  %v377 = vadd.f32 %v332, %v376
  %378 = vmatmul.f32.gmra.mxu0 %v339
  %v379 = vpop.f32.mrf.mxu0
  %v380 = vadd.f32 %v332, %v379
  %381 = vmatmul.f32.gmra.mxu0 %v342
  %v382 = vpop.f32.mrf.mxu0
  %v383 = vadd.f32 %v332, %v382
  %384 = vmatmul.f32.gmra.mxu0 %v345
  %v385 = vpop.f32.mrf.mxu0
  %v386 = vadd.f32 %v332, %v385
  %387 = vmatmul.f32.gmra.mxu0 %v348
  %v388 = vpop.f32.mrf.mxu0
  %v389 = vadd.f32 %v332, %v388
  %390 = vmatmul.f32.gmra.mxu0 %v351
  %v391 = vpop.f32.mrf.mxu0
  %v392 = vadd.f32 %v332, %v391
  %393 = vmatmul.f32.gmra.mxu0 %v354
  %v394 = vpop.f32.mrf.mxu0
  %v395 = vadd.f32 %v332, %v394
  %396 = vmatmul.f32.gmra.mxu0 %v357
  %v397 = vpop.f32.mrf.mxu0
  %v398 = vadd.f32 %v332, %v397
  %399 = vdwg.mxu0
  %400 = vst.msk [vmem:[%s9] sm:$0xff] %vm334, %v377
  %401 = vst.msk [vmem:[%s9 + $0x8] sm:$0xff] %vm334, %v380
  %402 = vst.msk [vmem:[%s9 + $0x10] sm:$0xff] %vm334, %v383
  %403 = vst.msk [vmem:[%s9 + $0x18] sm:$0xff] %vm334, %v386
  %404 = vst.msk [vmem:[%s9 + $0x20] sm:$0xff] %vm334, %v389
  %405 = vst.msk [vmem:[%s9 + $0x28] sm:$0xff] %vm334, %v392
  %406 = vst.msk [vmem:[%s9 + $0x30] sm:$0xff] %vm334, %v395
  %407 = vst.msk [vmem:[%s9 + $0x38] sm:$0xff] %vm334, %v398
  // Predicated region
  $region38: #{dcrn_forward.8} parent=0 // pred_check
    _
  $region39: #{dcrn_forward.8} parent=0 // pred_check_branch
    %409 = sbr.rel (0) target = $region41
  $region40: #{dcrn_forward.8} parent=0 // pred_region
    _
  $region41: #{dcrn_forward.8} parent=0 // pred_fallthru
    _
  // Predicated region
  $region42: #{dcrn_forward.8} parent=0 // pred_check
    _
  $region43: #{dcrn_forward.8} parent=0 // pred_check_branch
    %411 = sbr.rel (0) target = $region45
  $region44: #{dcrn_forward.8} parent=0 // pred_region
    _
  $region45: #{dcrn_forward.8} parent=0 // pred_fallthru
    _

// kernel: dcrn_forward.5
$region0: #{dcrn_forward.5}
  #allocation0 [shape = 'u32[]', space=smem, size = 0x4, offset = 0x4, fixed_abs, tag = 'smem constant byte address 0x4 - core index']
  #allocation1 [shape = 'u32[72,128]{1,0:T(1,128)}', space=vmem, size = 0x9000, scoped, tag = 'internal scratch']
  %s0 = inlined_call_operand.vmem [shape: f32[64,32], index: 0, kind: input, shape index: {}]
  %s1 = inlined_call_operand.vmem [shape: f32[64,32], index: 1, kind: input, shape index: {}]
  %s2 = inlined_call_operand.vmem [shape: f32[32,32], index: 2, kind: input, shape index: {}]
  %s3 = inlined_call_operand.vmem [shape: f32[1,32], index: 3, kind: input, shape index: {}]
  %s4 = inlined_call_operand.vmem [shape: f32[32,16], index: 4, kind: input, shape index: {}]
  %s5 = inlined_call_operand.vmem [shape: f32[1,16], index: 5, kind: input, shape index: {}]
  %s6 = inlined_call_operand.vmem [shape: f32[16,16], index: 6, kind: input, shape index: {}]
  %s7 = inlined_call_operand.vmem [shape: f32[1,16], index: 7, kind: input, shape index: {}]
  %s8 = inlined_call_operand.vmem [shape: f32[16,8], index: 8, kind: input, shape index: {}]
  %s9 = inlined_call_operand.vmem [shape: f32[1,8], index: 9, kind: input, shape index: {}]
  %s10 = inlined_call_operand.vmem [shape: f32[64,8], index: 10, kind: output, shape index: {0}]
  %s11 = inlined_call_operand.vmem [shape: f32[64,8], index: 11, kind: output, shape index: {1}]
  %s12 = inlined_call_operand.vmem [shape: f32[64,8], index: 12, kind: output, shape index: {2}]
  %13 = xla_tuple %s10, %s11, %s12
  %s14 = sld [smem:[#allocation0]]
  $region66: #{dcrn_forward.5} parent=0
    _
  %s16 = ssub.s32 1, %s14
  %s17 = scalar_select 0, %s16, %s14
  // Predicated region
  $region2: #{dcrn_forward.5} parent=0 // pred_check
    _
  $region3: #{dcrn_forward.5} parent=0 // pred_check_branch
    %19 = sbr.rel (0) target = $region5
  $region4: #{dcrn_forward.5} parent=0 // pred_region
    _
  $region5: #{dcrn_forward.5} parent=0 // pred_fallthru
    _
  // Predicated region
  $region6: #{dcrn_forward.5} parent=0 // pred_check
    _
  $region7: #{dcrn_forward.5} parent=0 // pred_check_branch
    %21 = sbr.rel (0) target = $region9
  $region8: #{dcrn_forward.5} parent=0 // pred_region
    _
  $region9: #{dcrn_forward.5} parent=0 // pred_fallthru
    _
  // Predicated region
  $region10: #{dcrn_forward.5} parent=0 // pred_check
    _
  $region11: #{dcrn_forward.5} parent=0 // pred_check_branch
    %23 = sbr.rel (0) target = $region13
  $region12: #{dcrn_forward.5} parent=0 // pred_region
    _
  $region13: #{dcrn_forward.5} parent=0 // pred_fallthru
    _
  // Predicated region
  $region14: #{dcrn_forward.5} parent=0 // pred_check
    _
  $region15: #{dcrn_forward.5} parent=0 // pred_check_branch
    %25 = sbr.rel (0) target = $region17
  $region16: #{dcrn_forward.5} parent=0 // pred_region
    _
  $region17: #{dcrn_forward.5} parent=0 // pred_fallthru
    _
  // Predicated region
  $region18: #{dcrn_forward.5} parent=0 // pred_check
    _
  $region19: #{dcrn_forward.5} parent=0 // pred_check_branch
    %27 = sbr.rel (0) target = $region21
  $region20: #{dcrn_forward.5} parent=0 // pred_region
    _
  $region21: #{dcrn_forward.5} parent=0 // pred_fallthru
    _
  // Predicated region
  $region22: #{dcrn_forward.5} parent=0 // pred_check
    _
  $region23: #{dcrn_forward.5} parent=0 // pred_check_branch
    %29 = sbr.rel (0) target = $region25
  $region24: #{dcrn_forward.5} parent=0 // pred_region
    _
  $region25: #{dcrn_forward.5} parent=0 // pred_fallthru
    _
  // Predicated region
  $region26: #{dcrn_forward.5} parent=0 // pred_check
    _
  $region27: #{dcrn_forward.5} parent=0 // pred_check_branch
    %31 = sbr.rel (0) target = $region29
  $region28: #{dcrn_forward.5} parent=0 // pred_region
    _
  $region29: #{dcrn_forward.5} parent=0 // pred_fallthru
    _
  // Predicated region
  $region30: #{dcrn_forward.5} parent=0 // pred_check
    _
  $region31: #{dcrn_forward.5} parent=0 // pred_check_branch
    %33 = sbr.rel (0) target = $region33
  $region32: #{dcrn_forward.5} parent=0 // pred_region
    _
  $region33: #{dcrn_forward.5} parent=0 // pred_fallthru
    _
  // Predicated region
  $region34: #{dcrn_forward.5} parent=0 // pred_check
    _
  $region35: #{dcrn_forward.5} parent=0 // pred_check_branch
    %35 = sbr.rel (0) target = $region37
  $region36: #{dcrn_forward.5} parent=0 // pred_region
    _
  $region37: #{dcrn_forward.5} parent=0 // pred_fallthru
    _
  // Predicated region
  $region38: #{dcrn_forward.5} parent=0 // pred_check
    _
  $region39: #{dcrn_forward.5} parent=0 // pred_check_branch
    %37 = sbr.rel (0) target = $region41
  $region40: #{dcrn_forward.5} parent=0 // pred_region
    _
  $region41: #{dcrn_forward.5} parent=0 // pred_fallthru
    _
  %v38 = vld [vmem:[%s0] sm:$0xff]
  %v39 = vld [vmem:[%s0 + $0x8] sm:$0xff]
  %v40 = vld [vmem:[%s0 + $0x10] sm:$0xff]
  %v41 = vld [vmem:[%s0 + $0x18] sm:$0xff]
  %v42 = vld [vmem:[%s0 + $0x20] sm:$0xff]
  %v43 = vld [vmem:[%s0 + $0x28] sm:$0xff]
  %v44 = vld [vmem:[%s0 + $0x30] sm:$0xff]
  %v45 = vld [vmem:[%s0 + $0x38] sm:$0xff]
  %v46 = vld [vmem:[%s2] sm:$0xff]
  %v47 = vld [vmem:[%s2 + $0x8] sm:$0xff]
  %v48 = vld [vmem:[%s2 + $0x10] sm:$0xff]
  %v49 = vld [vmem:[%s2 + $0x18] sm:$0xff]
  %v50 = vld [vmem:[%s3] sm:$0x1]
  %v52 = vperm.slane %v50, 0
  %vm54 = vcmask 261120
  %v56 = vsel %vm54, %v38, 0
  %v59 = vsel %vm54, %v39, 0
  %v62 = vsel %vm54, %v40, 0
  %v65 = vsel %vm54, %v41, 0
  %v68 = vsel %vm54, %v42, 0
  %v71 = vsel %vm54, %v43, 0
  %v74 = vsel %vm54, %v44, 0
  %v77 = vsel %vm54, %v45, 0
  %79 = vmatpush.msra.mxu0 0.0
  %80 = vmatpush.msra.mxu0 0.0
  %81 = vmatpush.msra.mxu0 0.0
  %82 = vmatpush.msra.mxu0 0.0
  %83 = vmatpush.msra.mxu0 0.0
  %84 = vmatpush.msra.mxu0 0.0
  %85 = vmatpush.msra.mxu0 0.0
  %86 = vmatpush.msra.mxu0 0.0
  %87 = vmatpush.msra.mxu0 0.0
  %88 = vmatpush.msra.mxu0 0.0
  %89 = vmatpush.msra.mxu0 0.0
  %90 = vmatpush.msra.mxu0 0.0
  %91 = vmatpush.msra.mxu0 %v49
  %92 = vmatpush.msra.mxu0 %v48
  %93 = vmatpush.msra.mxu0 %v47
  %94 = vmatpush.msra.mxu0 %v46
  %95 = vmatmul.f32.gmra.mxu0 %v56
  %v96 = vpop.f32.mrf.mxu0
  %v97 = vadd.f32 %v52, %v96
  %98 = vmatmul.f32.gmra.mxu0 %v59
  %v99 = vpop.f32.mrf.mxu0
  %v100 = vadd.f32 %v52, %v99
  %101 = vmatmul.f32.gmra.mxu0 %v62
  %v102 = vpop.f32.mrf.mxu0
  %v103 = vadd.f32 %v52, %v102
  %104 = vmatmul.f32.gmra.mxu0 %v65
  %v105 = vpop.f32.mrf.mxu0
  %v106 = vadd.f32 %v52, %v105
  %107 = vmatmul.f32.gmra.mxu0 %v68
  %v108 = vpop.f32.mrf.mxu0
  %v109 = vadd.f32 %v52, %v108
  %110 = vmatmul.f32.gmra.mxu0 %v71
  %v111 = vpop.f32.mrf.mxu0
  %v112 = vadd.f32 %v52, %v111
  %113 = vmatmul.f32.gmra.mxu0 %v74
  %v114 = vpop.f32.mrf.mxu0
  %v115 = vadd.f32 %v52, %v114
  %116 = vmatmul.f32.gmra.mxu0 %v77
  %v117 = vpop.f32.mrf.mxu0
  %v118 = vadd.f32 %v52, %v117
  %119 = vdwg.mxu0
  %vm120 = vcmp.ge.f32.partialorder %v97, 0.0
  %vm121 = vcmp.ge.f32.partialorder %v100, 0.0
  %vm122 = vcmp.ge.f32.partialorder %v103, 0.0
  %vm123 = vcmp.ge.f32.partialorder %v106, 0.0
  %vm124 = vcmp.ge.f32.partialorder %v109, 0.0
  %vm125 = vcmp.ge.f32.partialorder %v112, 0.0
  %vm126 = vcmp.ge.f32.partialorder %v115, 0.0
  %vm127 = vcmp.ge.f32.partialorder %v118, 0.0
  %v128 = vmul.f32 %v97, 0.2
  %v129 = vmul.f32 %v100, 0.2
  %v130 = vmul.f32 %v103, 0.2
  %v131 = vmul.f32 %v106, 0.2
  %v132 = vmul.f32 %v109, 0.2
  %v133 = vmul.f32 %v112, 0.2
  %v134 = vmul.f32 %v115, 0.2
  %v135 = vmul.f32 %v118, 0.2
  %v136 = vsel %vm120, %v97, %v128
  %v137 = vsel %vm121, %v100, %v129
  %v138 = vsel %vm122, %v103, %v130
  %v139 = vsel %vm123, %v106, %v131
  %v140 = vsel %vm124, %v109, %v132
  %v141 = vsel %vm125, %v112, %v133
  %v142 = vsel %vm126, %v115, %v134
  %v143 = vsel %vm127, %v118, %v135
  %v144 = vld [vmem:[%s4] sm:$0xff]
  %v145 = vld [vmem:[%s4 + $0x8] sm:$0xff]
  %v146 = vld [vmem:[%s4 + $0x10] sm:$0xff]
  %v147 = vld [vmem:[%s4 + $0x18] sm:$0xff]
  %v148 = vld [vmem:[%s5] sm:$0x1]
  %v150 = vperm.slane %v148, 0
  %v153 = vsel %vm54, %v136, 0
  %v156 = vsel %vm54, %v137, 0
  %v159 = vsel %vm54, %v138, 0
  %v162 = vsel %vm54, %v139, 0
  %v165 = vsel %vm54, %v140, 0
  %v168 = vsel %vm54, %v141, 0
  %v171 = vsel %vm54, %v142, 0
  %v174 = vsel %vm54, %v143, 0
  %176 = vmatpush.msra.mxu0 0.0
  %177 = vmatpush.msra.mxu0 0.0
  %178 = vmatpush.msra.mxu0 0.0
  %179 = vmatpush.msra.mxu0 0.0
  %180 = vmatpush.msra.mxu0 0.0
  %181 = vmatpush.msra.mxu0 0.0
  %182 = vmatpush.msra.mxu0 0.0
  %183 = vmatpush.msra.mxu0 0.0
  %184 = vmatpush.msra.mxu0 0.0
  %185 = vmatpush.msra.mxu0 0.0
  %186 = vmatpush.msra.mxu0 0.0
  %187 = vmatpush.msra.mxu0 0.0
  %188 = vmatpush.msra.mxu0 %v147
  %189 = vmatpush.msra.mxu0 %v146
  %190 = vmatpush.msra.mxu0 %v145
  %191 = vmatpush.msra.mxu0 %v144
  %192 = vmatmul.f32.gmra.mxu0 %v153
  %v193 = vpop.f32.mrf.mxu0
  %v194 = vadd.f32 %v150, %v193
  %195 = vmatmul.f32.gmra.mxu0 %v156
  %v196 = vpop.f32.mrf.mxu0
  %v197 = vadd.f32 %v150, %v196
  %198 = vmatmul.f32.gmra.mxu0 %v159
  %v199 = vpop.f32.mrf.mxu0
  %v200 = vadd.f32 %v150, %v199
  %201 = vmatmul.f32.gmra.mxu0 %v162
  %v202 = vpop.f32.mrf.mxu0
  %v203 = vadd.f32 %v150, %v202
  %204 = vmatmul.f32.gmra.mxu0 %v165
  %v205 = vpop.f32.mrf.mxu0
  %v206 = vadd.f32 %v150, %v205
  %207 = vmatmul.f32.gmra.mxu0 %v168
  %v208 = vpop.f32.mrf.mxu0
  %v209 = vadd.f32 %v150, %v208
  %210 = vmatmul.f32.gmra.mxu0 %v171
  %v211 = vpop.f32.mrf.mxu0
  %v212 = vadd.f32 %v150, %v211
  %213 = vmatmul.f32.gmra.mxu0 %v174
  %v214 = vpop.f32.mrf.mxu0
  %v215 = vadd.f32 %v150, %v214
  %216 = vdwg.mxu0
  %vm217 = vcmp.ge.f32.partialorder %v194, 0.0
  %vm218 = vcmp.ge.f32.partialorder %v197, 0.0
  %vm219 = vcmp.ge.f32.partialorder %v200, 0.0
  %vm220 = vcmp.ge.f32.partialorder %v203, 0.0
  %vm221 = vcmp.ge.f32.partialorder %v206, 0.0
  %vm222 = vcmp.ge.f32.partialorder %v209, 0.0
  %vm223 = vcmp.ge.f32.partialorder %v212, 0.0
  %vm224 = vcmp.ge.f32.partialorder %v215, 0.0
  %v225 = vmul.f32 %v194, 0.2
  %v226 = vmul.f32 %v197, 0.2
  %v227 = vmul.f32 %v200, 0.2
  %v228 = vmul.f32 %v203, 0.2
  %v229 = vmul.f32 %v206, 0.2
  %v230 = vmul.f32 %v209, 0.2
  %v231 = vmul.f32 %v212, 0.2
  %v232 = vmul.f32 %v215, 0.2
  %v233 = vsel %vm217, %v194, %v225
  %v234 = vsel %vm218, %v197, %v226
  %v235 = vsel %vm219, %v200, %v227
  %v236 = vsel %vm220, %v203, %v228
  %v237 = vsel %vm221, %v206, %v229
  %v238 = vsel %vm222, %v209, %v230
  %v239 = vsel %vm223, %v212, %v231
  %v240 = vsel %vm224, %v215, %v232
  %v241 = vld [vmem:[%s6] sm:$0xff]
  %v242 = vld [vmem:[%s6 + $0x8] sm:$0xff]
  %v243 = vld [vmem:[%s7] sm:$0x1]
  %v245 = vperm.slane %v243, 0
  %vm247 = vcmask 130048
  %v249 = vsel %vm247, %v233, 0
  %v252 = vsel %vm247, %v234, 0
  %v255 = vsel %vm247, %v235, 0
  %v258 = vsel %vm247, %v236, 0
  %v261 = vsel %vm247, %v237, 0
  %v264 = vsel %vm247, %v238, 0
  %v267 = vsel %vm247, %v239, 0
  %v270 = vsel %vm247, %v240, 0
  %272 = vmatpush.msra.mxu0 0.0
  %273 = vmatpush.msra.mxu0 0.0
  %274 = vmatpush.msra.mxu0 0.0
  %275 = vmatpush.msra.mxu0 0.0
  %276 = vmatpush.msra.mxu0 0.0
  %277 = vmatpush.msra.mxu0 0.0
  %278 = vmatpush.msra.mxu0 0.0
  %279 = vmatpush.msra.mxu0 0.0
  %280 = vmatpush.msra.mxu0 0.0
  %281 = vmatpush.msra.mxu0 0.0
  %282 = vmatpush.msra.mxu0 0.0
  %283 = vmatpush.msra.mxu0 0.0
  %284 = vmatpush.msra.mxu0 0.0
  %285 = vmatpush.msra.mxu0 0.0
  %286 = vmatpush.msra.mxu0 %v242
  %287 = vmatpush.msra.mxu0 %v241
  %288 = vmatmul.f32.gmra.mxu0 %v249
  %v289 = vpop.f32.mrf.mxu0
  %v290 = vadd.f32 %v245, %v289
  %291 = vmatmul.f32.gmra.mxu0 %v252
  %v292 = vpop.f32.mrf.mxu0
  %v293 = vadd.f32 %v245, %v292
  %294 = vmatmul.f32.gmra.mxu0 %v255
  %v295 = vpop.f32.mrf.mxu0
  %v296 = vadd.f32 %v245, %v295
  %297 = vmatmul.f32.gmra.mxu0 %v258
  %v298 = vpop.f32.mrf.mxu0
  %v299 = vadd.f32 %v245, %v298
  %300 = vmatmul.f32.gmra.mxu0 %v261
  %v301 = vpop.f32.mrf.mxu0
  %v302 = vadd.f32 %v245, %v301
  %303 = vmatmul.f32.gmra.mxu0 %v264
  %v304 = vpop.f32.mrf.mxu0
  %v305 = vadd.f32 %v245, %v304
  %306 = vmatmul.f32.gmra.mxu0 %v267
  %v307 = vpop.f32.mrf.mxu0
  %v308 = vadd.f32 %v245, %v307
  %309 = vmatmul.f32.gmra.mxu0 %v270
  %v310 = vpop.f32.mrf.mxu0
  %v311 = vadd.f32 %v245, %v310
  %312 = vdwg.mxu0
  %vm313 = vcmp.ge.f32.partialorder %v290, 0.0
  %vm314 = vcmp.ge.f32.partialorder %v293, 0.0
  %vm315 = vcmp.ge.f32.partialorder %v296, 0.0
  %vm316 = vcmp.ge.f32.partialorder %v299, 0.0
  %vm317 = vcmp.ge.f32.partialorder %v302, 0.0
  %vm318 = vcmp.ge.f32.partialorder %v305, 0.0
  %vm319 = vcmp.ge.f32.partialorder %v308, 0.0
  %vm320 = vcmp.ge.f32.partialorder %v311, 0.0
  %v321 = vmul.f32 %v290, 0.2
  %v322 = vmul.f32 %v293, 0.2
  %v323 = vmul.f32 %v296, 0.2
  %v324 = vmul.f32 %v299, 0.2
  %v325 = vmul.f32 %v302, 0.2
  %v326 = vmul.f32 %v305, 0.2
  %v327 = vmul.f32 %v308, 0.2
  %v328 = vmul.f32 %v311, 0.2
  %v329 = vsel %vm313, %v290, %v321
  %v330 = vsel %vm314, %v293, %v322
  %v331 = vsel %vm315, %v296, %v323
  %v332 = vsel %vm316, %v299, %v324
  %v333 = vsel %vm317, %v302, %v325
  %v334 = vsel %vm318, %v305, %v326
  %v335 = vsel %vm319, %v308, %v327
  %v336 = vsel %vm320, %v311, %v328
  %v337 = vld [vmem:[%s8] sm:$0xff]
  %v338 = vld [vmem:[%s8 + $0x8] sm:$0xff]
  %v339 = vld [vmem:[%s9] sm:$0x1]
  %v341 = vperm.slane %v339, 0
  %v344 = vsel %vm247, %v329, 0
  %v347 = vsel %vm247, %v330, 0
  %v350 = vsel %vm247, %v331, 0
  %v353 = vsel %vm247, %v332, 0
  %v356 = vsel %vm247, %v333, 0
  %v359 = vsel %vm247, %v334, 0
  %v362 = vsel %vm247, %v335, 0
  %v365 = vsel %vm247, %v336, 0
  %367 = vmatpush.msra.mxu0 0.0
  %368 = vmatpush.msra.mxu0 0.0
  %369 = vmatpush.msra.mxu0 0.0
  %370 = vmatpush.msra.mxu0 0.0
  %371 = vmatpush.msra.mxu0 0.0
  %372 = vmatpush.msra.mxu0 0.0
  %373 = vmatpush.msra.mxu0 0.0
  %374 = vmatpush.msra.mxu0 0.0
  %375 = vmatpush.msra.mxu0 0.0
  %376 = vmatpush.msra.mxu0 0.0
  %377 = vmatpush.msra.mxu0 0.0
  %378 = vmatpush.msra.mxu0 0.0
  %379 = vmatpush.msra.mxu0 0.0
  %380 = vmatpush.msra.mxu0 0.0
  %381 = vmatpush.msra.mxu0 %v338
  %382 = vmatpush.msra.mxu0 %v337
  %383 = vmatmul.f32.gmra.mxu0 %v344
  %v384 = vpop.f32.mrf.mxu0
  %v385 = vadd.f32 %v341, %v384
  %386 = vmatmul.f32.gmra.mxu0 %v347
  %v387 = vpop.f32.mrf.mxu0
  %v388 = vadd.f32 %v341, %v387
  %389 = vmatmul.f32.gmra.mxu0 %v350
  %v390 = vpop.f32.mrf.mxu0
  %v391 = vadd.f32 %v341, %v390
  %392 = vmatmul.f32.gmra.mxu0 %v353
  %v393 = vpop.f32.mrf.mxu0
  %v394 = vadd.f32 %v341, %v393
  %395 = vmatmul.f32.gmra.mxu0 %v356
  %v396 = vpop.f32.mrf.mxu0
  %v397 = vadd.f32 %v341, %v396
  %398 = vmatmul.f32.gmra.mxu0 %v359
  %v399 = vpop.f32.mrf.mxu0
  %v400 = vadd.f32 %v341, %v399
  %401 = vmatmul.f32.gmra.mxu0 %v362
  %v402 = vpop.f32.mrf.mxu0
  %v403 = vadd.f32 %v341, %v402
  %404 = vmatmul.f32.gmra.mxu0 %v365
  %v405 = vpop.f32.mrf.mxu0
  %v406 = vadd.f32 %v341, %v405
  %407 = vdwg.mxu0
  %v408 = vld [vmem:[%s1] sm:$0xff]
  %v409 = vld [vmem:[%s1 + $0x8] sm:$0xff]
  %v410 = vld [vmem:[%s1 + $0x10] sm:$0xff]
  %v411 = vld [vmem:[%s1 + $0x18] sm:$0xff]
  %v412 = vld [vmem:[%s1 + $0x20] sm:$0xff]
  %v413 = vld [vmem:[%s1 + $0x28] sm:$0xff]
  %v414 = vld [vmem:[%s1 + $0x30] sm:$0xff]
  %v415 = vld [vmem:[%s1 + $0x38] sm:$0xff]
  %v417 = vsel %vm54, %v408, 0
  %v420 = vsel %vm54, %v409, 0
  %v423 = vsel %vm54, %v410, 0
  %v426 = vsel %vm54, %v411, 0
  %v429 = vsel %vm54, %v412, 0
  %v432 = vsel %vm54, %v413, 0
  %v435 = vsel %vm54, %v414, 0
  %v438 = vsel %vm54, %v415, 0
  %440 = vmatpush.msra.mxu0 0.0
  %441 = vmatpush.msra.mxu0 0.0
  %442 = vmatpush.msra.mxu0 0.0
  %443 = vmatpush.msra.mxu0 0.0
  %444 = vmatpush.msra.mxu0 0.0
  %445 = vmatpush.msra.mxu0 0.0
  %446 = vmatpush.msra.mxu0 0.0
  %447 = vmatpush.msra.mxu0 0.0
  %448 = vmatpush.msra.mxu0 0.0
  %449 = vmatpush.msra.mxu0 0.0
  %450 = vmatpush.msra.mxu0 0.0
  %451 = vmatpush.msra.mxu0 0.0
  %452 = vmatpush.msra.mxu0 %v49
  %453 = vmatpush.msra.mxu0 %v48
  %454 = vmatpush.msra.mxu0 %v47
  %455 = vmatpush.msra.mxu0 %v46
  %456 = vmatmul.f32.gmra.mxu0 %v417
  %v457 = vpop.f32.mrf.mxu0
  %v458 = vadd.f32 %v52, %v457
  %459 = vmatmul.f32.gmra.mxu0 %v420
  %v460 = vpop.f32.mrf.mxu0
  %v461 = vadd.f32 %v52, %v460
  %462 = vmatmul.f32.gmra.mxu0 %v423
  %v463 = vpop.f32.mrf.mxu0
  %v464 = vadd.f32 %v52, %v463
  %465 = vmatmul.f32.gmra.mxu0 %v426
  %v466 = vpop.f32.mrf.mxu0
  %v467 = vadd.f32 %v52, %v466
  %468 = vmatmul.f32.gmra.mxu0 %v429
  %v469 = vpop.f32.mrf.mxu0
  %v470 = vadd.f32 %v52, %v469
  %471 = vmatmul.f32.gmra.mxu0 %v432
  %v472 = vpop.f32.mrf.mxu0
  %v473 = vadd.f32 %v52, %v472
  %474 = vmatmul.f32.gmra.mxu0 %v435
  %v475 = vpop.f32.mrf.mxu0
  %v476 = vadd.f32 %v52, %v475
  %477 = vmatmul.f32.gmra.mxu0 %v438
  %v478 = vpop.f32.mrf.mxu0
  %v479 = vadd.f32 %v52, %v478
  %480 = vdwg.mxu0
  %vm481 = vcmp.ge.f32.partialorder %v458, 0.0
  %vm482 = vcmp.ge.f32.partialorder %v461, 0.0
  %vm483 = vcmp.ge.f32.partialorder %v464, 0.0
  %vm484 = vcmp.ge.f32.partialorder %v467, 0.0
  %vm485 = vcmp.ge.f32.partialorder %v470, 0.0
  %vm486 = vcmp.ge.f32.partialorder %v473, 0.0
  %vm487 = vcmp.ge.f32.partialorder %v476, 0.0
  %vm488 = vcmp.ge.f32.partialorder %v479, 0.0
  %v489 = vmul.f32 %v458, 0.2
  %v490 = vmul.f32 %v461, 0.2
  %v491 = vmul.f32 %v464, 0.2
  %v492 = vmul.f32 %v467, 0.2
  %v493 = vmul.f32 %v470, 0.2
  %v494 = vmul.f32 %v473, 0.2
  %v495 = vmul.f32 %v476, 0.2
  %v496 = vmul.f32 %v479, 0.2
  %v497 = vsel %vm481, %v458, %v489
  %v498 = vsel %vm482, %v461, %v490
  %v499 = vsel %vm483, %v464, %v491
  %v500 = vsel %vm484, %v467, %v492
  %v501 = vsel %vm485, %v470, %v493
  %v502 = vsel %vm486, %v473, %v494
  %v503 = vsel %vm487, %v476, %v495
  %v504 = vsel %vm488, %v479, %v496
  %v506 = vsel %vm54, %v497, 0
  %v509 = vsel %vm54, %v498, 0
  %v512 = vsel %vm54, %v499, 0
  %v515 = vsel %vm54, %v500, 0
  %v518 = vsel %vm54, %v501, 0
  %v521 = vsel %vm54, %v502, 0
  %v524 = vsel %vm54, %v503, 0
  %v527 = vsel %vm54, %v504, 0
  %529 = vmatpush.msra.mxu0 0.0
  %530 = vmatpush.msra.mxu0 0.0
  %531 = vmatpush.msra.mxu0 0.0
  %532 = vmatpush.msra.mxu0 0.0
  %533 = vmatpush.msra.mxu0 0.0
  %534 = vmatpush.msra.mxu0 0.0
  %535 = vmatpush.msra.mxu0 0.0
  %536 = vmatpush.msra.mxu0 0.0
  %537 = vmatpush.msra.mxu0 0.0
  %538 = vmatpush.msra.mxu0 0.0
  %539 = vmatpush.msra.mxu0 0.0
  %540 = vmatpush.msra.mxu0 0.0
  %541 = vmatpush.msra.mxu0 %v147
  %542 = vmatpush.msra.mxu0 %v146
  %543 = vmatpush.msra.mxu0 %v145
  %544 = vmatpush.msra.mxu0 %v144
  %545 = vmatmul.f32.gmra.mxu0 %v506
  %v546 = vpop.f32.mrf.mxu0
  %v547 = vadd.f32 %v150, %v546
  %548 = vmatmul.f32.gmra.mxu0 %v509
  %v549 = vpop.f32.mrf.mxu0
  %v550 = vadd.f32 %v150, %v549
  %551 = vmatmul.f32.gmra.mxu0 %v512
  %v552 = vpop.f32.mrf.mxu0
  %v553 = vadd.f32 %v150, %v552
  %554 = vmatmul.f32.gmra.mxu0 %v515
  %v555 = vpop.f32.mrf.mxu0
  %v556 = vadd.f32 %v150, %v555
  %557 = vmatmul.f32.gmra.mxu0 %v518
  %v558 = vpop.f32.mrf.mxu0
  %v559 = vadd.f32 %v150, %v558
  %560 = vmatmul.f32.gmra.mxu0 %v521
  %v561 = vpop.f32.mrf.mxu0
  %v562 = vadd.f32 %v150, %v561
  %563 = vmatmul.f32.gmra.mxu0 %v524
  %v564 = vpop.f32.mrf.mxu0
  %v565 = vadd.f32 %v150, %v564
  %566 = vmatmul.f32.gmra.mxu0 %v527
  %v567 = vpop.f32.mrf.mxu0
  %v568 = vadd.f32 %v150, %v567
  %569 = vdwg.mxu0
  %vm570 = vcmp.ge.f32.partialorder %v547, 0.0
  %vm571 = vcmp.ge.f32.partialorder %v550, 0.0
  %vm572 = vcmp.ge.f32.partialorder %v553, 0.0
  %vm573 = vcmp.ge.f32.partialorder %v556, 0.0
  %vm574 = vcmp.ge.f32.partialorder %v559, 0.0
  %vm575 = vcmp.ge.f32.partialorder %v562, 0.0
  %vm576 = vcmp.ge.f32.partialorder %v565, 0.0
  %vm577 = vcmp.ge.f32.partialorder %v568, 0.0
  %v578 = vmul.f32 %v547, 0.2
  %v579 = vmul.f32 %v550, 0.2
  %v580 = vmul.f32 %v553, 0.2
  %v581 = vmul.f32 %v556, 0.2
  %v582 = vmul.f32 %v559, 0.2
  %v583 = vmul.f32 %v562, 0.2
  %v584 = vmul.f32 %v565, 0.2
  %v585 = vmul.f32 %v568, 0.2
  %v586 = vsel %vm570, %v547, %v578
  %v587 = vsel %vm571, %v550, %v579
  %v588 = vsel %vm572, %v553, %v580
  %v589 = vsel %vm573, %v556, %v581
  %v590 = vsel %vm574, %v559, %v582
  %v591 = vsel %vm575, %v562, %v583
  %v592 = vsel %vm576, %v565, %v584
  %v593 = vsel %vm577, %v568, %v585
  %v595 = vsel %vm247, %v586, 0
  %v598 = vsel %vm247, %v587, 0
  %v601 = vsel %vm247, %v588, 0
  %v604 = vsel %vm247, %v589, 0
  %v607 = vsel %vm247, %v590, 0
  %v610 = vsel %vm247, %v591, 0
  %v613 = vsel %vm247, %v592, 0
  %v616 = vsel %vm247, %v593, 0
  %618 = vmatpush.msra.mxu0 0.0
  %619 = vmatpush.msra.mxu0 0.0
  %620 = vmatpush.msra.mxu0 0.0
  %621 = vmatpush.msra.mxu0 0.0
  %622 = vmatpush.msra.mxu0 0.0
  %623 = vmatpush.msra.mxu0 0.0
  %624 = vmatpush.msra.mxu0 0.0
  %625 = vmatpush.msra.mxu0 0.0
  %626 = vmatpush.msra.mxu0 0.0
  %627 = vmatpush.msra.mxu0 0.0
  %628 = vmatpush.msra.mxu0 0.0
  %629 = vmatpush.msra.mxu0 0.0
  %630 = vmatpush.msra.mxu0 0.0
  %631 = vmatpush.msra.mxu0 0.0
  %632 = vmatpush.msra.mxu0 %v242
  %633 = vmatpush.msra.mxu0 %v241
  %634 = vmatmul.f32.gmra.mxu0 %v595
  %v635 = vpop.f32.mrf.mxu0
  %v636 = vadd.f32 %v245, %v635
  %637 = vmatmul.f32.gmra.mxu0 %v598
  %v638 = vpop.f32.mrf.mxu0
  %v639 = vadd.f32 %v245, %v638
  %640 = vmatmul.f32.gmra.mxu0 %v601
  %v641 = vpop.f32.mrf.mxu0
  %v642 = vadd.f32 %v245, %v641
  %643 = vmatmul.f32.gmra.mxu0 %v604
  %v644 = vpop.f32.mrf.mxu0
  %v645 = vadd.f32 %v245, %v644
  %646 = vmatmul.f32.gmra.mxu0 %v607
  %v647 = vpop.f32.mrf.mxu0
  %v648 = vadd.f32 %v245, %v647
  %649 = vmatmul.f32.gmra.mxu0 %v610
  %v650 = vpop.f32.mrf.mxu0
  %v651 = vadd.f32 %v245, %v650
  %652 = vmatmul.f32.gmra.mxu0 %v613
  %v653 = vpop.f32.mrf.mxu0
  %v654 = vadd.f32 %v245, %v653
  %655 = vmatmul.f32.gmra.mxu0 %v616
  %v656 = vpop.f32.mrf.mxu0
  %v657 = vadd.f32 %v245, %v656
  %658 = vdwg.mxu0
  %vm659 = vcmp.ge.f32.partialorder %v636, 0.0
  %vm660 = vcmp.ge.f32.partialorder %v639, 0.0
  %vm661 = vcmp.ge.f32.partialorder %v642, 0.0
  %vm662 = vcmp.ge.f32.partialorder %v645, 0.0
  %vm663 = vcmp.ge.f32.partialorder %v648, 0.0
  %vm664 = vcmp.ge.f32.partialorder %v651, 0.0
  %vm665 = vcmp.ge.f32.partialorder %v654, 0.0
  %vm666 = vcmp.ge.f32.partialorder %v657, 0.0
  %v667 = vmul.f32 %v636, 0.2
  %v668 = vmul.f32 %v639, 0.2
  %v669 = vmul.f32 %v642, 0.2
  %v670 = vmul.f32 %v645, 0.2
  %v671 = vmul.f32 %v648, 0.2
  %v672 = vmul.f32 %v651, 0.2
  %v673 = vmul.f32 %v654, 0.2
  %v674 = vmul.f32 %v657, 0.2
  %v675 = vsel %vm659, %v636, %v667
  %v676 = vsel %vm660, %v639, %v668
  %v677 = vsel %vm661, %v642, %v669
  %v678 = vsel %vm662, %v645, %v670
  %v679 = vsel %vm663, %v648, %v671
  %v680 = vsel %vm664, %v651, %v672
  %v681 = vsel %vm665, %v654, %v673
  %v682 = vsel %vm666, %v657, %v674
  %v684 = vsel %vm247, %v675, 0
  %v687 = vsel %vm247, %v676, 0
  %v690 = vsel %vm247, %v677, 0
  %v693 = vsel %vm247, %v678, 0
  %v696 = vsel %vm247, %v679, 0
  %v699 = vsel %vm247, %v680, 0
  %v702 = vsel %vm247, %v681, 0
  %v705 = vsel %vm247, %v682, 0
  %707 = vmatpush.msra.mxu0 0.0
  %708 = vmatpush.msra.mxu0 0.0
  %709 = vmatpush.msra.mxu0 0.0
  %710 = vmatpush.msra.mxu0 0.0
  %711 = vmatpush.msra.mxu0 0.0
  %712 = vmatpush.msra.mxu0 0.0
  %713 = vmatpush.msra.mxu0 0.0
  %714 = vmatpush.msra.mxu0 0.0
  %715 = vmatpush.msra.mxu0 0.0
  %716 = vmatpush.msra.mxu0 0.0
  %717 = vmatpush.msra.mxu0 0.0
  %718 = vmatpush.msra.mxu0 0.0
  %719 = vmatpush.msra.mxu0 0.0
  %720 = vmatpush.msra.mxu0 0.0
  %721 = vmatpush.msra.mxu0 %v338
  %722 = vmatpush.msra.mxu0 %v337
  %723 = vmatmul.f32.gmra.mxu0 %v684
  %v724 = vpop.f32.mrf.mxu0
  %v725 = vadd.f32 %v341, %v724
  %726 = vmatmul.f32.gmra.mxu0 %v687
  %v727 = vpop.f32.mrf.mxu0
  %v728 = vadd.f32 %v341, %v727
  %729 = vmatmul.f32.gmra.mxu0 %v690
  %v730 = vpop.f32.mrf.mxu0
  %v731 = vadd.f32 %v341, %v730
  %732 = vmatmul.f32.gmra.mxu0 %v693
  %v733 = vpop.f32.mrf.mxu0
  %v734 = vadd.f32 %v341, %v733
  %735 = vmatmul.f32.gmra.mxu0 %v696
  %v736 = vpop.f32.mrf.mxu0
  %v737 = vadd.f32 %v341, %v736
  %738 = vmatmul.f32.gmra.mxu0 %v699
  %v739 = vpop.f32.mrf.mxu0
  %v740 = vadd.f32 %v341, %v739
  %741 = vmatmul.f32.gmra.mxu0 %v702
  %v742 = vpop.f32.mrf.mxu0
  %v743 = vadd.f32 %v341, %v742
  %744 = vmatmul.f32.gmra.mxu0 %v705
  %v745 = vpop.f32.mrf.mxu0
  %v746 = vadd.f32 %v341, %v745
  %747 = vdwg.mxu0
  %vm748 = vcmask 64512
  %749 = vst.msk [vmem:[%s10] sm:$0xff] %vm748, %v385
  %750 = vst.msk [vmem:[%s10 + $0x8] sm:$0xff] %vm748, %v388
  %751 = vst.msk [vmem:[%s10 + $0x10] sm:$0xff] %vm748, %v391
  %752 = vst.msk [vmem:[%s10 + $0x18] sm:$0xff] %vm748, %v394
  %753 = vst.msk [vmem:[%s10 + $0x20] sm:$0xff] %vm748, %v397
  %754 = vst.msk [vmem:[%s10 + $0x28] sm:$0xff] %vm748, %v400
  %755 = vst.msk [vmem:[%s10 + $0x30] sm:$0xff] %vm748, %v403
  %756 = vst.msk [vmem:[%s10 + $0x38] sm:$0xff] %vm748, %v406
  %757 = vst.msk [vmem:[%s11] sm:$0xff] %vm748, %v725
  %758 = vst.msk [vmem:[%s11 + $0x8] sm:$0xff] %vm748, %v728
  %759 = vst.msk [vmem:[%s11 + $0x10] sm:$0xff] %vm748, %v731
  %760 = vst.msk [vmem:[%s11 + $0x18] sm:$0xff] %vm748, %v734
  %761 = vst.msk [vmem:[%s11 + $0x20] sm:$0xff] %vm748, %v737
  %762 = vst.msk [vmem:[%s11 + $0x28] sm:$0xff] %vm748, %v740
  %763 = vst.msk [vmem:[%s11 + $0x30] sm:$0xff] %vm748, %v743
  %764 = vst.msk [vmem:[%s11 + $0x38] sm:$0xff] %vm748, %v746
  %v765 = vadd.f32 %v385, %v725
  %v766 = vadd.f32 %v388, %v728
  %v767 = vadd.f32 %v391, %v731
  %v768 = vadd.f32 %v394, %v734
  %v769 = vadd.f32 %v397, %v737
  %v770 = vadd.f32 %v400, %v740
  %v771 = vadd.f32 %v403, %v743
  %v772 = vadd.f32 %v406, %v746
  %v773 = vmul.f32 %v765, 0.5
  %v774 = vmul.f32 %v766, 0.5
  %v775 = vmul.f32 %v767, 0.5
  %v776 = vmul.f32 %v768, 0.5
  %v777 = vmul.f32 %v769, 0.5
  %v778 = vmul.f32 %v770, 0.5
  %v779 = vmul.f32 %v771, 0.5
  %v780 = vmul.f32 %v772, 0.5
  %781 = vst.msk [vmem:[%s12] sm:$0xff] %vm748, %v773
  %782 = vst.msk [vmem:[%s12 + $0x8] sm:$0xff] %vm748, %v774
  %783 = vst.msk [vmem:[%s12 + $0x10] sm:$0xff] %vm748, %v775
  %784 = vst.msk [vmem:[%s12 + $0x18] sm:$0xff] %vm748, %v776
  %785 = vst.msk [vmem:[%s12 + $0x20] sm:$0xff] %vm748, %v777
  %786 = vst.msk [vmem:[%s12 + $0x28] sm:$0xff] %vm748, %v778
  %787 = vst.msk [vmem:[%s12 + $0x30] sm:$0xff] %vm748, %v779
  %788 = vst.msk [vmem:[%s12 + $0x38] sm:$0xff] %vm748, %v780
  // Predicated region
  $region42: #{dcrn_forward.5} parent=0 // pred_check
    _
  $region43: #{dcrn_forward.5} parent=0 // pred_check_branch
    %790 = sbr.rel (0) target = $region45
  $region44: #{dcrn_forward.5} parent=0 // pred_region
    _
  $region45: #{dcrn_forward.5} parent=0 // pred_fallthru
    _
  // Predicated region
  $region46: #{dcrn_forward.5} parent=0 // pred_check
    _
  $region47: #{dcrn_forward.5} parent=0 // pred_check_branch
    %792 = sbr.rel (0) target = $region49
  $region48: #{dcrn_forward.5} parent=0 // pred_region
    _
  $region49: #{dcrn_forward.5} parent=0 // pred_fallthru
    _
  // Predicated region
  $region50: #{dcrn_forward.5} parent=0 // pred_check
    _
  $region51: #{dcrn_forward.5} parent=0 // pred_check_branch
    %794 = sbr.rel (0) target = $region53
  $region52: #{dcrn_forward.5} parent=0 // pred_region
    _
  $region53: #{dcrn_forward.5} parent=0 // pred_fallthru
    _
  // Predicated region
  $region54: #{dcrn_forward.5} parent=0 // pred_check
    _
  $region55: #{dcrn_forward.5} parent=0 // pred_check_branch
    %796 = sbr.rel (0) target = $region57
  $region56: #{dcrn_forward.5} parent=0 // pred_region
    _
  $region57: #{dcrn_forward.5} parent=0 // pred_fallthru
    _
  // Predicated region
  $region58: #{dcrn_forward.5} parent=0 // pred_check
    _
  $region59: #{dcrn_forward.5} parent=0 // pred_check_branch
    %798 = sbr.rel (0) target = $region61
  $region60: #{dcrn_forward.5} parent=0 // pred_region
    _
  $region61: #{dcrn_forward.5} parent=0 // pred_fallthru
    _
  // Predicated region
  $region62: #{dcrn_forward.5} parent=0 // pred_check
    _
  $region63: #{dcrn_forward.5} parent=0 // pred_check_branch
    %800 = sbr.rel (0) target = $region65
  $region64: #{dcrn_forward.5} parent=0 // pred_region
    _
  $region65: #{dcrn_forward.5} parent=0 // pred_fallthru
    _

// kernel: dcrn_forward.6
$region0: #{dcrn_forward.6}
  #allocation0 [shape = 'u32[]', space=smem, size = 0x4, offset = 0x4, fixed_abs, tag = 'smem constant byte address 0x4 - core index']
  #allocation1 [shape = 'u32[72,128]{1,0:T(1,128)}', space=vmem, size = 0x9000, scoped, tag = 'internal scratch']
  %s0 = inlined_call_operand.vmem [shape: f32[64,32], index: 0, kind: input, shape index: {}]
  %s1 = inlined_call_operand.vmem [shape: f32[64,32], index: 1, kind: input, shape index: {}]
  %s2 = inlined_call_operand.vmem [shape: f32[64,64], index: 2, kind: input, shape index: {}]
  %s3 = inlined_call_operand.vmem [shape: f32[64,64], index: 3, kind: input, shape index: {}]
  %s4 = inlined_call_operand.vmem [shape: f32[32,32], index: 4, kind: input, shape index: {}]
  %s5 = inlined_call_operand.vmem [shape: f32[32,16], index: 5, kind: input, shape index: {}]
  %s6 = inlined_call_operand.vmem [shape: f32[16,8], index: 6, kind: input, shape index: {}]
  %s7 = inlined_call_operand.vmem [shape: f32[64,8], index: 7, kind: output, shape index: {0}]
  %s8 = inlined_call_operand.vmem [shape: f32[64,8], index: 8, kind: output, shape index: {1}]
  %s9 = inlined_call_operand.vmem [shape: f32[64,64], index: 9, kind: output, shape index: {2}]
  %s10 = inlined_call_operand.vmem [shape: f32[64,32], index: 10, kind: output, shape index: {3}]
  %s11 = inlined_call_operand.vmem [shape: f32[64,16], index: 11, kind: output, shape index: {4}]
  %s12 = inlined_call_operand.vmem [shape: f32[64,8], index: 12, kind: output, shape index: {5}]
  %s13 = inlined_call_operand.vmem [shape: f32[64,32], index: 13, kind: output, shape index: {6}]
  %s14 = inlined_call_operand.vmem [shape: f32[64,16], index: 14, kind: output, shape index: {7}]
  %s15 = inlined_call_operand.vmem [shape: f32[64,8], index: 15, kind: output, shape index: {8}]
  %16 = xla_tuple %s7, %s8, %s9, %s10, %s11, %s12, %s13, %s14, %s15
  %s17 = sld [smem:[#allocation0]]
  $region102: #{dcrn_forward.6} parent=0
    _
  %s19 = ssub.s32 1, %s17
  %s20 = scalar_select 0, %s19, %s17
  // Predicated region
  $region2: #{dcrn_forward.6} parent=0 // pred_check
    _
  $region3: #{dcrn_forward.6} parent=0 // pred_check_branch
    %22 = sbr.rel (0) target = $region5
  $region4: #{dcrn_forward.6} parent=0 // pred_region
    _
  $region5: #{dcrn_forward.6} parent=0 // pred_fallthru
    _
  // Predicated region
  $region6: #{dcrn_forward.6} parent=0 // pred_check
    _
  $region7: #{dcrn_forward.6} parent=0 // pred_check_branch
    %24 = sbr.rel (0) target = $region9
  $region8: #{dcrn_forward.6} parent=0 // pred_region
    _
  $region9: #{dcrn_forward.6} parent=0 // pred_fallthru
    _
  // Predicated region
  $region10: #{dcrn_forward.6} parent=0 // pred_check
    _
  $region11: #{dcrn_forward.6} parent=0 // pred_check_branch
    %26 = sbr.rel (0) target = $region13
  $region12: #{dcrn_forward.6} parent=0 // pred_region
    _
  $region13: #{dcrn_forward.6} parent=0 // pred_fallthru
    _
  // Predicated region
  $region14: #{dcrn_forward.6} parent=0 // pred_check
    _
  $region15: #{dcrn_forward.6} parent=0 // pred_check_branch
    %28 = sbr.rel (0) target = $region17
  $region16: #{dcrn_forward.6} parent=0 // pred_region
    _
  $region17: #{dcrn_forward.6} parent=0 // pred_fallthru
    _
  // Predicated region
  $region18: #{dcrn_forward.6} parent=0 // pred_check
    _
  $region19: #{dcrn_forward.6} parent=0 // pred_check_branch
    %30 = sbr.rel (0) target = $region21
  $region20: #{dcrn_forward.6} parent=0 // pred_region
    _
  $region21: #{dcrn_forward.6} parent=0 // pred_fallthru
    _
  // Predicated region
  $region22: #{dcrn_forward.6} parent=0 // pred_check
    _
  $region23: #{dcrn_forward.6} parent=0 // pred_check_branch
    %32 = sbr.rel (0) target = $region25
  $region24: #{dcrn_forward.6} parent=0 // pred_region
    _
  $region25: #{dcrn_forward.6} parent=0 // pred_fallthru
    _
  // Predicated region
  $region26: #{dcrn_forward.6} parent=0 // pred_check
    _
  $region27: #{dcrn_forward.6} parent=0 // pred_check_branch
    %34 = sbr.rel (0) target = $region29
  $region28: #{dcrn_forward.6} parent=0 // pred_region
    _
  $region29: #{dcrn_forward.6} parent=0 // pred_fallthru
    _
  %v35 = vld [vmem:[%s0] sm:$0xff]
  %v36 = vld [vmem:[%s0 + $0x8] sm:$0xff]
  %v37 = vld [vmem:[%s0 + $0x10] sm:$0xff]
  %v38 = vld [vmem:[%s0 + $0x18] sm:$0xff]
  %v39 = vld [vmem:[%s0 + $0x20] sm:$0xff]
  %v40 = vld [vmem:[%s0 + $0x28] sm:$0xff]
  %v41 = vld [vmem:[%s0 + $0x30] sm:$0xff]
  %v42 = vld [vmem:[%s0 + $0x38] sm:$0xff]
  %v43 = vld [vmem:[%s2] sm:$0xff]
  %v44 = vld [vmem:[%s2 + $0x8] sm:$0xff]
  %v45 = vld [vmem:[%s2 + $0x10] sm:$0xff]
  %v46 = vld [vmem:[%s2 + $0x18] sm:$0xff]
  %v47 = vld [vmem:[%s2 + $0x20] sm:$0xff]
  %v48 = vld [vmem:[%s2 + $0x28] sm:$0xff]
  %v49 = vld [vmem:[%s2 + $0x30] sm:$0xff]
  %v50 = vld [vmem:[%s2 + $0x38] sm:$0xff]
  %v51 = vld [vmem:[%s4] sm:$0xff]
  %v52 = vld [vmem:[%s4 + $0x8] sm:$0xff]
  %v53 = vld [vmem:[%s4 + $0x10] sm:$0xff]
  %v54 = vld [vmem:[%s4 + $0x18] sm:$0xff]
  %vm55 = vcmask 261120
  %v57 = vsel %vm55, %v35, 0
  %v60 = vsel %vm55, %v36, 0
  %v63 = vsel %vm55, %v37, 0
  %v66 = vsel %vm55, %v38, 0
  %v69 = vsel %vm55, %v39, 0
  %v72 = vsel %vm55, %v40, 0
  %v75 = vsel %vm55, %v41, 0
  %v78 = vsel %vm55, %v42, 0
  %80 = vmatpush.msra.mxu0 0.0
  %81 = vmatpush.msra.mxu0 0.0
  %82 = vmatpush.msra.mxu0 0.0
  %83 = vmatpush.msra.mxu0 0.0
  %84 = vmatpush.msra.mxu0 0.0
  %85 = vmatpush.msra.mxu0 0.0
  %86 = vmatpush.msra.mxu0 0.0
  %87 = vmatpush.msra.mxu0 0.0
  %88 = vmatpush.msra.mxu0 0.0
  %89 = vmatpush.msra.mxu0 0.0
  %90 = vmatpush.msra.mxu0 0.0
  %91 = vmatpush.msra.mxu0 0.0
  %92 = vmatpush.msra.mxu0 %v54
  %93 = vmatpush.msra.mxu0 %v53
  %94 = vmatpush.msra.mxu0 %v52
  %95 = vmatpush.msra.mxu0 %v51
  %96 = vmatmul.f32.gmra.mxu0 %v57
  %v97 = vpop.f32.mrf.mxu0
  %v98 = vadd.f32 0.0, %v97
  %99 = vmatmul.f32.gmra.mxu0 %v60
  %v100 = vpop.f32.mrf.mxu0
  %v101 = vadd.f32 0.0, %v100
  %102 = vmatmul.f32.gmra.mxu0 %v63
  %v103 = vpop.f32.mrf.mxu0
  %v104 = vadd.f32 0.0, %v103
  %105 = vmatmul.f32.gmra.mxu0 %v66
  %v106 = vpop.f32.mrf.mxu0
  %v107 = vadd.f32 0.0, %v106
  %108 = vmatmul.f32.gmra.mxu0 %v69
  %v109 = vpop.f32.mrf.mxu0
  %v110 = vadd.f32 0.0, %v109
  %111 = vmatmul.f32.gmra.mxu0 %v72
  %v112 = vpop.f32.mrf.mxu0
  %v113 = vadd.f32 0.0, %v112
  %114 = vmatmul.f32.gmra.mxu0 %v75
  %v115 = vpop.f32.mrf.mxu0
  %v116 = vadd.f32 0.0, %v115
  %117 = vmatmul.f32.gmra.mxu0 %v78
  %v118 = vpop.f32.mrf.mxu0
  %v119 = vadd.f32 0.0, %v118
  %120 = vdwg.mxu0
  %v121 = vtanh.pop %v98
  %v122 = vtanh.pop %v101
  %v123 = vtanh.pop %v104
  %v124 = vtanh.pop %v107
  %v125 = vtanh.pop %v110
  %v126 = vtanh.pop %v113
  %v127 = vtanh.pop %v116
  %v128 = vtanh.pop %v119
  %vm129 = vcmask 523264
  %v131 = vsel %vm129, %v43, 0
  %v134 = vsel %vm129, %v44, 0
  %v137 = vsel %vm129, %v45, 0
  %v140 = vsel %vm129, %v46, 0
  %v143 = vsel %vm129, %v47, 0
  %v146 = vsel %vm129, %v48, 0
  %v149 = vsel %vm129, %v49, 0
  %v152 = vsel %vm129, %v50, 0
  %154 = vmatpush.msra.mxu0 0.0
  %155 = vmatpush.msra.mxu0 0.0
  %156 = vmatpush.msra.mxu0 0.0
  %157 = vmatpush.msra.mxu0 0.0
  %158 = vmatpush.msra.mxu0 0.0
  %159 = vmatpush.msra.mxu0 0.0
  %160 = vmatpush.msra.mxu0 0.0
  %161 = vmatpush.msra.mxu0 0.0
  %162 = vmatpush.msra.mxu0 %v128
  %163 = vmatpush.msra.mxu0 %v127
  %164 = vmatpush.msra.mxu0 %v126
  %165 = vmatpush.msra.mxu0 %v125
  %166 = vmatpush.msra.mxu0 %v124
  %167 = vmatpush.msra.mxu0 %v123
  %168 = vmatpush.msra.mxu0 %v122
  %169 = vmatpush.msra.mxu0 %v121
  %170 = vmatmul.f32.gmra.mxu0 %v131
  %v171 = vpop.f32.mrf.mxu0
  %v172 = vadd.f32 0.0, %v171
  %173 = vmatmul.f32.gmra.mxu0 %v134
  %v174 = vpop.f32.mrf.mxu0
  %v175 = vadd.f32 0.0, %v174
  %176 = vmatmul.f32.gmra.mxu0 %v137
  %v177 = vpop.f32.mrf.mxu0
  %v178 = vadd.f32 0.0, %v177
  %179 = vmatmul.f32.gmra.mxu0 %v140
  %v180 = vpop.f32.mrf.mxu0
  %v181 = vadd.f32 0.0, %v180
  %182 = vmatmul.f32.gmra.mxu0 %v143
  %v183 = vpop.f32.mrf.mxu0
  %v184 = vadd.f32 0.0, %v183
  %185 = vmatmul.f32.gmra.mxu0 %v146
  %v186 = vpop.f32.mrf.mxu0
  %v187 = vadd.f32 0.0, %v186
  %188 = vmatmul.f32.gmra.mxu0 %v149
  %v189 = vpop.f32.mrf.mxu0
  %v190 = vadd.f32 0.0, %v189
  %191 = vmatmul.f32.gmra.mxu0 %v152
  %v192 = vpop.f32.mrf.mxu0
  %v193 = vadd.f32 0.0, %v192
  %194 = vdwg.mxu0
  %v195 = vld [vmem:[%s5] sm:$0xff]
  %v196 = vld [vmem:[%s5 + $0x8] sm:$0xff]
  %v197 = vld [vmem:[%s5 + $0x10] sm:$0xff]
  %v198 = vld [vmem:[%s5 + $0x18] sm:$0xff]
  %v200 = vsel %vm55, %v172, 0
  %v203 = vsel %vm55, %v175, 0
  %v206 = vsel %vm55, %v178, 0
  %v209 = vsel %vm55, %v181, 0
  %v212 = vsel %vm55, %v184, 0
  %v215 = vsel %vm55, %v187, 0
  %v218 = vsel %vm55, %v190, 0
  %v221 = vsel %vm55, %v193, 0
  %223 = vmatpush.msra.mxu0 0.0
  %224 = vmatpush.msra.mxu0 0.0
  %225 = vmatpush.msra.mxu0 0.0
  %226 = vmatpush.msra.mxu0 0.0
  %227 = vmatpush.msra.mxu0 0.0
  %228 = vmatpush.msra.mxu0 0.0
  %229 = vmatpush.msra.mxu0 0.0
  %230 = vmatpush.msra.mxu0 0.0
  %231 = vmatpush.msra.mxu0 0.0
  %232 = vmatpush.msra.mxu0 0.0
  %233 = vmatpush.msra.mxu0 0.0
  %234 = vmatpush.msra.mxu0 0.0
  %235 = vmatpush.msra.mxu0 %v198
  %236 = vmatpush.msra.mxu0 %v197
  %237 = vmatpush.msra.mxu0 %v196
  %238 = vmatpush.msra.mxu0 %v195
  %239 = vmatmul.f32.gmra.mxu0 %v200
  %v240 = vpop.f32.mrf.mxu0
  %v241 = vadd.f32 0.0, %v240
  %242 = vmatmul.f32.gmra.mxu0 %v203
  %v243 = vpop.f32.mrf.mxu0
  %v244 = vadd.f32 0.0, %v243
  %245 = vmatmul.f32.gmra.mxu0 %v206
  %v246 = vpop.f32.mrf.mxu0
  %v247 = vadd.f32 0.0, %v246
  %248 = vmatmul.f32.gmra.mxu0 %v209
  %v249 = vpop.f32.mrf.mxu0
  %v250 = vadd.f32 0.0, %v249
  %251 = vmatmul.f32.gmra.mxu0 %v212
  %v252 = vpop.f32.mrf.mxu0
  %v253 = vadd.f32 0.0, %v252
  %254 = vmatmul.f32.gmra.mxu0 %v215
  %v255 = vpop.f32.mrf.mxu0
  %v256 = vadd.f32 0.0, %v255
  %257 = vmatmul.f32.gmra.mxu0 %v218
  %v258 = vpop.f32.mrf.mxu0
  %v259 = vadd.f32 0.0, %v258
  %260 = vmatmul.f32.gmra.mxu0 %v221
  %v261 = vpop.f32.mrf.mxu0
  %v262 = vadd.f32 0.0, %v261
  %263 = vdwg.mxu0
  %v264 = vtanh.pop %v241
  %v265 = vtanh.pop %v244
  %v266 = vtanh.pop %v247
  %v267 = vtanh.pop %v250
  %v268 = vtanh.pop %v253
  %v269 = vtanh.pop %v256
  %v270 = vtanh.pop %v259
  %v271 = vtanh.pop %v262
  %272 = vmatpush.msra.mxu0 0.0
  %273 = vmatpush.msra.mxu0 0.0
  %274 = vmatpush.msra.mxu0 0.0
  %275 = vmatpush.msra.mxu0 0.0
  %276 = vmatpush.msra.mxu0 0.0
  %277 = vmatpush.msra.mxu0 0.0
  %278 = vmatpush.msra.mxu0 0.0
  %279 = vmatpush.msra.mxu0 0.0
  %280 = vmatpush.msra.mxu0 %v271
  %281 = vmatpush.msra.mxu0 %v270
  %282 = vmatpush.msra.mxu0 %v269
  %283 = vmatpush.msra.mxu0 %v268
  %284 = vmatpush.msra.mxu0 %v267
  %285 = vmatpush.msra.mxu0 %v266
  %286 = vmatpush.msra.mxu0 %v265
  %287 = vmatpush.msra.mxu0 %v264
  %288 = vmatmul.f32.gmra.mxu0 %v131
  %v289 = vpop.f32.mrf.mxu0
  %v290 = vadd.f32 0.0, %v289
  %291 = vmatmul.f32.gmra.mxu0 %v134
  %v292 = vpop.f32.mrf.mxu0
  %v293 = vadd.f32 0.0, %v292
  %294 = vmatmul.f32.gmra.mxu0 %v137
  %v295 = vpop.f32.mrf.mxu0
  %v296 = vadd.f32 0.0, %v295
  %297 = vmatmul.f32.gmra.mxu0 %v140
  %v298 = vpop.f32.mrf.mxu0
  %v299 = vadd.f32 0.0, %v298
  %300 = vmatmul.f32.gmra.mxu0 %v143
  %v301 = vpop.f32.mrf.mxu0
  %v302 = vadd.f32 0.0, %v301
  %303 = vmatmul.f32.gmra.mxu0 %v146
  %v304 = vpop.f32.mrf.mxu0
  %v305 = vadd.f32 0.0, %v304
  %306 = vmatmul.f32.gmra.mxu0 %v149
  %v307 = vpop.f32.mrf.mxu0
  %v308 = vadd.f32 0.0, %v307
  %309 = vmatmul.f32.gmra.mxu0 %v152
  %v310 = vpop.f32.mrf.mxu0
  %v311 = vadd.f32 0.0, %v310
  %312 = vdwg.mxu0
  %v313 = vld [vmem:[%s6] sm:$0xff]
  %v314 = vld [vmem:[%s6 + $0x8] sm:$0xff]
  %vm315 = vcmask 130048
  %v317 = vsel %vm315, %v290, 0
  %v320 = vsel %vm315, %v293, 0
  %v323 = vsel %vm315, %v296, 0
  %v326 = vsel %vm315, %v299, 0
  %v329 = vsel %vm315, %v302, 0
  %v332 = vsel %vm315, %v305, 0
  %v335 = vsel %vm315, %v308, 0
  %v338 = vsel %vm315, %v311, 0
  %340 = vmatpush.msra.mxu0 0.0
  %341 = vmatpush.msra.mxu0 0.0
  %342 = vmatpush.msra.mxu0 0.0
  %343 = vmatpush.msra.mxu0 0.0
  %344 = vmatpush.msra.mxu0 0.0
  %345 = vmatpush.msra.mxu0 0.0
  %346 = vmatpush.msra.mxu0 0.0
  %347 = vmatpush.msra.mxu0 0.0
  %348 = vmatpush.msra.mxu0 0.0
  %349 = vmatpush.msra.mxu0 0.0
  %350 = vmatpush.msra.mxu0 0.0
  %351 = vmatpush.msra.mxu0 0.0
  %352 = vmatpush.msra.mxu0 0.0
  %353 = vmatpush.msra.mxu0 0.0
  %354 = vmatpush.msra.mxu0 %v314
  %355 = vmatpush.msra.mxu0 %v313
  %356 = vmatmul.f32.gmra.mxu0 %v317
  %v357 = vpop.f32.mrf.mxu0
  %v358 = vadd.f32 0.0, %v357
  %359 = vmatmul.f32.gmra.mxu0 %v320
  %v360 = vpop.f32.mrf.mxu0
  %v361 = vadd.f32 0.0, %v360
  %362 = vmatmul.f32.gmra.mxu0 %v323
  %v363 = vpop.f32.mrf.mxu0
  %v364 = vadd.f32 0.0, %v363
  %365 = vmatmul.f32.gmra.mxu0 %v326
  %v366 = vpop.f32.mrf.mxu0
  %v367 = vadd.f32 0.0, %v366
  %368 = vmatmul.f32.gmra.mxu0 %v329
  %v369 = vpop.f32.mrf.mxu0
  %v370 = vadd.f32 0.0, %v369
  %371 = vmatmul.f32.gmra.mxu0 %v332
  %v372 = vpop.f32.mrf.mxu0
  %v373 = vadd.f32 0.0, %v372
  %374 = vmatmul.f32.gmra.mxu0 %v335
  %v375 = vpop.f32.mrf.mxu0
  %v376 = vadd.f32 0.0, %v375
  %377 = vmatmul.f32.gmra.mxu0 %v338
  %v378 = vpop.f32.mrf.mxu0
  %v379 = vadd.f32 0.0, %v378
  %380 = vdwg.mxu0
  %381 = vmatpush.msra.mxu0 0.0
  %382 = vmatpush.msra.mxu0 0.0
  %383 = vmatpush.msra.mxu0 0.0
  %384 = vmatpush.msra.mxu0 0.0
  %385 = vmatpush.msra.mxu0 0.0
  %386 = vmatpush.msra.mxu0 0.0
  %387 = vmatpush.msra.mxu0 0.0
  %388 = vmatpush.msra.mxu0 0.0
  %389 = vmatpush.msra.mxu0 %v379
  %390 = vmatpush.msra.mxu0 %v376
  %391 = vmatpush.msra.mxu0 %v373
  %392 = vmatpush.msra.mxu0 %v370
  %393 = vmatpush.msra.mxu0 %v367
  %394 = vmatpush.msra.mxu0 %v364
  %395 = vmatpush.msra.mxu0 %v361
  %396 = vmatpush.msra.mxu0 %v358
  %397 = vmatmul.f32.gmra.mxu0 %v131
  %v398 = vpop.f32.mrf.mxu0
  %v399 = vadd.f32 0.0, %v398
  %400 = vmatmul.f32.gmra.mxu0 %v134
  %v401 = vpop.f32.mrf.mxu0
  %v402 = vadd.f32 0.0, %v401
  %403 = vmatmul.f32.gmra.mxu0 %v137
  %v404 = vpop.f32.mrf.mxu0
  %v405 = vadd.f32 0.0, %v404
  %406 = vmatmul.f32.gmra.mxu0 %v140
  %v407 = vpop.f32.mrf.mxu0
  %v408 = vadd.f32 0.0, %v407
  %409 = vmatmul.f32.gmra.mxu0 %v143
  %v410 = vpop.f32.mrf.mxu0
  %v411 = vadd.f32 0.0, %v410
  %412 = vmatmul.f32.gmra.mxu0 %v146
  %v413 = vpop.f32.mrf.mxu0
  %v414 = vadd.f32 0.0, %v413
  %415 = vmatmul.f32.gmra.mxu0 %v149
  %v416 = vpop.f32.mrf.mxu0
  %v417 = vadd.f32 0.0, %v416
  %418 = vmatmul.f32.gmra.mxu0 %v152
  %v419 = vpop.f32.mrf.mxu0
  %v420 = vadd.f32 0.0, %v419
  %421 = vdwg.mxu0
  %vm422 = vcmask 64512
  %v424 = vsel %vm422, %v399, 0
  %v427 = vsel %vm422, %v402, 0
  %v430 = vsel %vm422, %v405, 0
  %v433 = vsel %vm422, %v408, 0
  %v436 = vsel %vm422, %v411, 0
  %v439 = vsel %vm422, %v414, 0
  %v442 = vsel %vm422, %v417, 0
  %v445 = vsel %vm422, %v420, 0
  %447 = vmatpush.xpose.msra.mxu0 0.0
  %448 = vmatpush.xpose.msra.mxu0 0.0
  %449 = vmatpush.xpose.msra.mxu0 0.0
  %450 = vmatpush.xpose.msra.mxu0 0.0
  %451 = vmatpush.xpose.msra.mxu0 0.0
  %452 = vmatpush.xpose.msra.mxu0 0.0
  %453 = vmatpush.xpose.msra.mxu0 0.0
  %454 = vmatpush.xpose.msra.mxu0 0.0
  %455 = vmatpush.xpose.msra.mxu0 %v445
  %456 = vmatpush.xpose.msra.mxu0 %v442
  %457 = vmatpush.xpose.msra.mxu0 %v439
  %458 = vmatpush.xpose.msra.mxu0 %v436
  %459 = vmatpush.xpose.msra.mxu0 %v433
  %460 = vmatpush.xpose.msra.mxu0 %v430
  %461 = vmatpush.xpose.msra.mxu0 %v427
  %462 = vmatpush.xpose.msra.mxu0 %v424
  %463 = vmatmul.f32.gmra.mxu0 %v424
  %v464 = vpop.f32.mrf.mxu0
  %v465 = vadd.f32 0.0, %v464
  %466 = vmatmul.f32.gmra.mxu0 %v427
  %v467 = vpop.f32.mrf.mxu0
  %v468 = vadd.f32 0.0, %v467
  %469 = vmatmul.f32.gmra.mxu0 %v430
  %v470 = vpop.f32.mrf.mxu0
  %v471 = vadd.f32 0.0, %v470
  %472 = vmatmul.f32.gmra.mxu0 %v433
  %v473 = vpop.f32.mrf.mxu0
  %v474 = vadd.f32 0.0, %v473
  %475 = vmatmul.f32.gmra.mxu0 %v436
  %v476 = vpop.f32.mrf.mxu0
  %v477 = vadd.f32 0.0, %v476
  %478 = vmatmul.f32.gmra.mxu0 %v439
  %v479 = vpop.f32.mrf.mxu0
  %v480 = vadd.f32 0.0, %v479
  %481 = vmatmul.f32.gmra.mxu0 %v442
  %v482 = vpop.f32.mrf.mxu0
  %v483 = vadd.f32 0.0, %v482
  %484 = vmatmul.f32.gmra.mxu0 %v445
  %v485 = vpop.f32.mrf.mxu0
  %v486 = vadd.f32 0.0, %v485
  %487 = vdwg.mxu0
  %v488 = vxor.u32 %v465, 2147483648
  %v489 = vxor.u32 %v468, 2147483648
  %v490 = vxor.u32 %v471, 2147483648
  %v491 = vxor.u32 %v474, 2147483648
  %v492 = vxor.u32 %v477, 2147483648
  %v493 = vxor.u32 %v480, 2147483648
  %v494 = vxor.u32 %v483, 2147483648
  %v495 = vxor.u32 %v486, 2147483648
  %v496 = vmul.f32 %v488, 1.442695
  %v497 = vpow.pop %v496
  %v498 = vmul.f32 %v489, 1.442695
  %v499 = vpow.pop %v498
  %v500 = vmul.f32 %v490, 1.442695
  %v501 = vpow.pop %v500
  %v502 = vmul.f32 %v491, 1.442695
  %v503 = vpow.pop %v502
  %v504 = vmul.f32 %v492, 1.442695
  %v505 = vpow.pop %v504
  %v506 = vmul.f32 %v493, 1.442695
  %v507 = vpow.pop %v506
  %v508 = vmul.f32 %v494, 1.442695
  %v509 = vpow.pop %v508
  %v510 = vmul.f32 %v495, 1.442695
  %v511 = vpow.pop %v510
  %v512 = vadd.f32 %v497, 1.0
  %v513 = vadd.f32 %v499, 1.0
  %v514 = vadd.f32 %v501, 1.0
  %v515 = vadd.f32 %v503, 1.0
  %v516 = vadd.f32 %v505, 1.0
  %v517 = vadd.f32 %v507, 1.0
  %v518 = vadd.f32 %v509, 1.0
  %v519 = vadd.f32 %v511, 1.0
  %v520 = vrcp.pop %v512
  %v521 = vmul.f32 %v512, %v520
  %v522 = vsub.f32 1.0, %v521
  %v523 = vmul.f32 %v520, %v522
  %v524 = vadd.f32 %v520, %v523
  %vm525 = vweird.f32 %v512
  %vm526 = vweird.f32 %v520
  %vm527 = vmor %vm525, %vm526
  %v528 = vsel %vm527, %v520, %v524
  %v529 = vand.u32 2147483647, %v512
  %vm530 = vcmp.eq.f32.partialorder %v529, 8.507059e+37
  %v531 = vand.u32 %v512, 2147483648
  %v532 = vor.u32 1.1754944e-38, %v531
  %v533 = vsel %vm530, %v532, %v528
  %v534 = vmul.f32 1.0, %v533
  %v535 = vrcp.pop %v513
  %v536 = vmul.f32 %v513, %v535
  %v537 = vsub.f32 1.0, %v536
  %v538 = vmul.f32 %v535, %v537
  %v539 = vadd.f32 %v535, %v538
  %vm540 = vweird.f32 %v513
  %vm541 = vweird.f32 %v535
  %vm542 = vmor %vm540, %vm541
  %v543 = vsel %vm542, %v535, %v539
  %v544 = vand.u32 2147483647, %v513
  %vm545 = vcmp.eq.f32.partialorder %v544, 8.507059e+37
  %v546 = vand.u32 %v513, 2147483648
  %v547 = vor.u32 1.1754944e-38, %v546
  %v548 = vsel %vm545, %v547, %v543
  %v549 = vmul.f32 1.0, %v548
  %v550 = vrcp.pop %v514
  %v551 = vmul.f32 %v514, %v550
  %v552 = vsub.f32 1.0, %v551
  %v553 = vmul.f32 %v550, %v552
  %v554 = vadd.f32 %v550, %v553
  %vm555 = vweird.f32 %v514
  %vm556 = vweird.f32 %v550
  %vm557 = vmor %vm555, %vm556
  %v558 = vsel %vm557, %v550, %v554
  %v559 = vand.u32 2147483647, %v514
  %vm560 = vcmp.eq.f32.partialorder %v559, 8.507059e+37
  %v561 = vand.u32 %v514, 2147483648
  %v562 = vor.u32 1.1754944e-38, %v561
  %v563 = vsel %vm560, %v562, %v558
  %v564 = vmul.f32 1.0, %v563
  %v565 = vrcp.pop %v515
  %v566 = vmul.f32 %v515, %v565
  %v567 = vsub.f32 1.0, %v566
  %v568 = vmul.f32 %v565, %v567
  %v569 = vadd.f32 %v565, %v568
  %vm570 = vweird.f32 %v515
  %vm571 = vweird.f32 %v565
  %vm572 = vmor %vm570, %vm571
  %v573 = vsel %vm572, %v565, %v569
  %v574 = vand.u32 2147483647, %v515
  %vm575 = vcmp.eq.f32.partialorder %v574, 8.507059e+37
  %v576 = vand.u32 %v515, 2147483648
  %v577 = vor.u32 1.1754944e-38, %v576
  %v578 = vsel %vm575, %v577, %v573
  %v579 = vmul.f32 1.0, %v578
  %v580 = vrcp.pop %v516
  %v581 = vmul.f32 %v516, %v580
  %v582 = vsub.f32 1.0, %v581
  %v583 = vmul.f32 %v580, %v582
  %v584 = vadd.f32 %v580, %v583
  %vm585 = vweird.f32 %v516
  %vm586 = vweird.f32 %v580
  %vm587 = vmor %vm585, %vm586
  %v588 = vsel %vm587, %v580, %v584
  %v589 = vand.u32 2147483647, %v516
  %vm590 = vcmp.eq.f32.partialorder %v589, 8.507059e+37
  %v591 = vand.u32 %v516, 2147483648
  %v592 = vor.u32 1.1754944e-38, %v591
  %v593 = vsel %vm590, %v592, %v588
  %v594 = vmul.f32 1.0, %v593
  %v595 = vrcp.pop %v517
  %v596 = vmul.f32 %v517, %v595
  %v597 = vsub.f32 1.0, %v596
  %v598 = vmul.f32 %v595, %v597
  %v599 = vadd.f32 %v595, %v598
  %vm600 = vweird.f32 %v517
  %vm601 = vweird.f32 %v595
  %vm602 = vmor %vm600, %vm601
  %v603 = vsel %vm602, %v595, %v599
  %v604 = vand.u32 2147483647, %v517
  %vm605 = vcmp.eq.f32.partialorder %v604, 8.507059e+37
  %v606 = vand.u32 %v517, 2147483648
  %v607 = vor.u32 1.1754944e-38, %v606
  %v608 = vsel %vm605, %v607, %v603
  %v609 = vmul.f32 1.0, %v608
  %v610 = vrcp.pop %v518
  %v611 = vmul.f32 %v518, %v610
  %v612 = vsub.f32 1.0, %v611
  %v613 = vmul.f32 %v610, %v612
  %v614 = vadd.f32 %v610, %v613
  %vm615 = vweird.f32 %v518
  %vm616 = vweird.f32 %v610
  %vm617 = vmor %vm615, %vm616
  %v618 = vsel %vm617, %v610, %v614
  %v619 = vand.u32 2147483647, %v518
  %vm620 = vcmp.eq.f32.partialorder %v619, 8.507059e+37
  %v621 = vand.u32 %v518, 2147483648
  %v622 = vor.u32 1.1754944e-38, %v621
  %v623 = vsel %vm620, %v622, %v618
  %v624 = vmul.f32 1.0, %v623
  %v625 = vrcp.pop %v519
  %v626 = vmul.f32 %v519, %v625
  %v627 = vsub.f32 1.0, %v626
  %v628 = vmul.f32 %v625, %v627
  %v629 = vadd.f32 %v625, %v628
  %vm630 = vweird.f32 %v519
  %vm631 = vweird.f32 %v625
  %vm632 = vmor %vm630, %vm631
  %v633 = vsel %vm632, %v625, %v629
  %v634 = vand.u32 2147483647, %v519
  %vm635 = vcmp.eq.f32.partialorder %v634, 8.507059e+37
  %v636 = vand.u32 %v519, 2147483648
  %v637 = vor.u32 1.1754944e-38, %v636
  %v638 = vsel %vm635, %v637, %v633
  %v639 = vmul.f32 1.0, %v638
  %v640 = vld [vmem:[%s1] sm:$0xff]
  %v641 = vld [vmem:[%s1 + $0x8] sm:$0xff]
  %v642 = vld [vmem:[%s1 + $0x10] sm:$0xff]
  %v643 = vld [vmem:[%s1 + $0x18] sm:$0xff]
  %v644 = vld [vmem:[%s1 + $0x20] sm:$0xff]
  %v645 = vld [vmem:[%s1 + $0x28] sm:$0xff]
  %v646 = vld [vmem:[%s1 + $0x30] sm:$0xff]
  %v647 = vld [vmem:[%s1 + $0x38] sm:$0xff]
  %v648 = vld [vmem:[%s3] sm:$0xff]
  %v649 = vld [vmem:[%s3 + $0x8] sm:$0xff]
  %v650 = vld [vmem:[%s3 + $0x10] sm:$0xff]
  %v651 = vld [vmem:[%s3 + $0x18] sm:$0xff]
  %v652 = vld [vmem:[%s3 + $0x20] sm:$0xff]
  %v653 = vld [vmem:[%s3 + $0x28] sm:$0xff]
  %v654 = vld [vmem:[%s3 + $0x30] sm:$0xff]
  %v655 = vld [vmem:[%s3 + $0x38] sm:$0xff]
  %v657 = vsel %vm55, %v640, 0
  %v660 = vsel %vm55, %v641, 0
  %v663 = vsel %vm55, %v642, 0
  %v666 = vsel %vm55, %v643, 0
  %v669 = vsel %vm55, %v644, 0
  %v672 = vsel %vm55, %v645, 0
  %v675 = vsel %vm55, %v646, 0
  %v678 = vsel %vm55, %v647, 0
  %680 = vmatpush.msra.mxu0 0.0
  %681 = vmatpush.msra.mxu0 0.0
  %682 = vmatpush.msra.mxu0 0.0
  %683 = vmatpush.msra.mxu0 0.0
  %684 = vmatpush.msra.mxu0 0.0
  %685 = vmatpush.msra.mxu0 0.0
  %686 = vmatpush.msra.mxu0 0.0
  %687 = vmatpush.msra.mxu0 0.0
  %688 = vmatpush.msra.mxu0 0.0
  %689 = vmatpush.msra.mxu0 0.0
  %690 = vmatpush.msra.mxu0 0.0
  %691 = vmatpush.msra.mxu0 0.0
  %692 = vmatpush.msra.mxu0 %v54
  %693 = vmatpush.msra.mxu0 %v53
  %694 = vmatpush.msra.mxu0 %v52
  %695 = vmatpush.msra.mxu0 %v51
  %696 = vmatmul.f32.gmra.mxu0 %v657
  %v697 = vpop.f32.mrf.mxu0
  %v698 = vadd.f32 0.0, %v697
  %699 = vmatmul.f32.gmra.mxu0 %v660
  %v700 = vpop.f32.mrf.mxu0
  %v701 = vadd.f32 0.0, %v700
  %702 = vmatmul.f32.gmra.mxu0 %v663
  %v703 = vpop.f32.mrf.mxu0
  %v704 = vadd.f32 0.0, %v703
  %705 = vmatmul.f32.gmra.mxu0 %v666
  %v706 = vpop.f32.mrf.mxu0
  %v707 = vadd.f32 0.0, %v706
  %708 = vmatmul.f32.gmra.mxu0 %v669
  %v709 = vpop.f32.mrf.mxu0
  %v710 = vadd.f32 0.0, %v709
  %711 = vmatmul.f32.gmra.mxu0 %v672
  %v712 = vpop.f32.mrf.mxu0
  %v713 = vadd.f32 0.0, %v712
  %714 = vmatmul.f32.gmra.mxu0 %v675
  %v715 = vpop.f32.mrf.mxu0
  %v716 = vadd.f32 0.0, %v715
  %717 = vmatmul.f32.gmra.mxu0 %v678
  %v718 = vpop.f32.mrf.mxu0
  %v719 = vadd.f32 0.0, %v718
  %720 = vdwg.mxu0
  %v721 = vtanh.pop %v698
  %v722 = vtanh.pop %v701
  %v723 = vtanh.pop %v704
  %v724 = vtanh.pop %v707
  %v725 = vtanh.pop %v710
  %v726 = vtanh.pop %v713
  %v727 = vtanh.pop %v716
  %v728 = vtanh.pop %v719
  %v730 = vsel %vm129, %v648, 0
  %v733 = vsel %vm129, %v649, 0
  %v736 = vsel %vm129, %v650, 0
  %v739 = vsel %vm129, %v651, 0
  %v742 = vsel %vm129, %v652, 0
  %v745 = vsel %vm129, %v653, 0
  %v748 = vsel %vm129, %v654, 0
  %v751 = vsel %vm129, %v655, 0
  %753 = vmatpush.msra.mxu0 0.0
  %754 = vmatpush.msra.mxu0 0.0
  %755 = vmatpush.msra.mxu0 0.0
  %756 = vmatpush.msra.mxu0 0.0
  %757 = vmatpush.msra.mxu0 0.0
  %758 = vmatpush.msra.mxu0 0.0
  %759 = vmatpush.msra.mxu0 0.0
  %760 = vmatpush.msra.mxu0 0.0
  %761 = vmatpush.msra.mxu0 %v728
  %762 = vmatpush.msra.mxu0 %v727
  %763 = vmatpush.msra.mxu0 %v726
  %764 = vmatpush.msra.mxu0 %v725
  %765 = vmatpush.msra.mxu0 %v724
  %766 = vmatpush.msra.mxu0 %v723
  %767 = vmatpush.msra.mxu0 %v722
  %768 = vmatpush.msra.mxu0 %v721
  %769 = vmatmul.f32.gmra.mxu0 %v730
  %v770 = vpop.f32.mrf.mxu0
  %v771 = vadd.f32 0.0, %v770
  %772 = vmatmul.f32.gmra.mxu0 %v733
  %v773 = vpop.f32.mrf.mxu0
  %v774 = vadd.f32 0.0, %v773
  %775 = vmatmul.f32.gmra.mxu0 %v736
  %v776 = vpop.f32.mrf.mxu0
  %v777 = vadd.f32 0.0, %v776
  %778 = vmatmul.f32.gmra.mxu0 %v739
  %v779 = vpop.f32.mrf.mxu0
  %v780 = vadd.f32 0.0, %v779
  %781 = vmatmul.f32.gmra.mxu0 %v742
  %v782 = vpop.f32.mrf.mxu0
  %v783 = vadd.f32 0.0, %v782
  %784 = vmatmul.f32.gmra.mxu0 %v745
  %v785 = vpop.f32.mrf.mxu0
  %v786 = vadd.f32 0.0, %v785
  %787 = vmatmul.f32.gmra.mxu0 %v748
  %v788 = vpop.f32.mrf.mxu0
  %v789 = vadd.f32 0.0, %v788
  %790 = vmatmul.f32.gmra.mxu0 %v751
  %v791 = vpop.f32.mrf.mxu0
  %v792 = vadd.f32 0.0, %v791
  %793 = vdwg.mxu0
  %v795 = vsel %vm55, %v771, 0
  %v798 = vsel %vm55, %v774, 0
  %v801 = vsel %vm55, %v777, 0
  %v804 = vsel %vm55, %v780, 0
  %v807 = vsel %vm55, %v783, 0
  %v810 = vsel %vm55, %v786, 0
  %v813 = vsel %vm55, %v789, 0
  %v816 = vsel %vm55, %v792, 0
  %818 = vmatpush.msra.mxu0 0.0
  %819 = vmatpush.msra.mxu0 0.0
  %820 = vmatpush.msra.mxu0 0.0
  %821 = vmatpush.msra.mxu0 0.0
  %822 = vmatpush.msra.mxu0 0.0
  %823 = vmatpush.msra.mxu0 0.0
  %824 = vmatpush.msra.mxu0 0.0
  %825 = vmatpush.msra.mxu0 0.0
  %826 = vmatpush.msra.mxu0 0.0
  %827 = vmatpush.msra.mxu0 0.0
  %828 = vmatpush.msra.mxu0 0.0
  %829 = vmatpush.msra.mxu0 0.0
  %830 = vmatpush.msra.mxu0 %v198
  %831 = vmatpush.msra.mxu0 %v197
  %832 = vmatpush.msra.mxu0 %v196
  %833 = vmatpush.msra.mxu0 %v195
  %834 = vmatmul.f32.gmra.mxu0 %v795
  %v835 = vpop.f32.mrf.mxu0
  %v836 = vadd.f32 0.0, %v835
  %837 = vmatmul.f32.gmra.mxu0 %v798
  %v838 = vpop.f32.mrf.mxu0
  %v839 = vadd.f32 0.0, %v838
  %840 = vmatmul.f32.gmra.mxu0 %v801
  %v841 = vpop.f32.mrf.mxu0
  %v842 = vadd.f32 0.0, %v841
  %843 = vmatmul.f32.gmra.mxu0 %v804
  %v844 = vpop.f32.mrf.mxu0
  %v845 = vadd.f32 0.0, %v844
  %846 = vmatmul.f32.gmra.mxu0 %v807
  %v847 = vpop.f32.mrf.mxu0
  %v848 = vadd.f32 0.0, %v847
  %849 = vmatmul.f32.gmra.mxu0 %v810
  %v850 = vpop.f32.mrf.mxu0
  %v851 = vadd.f32 0.0, %v850
  %852 = vmatmul.f32.gmra.mxu0 %v813
  %v853 = vpop.f32.mrf.mxu0
  %v854 = vadd.f32 0.0, %v853
  %855 = vmatmul.f32.gmra.mxu0 %v816
  %v856 = vpop.f32.mrf.mxu0
  %v857 = vadd.f32 0.0, %v856
  %858 = vdwg.mxu0
  %v859 = vtanh.pop %v836
  %v860 = vtanh.pop %v839
  %v861 = vtanh.pop %v842
  %v862 = vtanh.pop %v845
  %v863 = vtanh.pop %v848
  %v864 = vtanh.pop %v851
  %v865 = vtanh.pop %v854
  %v866 = vtanh.pop %v857
  %867 = vmatpush.msra.mxu0 0.0
  %868 = vmatpush.msra.mxu0 0.0
  %869 = vmatpush.msra.mxu0 0.0
  %870 = vmatpush.msra.mxu0 0.0
  %871 = vmatpush.msra.mxu0 0.0
  %872 = vmatpush.msra.mxu0 0.0
  %873 = vmatpush.msra.mxu0 0.0
  %874 = vmatpush.msra.mxu0 0.0
  %875 = vmatpush.msra.mxu0 %v866
  %876 = vmatpush.msra.mxu0 %v865
  %877 = vmatpush.msra.mxu0 %v864
  %878 = vmatpush.msra.mxu0 %v863
  %879 = vmatpush.msra.mxu0 %v862
  %880 = vmatpush.msra.mxu0 %v861
  %881 = vmatpush.msra.mxu0 %v860
  %882 = vmatpush.msra.mxu0 %v859
  %883 = vmatmul.f32.gmra.mxu0 %v730
  %v884 = vpop.f32.mrf.mxu0
  %v885 = vadd.f32 0.0, %v884
  %886 = vmatmul.f32.gmra.mxu0 %v733
  %v887 = vpop.f32.mrf.mxu0
  %v888 = vadd.f32 0.0, %v887
  %889 = vmatmul.f32.gmra.mxu0 %v736
  %v890 = vpop.f32.mrf.mxu0
  %v891 = vadd.f32 0.0, %v890
  %892 = vmatmul.f32.gmra.mxu0 %v739
  %v893 = vpop.f32.mrf.mxu0
  %v894 = vadd.f32 0.0, %v893
  %895 = vmatmul.f32.gmra.mxu0 %v742
  %v896 = vpop.f32.mrf.mxu0
  %v897 = vadd.f32 0.0, %v896
  %898 = vmatmul.f32.gmra.mxu0 %v745
  %v899 = vpop.f32.mrf.mxu0
  %v900 = vadd.f32 0.0, %v899
  %901 = vmatmul.f32.gmra.mxu0 %v748
  %v902 = vpop.f32.mrf.mxu0
  %v903 = vadd.f32 0.0, %v902
  %904 = vmatmul.f32.gmra.mxu0 %v751
  %v905 = vpop.f32.mrf.mxu0
  %v906 = vadd.f32 0.0, %v905
  %907 = vdwg.mxu0
  %v909 = vsel %vm315, %v885, 0
  %v912 = vsel %vm315, %v888, 0
  %v915 = vsel %vm315, %v891, 0
  %v918 = vsel %vm315, %v894, 0
  %v921 = vsel %vm315, %v897, 0
  %v924 = vsel %vm315, %v900, 0
  %v927 = vsel %vm315, %v903, 0
  %v930 = vsel %vm315, %v906, 0
  %932 = vmatpush.msra.mxu0 0.0
  %933 = vmatpush.msra.mxu0 0.0
  %934 = vmatpush.msra.mxu0 0.0
  %935 = vmatpush.msra.mxu0 0.0
  %936 = vmatpush.msra.mxu0 0.0
  %937 = vmatpush.msra.mxu0 0.0
  %938 = vmatpush.msra.mxu0 0.0
  %939 = vmatpush.msra.mxu0 0.0
  %940 = vmatpush.msra.mxu0 0.0
  %941 = vmatpush.msra.mxu0 0.0
  %942 = vmatpush.msra.mxu0 0.0
  %943 = vmatpush.msra.mxu0 0.0
  %944 = vmatpush.msra.mxu0 0.0
  %945 = vmatpush.msra.mxu0 0.0
  %946 = vmatpush.msra.mxu0 %v314
  %947 = vmatpush.msra.mxu0 %v313
  %948 = vmatmul.f32.gmra.mxu0 %v909
  %v949 = vpop.f32.mrf.mxu0
  %v950 = vadd.f32 0.0, %v949
  %951 = vmatmul.f32.gmra.mxu0 %v912
  %v952 = vpop.f32.mrf.mxu0
  %v953 = vadd.f32 0.0, %v952
  %954 = vmatmul.f32.gmra.mxu0 %v915
  %v955 = vpop.f32.mrf.mxu0
  %v956 = vadd.f32 0.0, %v955
  %957 = vmatmul.f32.gmra.mxu0 %v918
  %v958 = vpop.f32.mrf.mxu0
  %v959 = vadd.f32 0.0, %v958
  %960 = vmatmul.f32.gmra.mxu0 %v921
  %v961 = vpop.f32.mrf.mxu0
  %v962 = vadd.f32 0.0, %v961
  %963 = vmatmul.f32.gmra.mxu0 %v924
  %v964 = vpop.f32.mrf.mxu0
  %v965 = vadd.f32 0.0, %v964
  %966 = vmatmul.f32.gmra.mxu0 %v927
  %v967 = vpop.f32.mrf.mxu0
  %v968 = vadd.f32 0.0, %v967
  %969 = vmatmul.f32.gmra.mxu0 %v930
  %v970 = vpop.f32.mrf.mxu0
  %v971 = vadd.f32 0.0, %v970
  %972 = vdwg.mxu0
  %973 = vmatpush.msra.mxu0 0.0
  %974 = vmatpush.msra.mxu0 0.0
  %975 = vmatpush.msra.mxu0 0.0
  %976 = vmatpush.msra.mxu0 0.0
  %977 = vmatpush.msra.mxu0 0.0
  %978 = vmatpush.msra.mxu0 0.0
  %979 = vmatpush.msra.mxu0 0.0
  %980 = vmatpush.msra.mxu0 0.0
  %981 = vmatpush.msra.mxu0 %v971
  %982 = vmatpush.msra.mxu0 %v968
  %983 = vmatpush.msra.mxu0 %v965
  %984 = vmatpush.msra.mxu0 %v962
  %985 = vmatpush.msra.mxu0 %v959
  %986 = vmatpush.msra.mxu0 %v956
  %987 = vmatpush.msra.mxu0 %v953
  %988 = vmatpush.msra.mxu0 %v950
  %989 = vmatmul.f32.gmra.mxu0 %v730
  %v990 = vpop.f32.mrf.mxu0
  %v991 = vadd.f32 0.0, %v990
  %992 = vmatmul.f32.gmra.mxu0 %v733
  %v993 = vpop.f32.mrf.mxu0
  %v994 = vadd.f32 0.0, %v993
  %995 = vmatmul.f32.gmra.mxu0 %v736
  %v996 = vpop.f32.mrf.mxu0
  %v997 = vadd.f32 0.0, %v996
  %998 = vmatmul.f32.gmra.mxu0 %v739
  %v999 = vpop.f32.mrf.mxu0
  %v1000 = vadd.f32 0.0, %v999
  %1001 = vmatmul.f32.gmra.mxu0 %v742
  %v1002 = vpop.f32.mrf.mxu0
  %v1003 = vadd.f32 0.0, %v1002
  %1004 = vmatmul.f32.gmra.mxu0 %v745
  %v1005 = vpop.f32.mrf.mxu0
  %v1006 = vadd.f32 0.0, %v1005
  %1007 = vmatmul.f32.gmra.mxu0 %v748
  %v1008 = vpop.f32.mrf.mxu0
  %v1009 = vadd.f32 0.0, %v1008
  %1010 = vmatmul.f32.gmra.mxu0 %v751
  %v1011 = vpop.f32.mrf.mxu0
  %v1012 = vadd.f32 0.0, %v1011
  %1013 = vdwg.mxu0
  %v1015 = vsel %vm422, %v991, 0
  %v1018 = vsel %vm422, %v994, 0
  %v1021 = vsel %vm422, %v997, 0
  %v1024 = vsel %vm422, %v1000, 0
  %v1027 = vsel %vm422, %v1003, 0
  %v1030 = vsel %vm422, %v1006, 0
  %v1033 = vsel %vm422, %v1009, 0
  %v1036 = vsel %vm422, %v1012, 0
  %1038 = vmatpush.xpose.msra.mxu0 0.0
  %1039 = vmatpush.xpose.msra.mxu0 0.0
  %1040 = vmatpush.xpose.msra.mxu0 0.0
  %1041 = vmatpush.xpose.msra.mxu0 0.0
  %1042 = vmatpush.xpose.msra.mxu0 0.0
  %1043 = vmatpush.xpose.msra.mxu0 0.0
  %1044 = vmatpush.xpose.msra.mxu0 0.0
  %1045 = vmatpush.xpose.msra.mxu0 0.0
  %1046 = vmatpush.xpose.msra.mxu0 %v1036
  %1047 = vmatpush.xpose.msra.mxu0 %v1033
  %1048 = vmatpush.xpose.msra.mxu0 %v1030
  %1049 = vmatpush.xpose.msra.mxu0 %v1027
  %1050 = vmatpush.xpose.msra.mxu0 %v1024
  %1051 = vmatpush.xpose.msra.mxu0 %v1021
  %1052 = vmatpush.xpose.msra.mxu0 %v1018
  %1053 = vmatpush.xpose.msra.mxu0 %v1015
  %1054 = vmatmul.f32.gmra.mxu0 %v1015
  %v1055 = vpop.f32.mrf.mxu0
  %v1056 = vadd.f32 0.0, %v1055
  %1057 = vmatmul.f32.gmra.mxu0 %v1018
  %v1058 = vpop.f32.mrf.mxu0
  %v1059 = vadd.f32 0.0, %v1058
  %1060 = vmatmul.f32.gmra.mxu0 %v1021
  %v1061 = vpop.f32.mrf.mxu0
  %v1062 = vadd.f32 0.0, %v1061
  %1063 = vmatmul.f32.gmra.mxu0 %v1024
  %v1064 = vpop.f32.mrf.mxu0
  %v1065 = vadd.f32 0.0, %v1064
  %1066 = vmatmul.f32.gmra.mxu0 %v1027
  %v1067 = vpop.f32.mrf.mxu0
  %v1068 = vadd.f32 0.0, %v1067
  %1069 = vmatmul.f32.gmra.mxu0 %v1030
  %v1070 = vpop.f32.mrf.mxu0
  %v1071 = vadd.f32 0.0, %v1070
  %1072 = vmatmul.f32.gmra.mxu0 %v1033
  %v1073 = vpop.f32.mrf.mxu0
  %v1074 = vadd.f32 0.0, %v1073
  %1075 = vmatmul.f32.gmra.mxu0 %v1036
  %v1076 = vpop.f32.mrf.mxu0
  %v1077 = vadd.f32 0.0, %v1076
  %1078 = vdwg.mxu0
  %v1079 = vxor.u32 %v1056, 2147483648
  %v1080 = vxor.u32 %v1059, 2147483648
  %v1081 = vxor.u32 %v1062, 2147483648
  %v1082 = vxor.u32 %v1065, 2147483648
  %v1083 = vxor.u32 %v1068, 2147483648
  %v1084 = vxor.u32 %v1071, 2147483648
  %v1085 = vxor.u32 %v1074, 2147483648
  %v1086 = vxor.u32 %v1077, 2147483648
  %v1087 = vmul.f32 %v1079, 1.442695
  %v1088 = vpow.pop %v1087
  %v1089 = vmul.f32 %v1080, 1.442695
  %v1090 = vpow.pop %v1089
  %v1091 = vmul.f32 %v1081, 1.442695
  %v1092 = vpow.pop %v1091
  %v1093 = vmul.f32 %v1082, 1.442695
  %v1094 = vpow.pop %v1093
  %v1095 = vmul.f32 %v1083, 1.442695
  %v1096 = vpow.pop %v1095
  %v1097 = vmul.f32 %v1084, 1.442695
  %v1098 = vpow.pop %v1097
  %v1099 = vmul.f32 %v1085, 1.442695
  %v1100 = vpow.pop %v1099
  %v1101 = vmul.f32 %v1086, 1.442695
  %v1102 = vpow.pop %v1101
  %v1103 = vadd.f32 %v1088, 1.0
  %v1104 = vadd.f32 %v1090, 1.0
  %v1105 = vadd.f32 %v1092, 1.0
  %v1106 = vadd.f32 %v1094, 1.0
  %v1107 = vadd.f32 %v1096, 1.0
  %v1108 = vadd.f32 %v1098, 1.0
  %v1109 = vadd.f32 %v1100, 1.0
  %v1110 = vadd.f32 %v1102, 1.0
  %v1111 = vrcp.pop %v1103
  %v1112 = vmul.f32 %v1103, %v1111
  %v1113 = vsub.f32 1.0, %v1112
  %v1114 = vmul.f32 %v1111, %v1113
  %v1115 = vadd.f32 %v1111, %v1114
  %vm1116 = vweird.f32 %v1103
  %vm1117 = vweird.f32 %v1111
  %vm1118 = vmor %vm1116, %vm1117
  %v1119 = vsel %vm1118, %v1111, %v1115
  %v1120 = vand.u32 2147483647, %v1103
  %vm1121 = vcmp.eq.f32.partialorder %v1120, 8.507059e+37
  %v1122 = vand.u32 %v1103, 2147483648
  %v1123 = vor.u32 1.1754944e-38, %v1122
  %v1124 = vsel %vm1121, %v1123, %v1119
  %v1125 = vmul.f32 1.0, %v1124
  %v1126 = vrcp.pop %v1104
  %v1127 = vmul.f32 %v1104, %v1126
  %v1128 = vsub.f32 1.0, %v1127
  %v1129 = vmul.f32 %v1126, %v1128
  %v1130 = vadd.f32 %v1126, %v1129
  %vm1131 = vweird.f32 %v1104
  %vm1132 = vweird.f32 %v1126
  %vm1133 = vmor %vm1131, %vm1132
  %v1134 = vsel %vm1133, %v1126, %v1130
  %v1135 = vand.u32 2147483647, %v1104
  %vm1136 = vcmp.eq.f32.partialorder %v1135, 8.507059e+37
  %v1137 = vand.u32 %v1104, 2147483648
  %v1138 = vor.u32 1.1754944e-38, %v1137
  %v1139 = vsel %vm1136, %v1138, %v1134
  %v1140 = vmul.f32 1.0, %v1139
  %v1141 = vrcp.pop %v1105
  %v1142 = vmul.f32 %v1105, %v1141
  %v1143 = vsub.f32 1.0, %v1142
  %v1144 = vmul.f32 %v1141, %v1143
  %v1145 = vadd.f32 %v1141, %v1144
  %vm1146 = vweird.f32 %v1105
  %vm1147 = vweird.f32 %v1141
  %vm1148 = vmor %vm1146, %vm1147
  %v1149 = vsel %vm1148, %v1141, %v1145
  %v1150 = vand.u32 2147483647, %v1105
  %vm1151 = vcmp.eq.f32.partialorder %v1150, 8.507059e+37
  %v1152 = vand.u32 %v1105, 2147483648
  %v1153 = vor.u32 1.1754944e-38, %v1152
  %v1154 = vsel %vm1151, %v1153, %v1149
  %v1155 = vmul.f32 1.0, %v1154
  %v1156 = vrcp.pop %v1106
  %v1157 = vmul.f32 %v1106, %v1156
  %v1158 = vsub.f32 1.0, %v1157
  %v1159 = vmul.f32 %v1156, %v1158
  %v1160 = vadd.f32 %v1156, %v1159
  %vm1161 = vweird.f32 %v1106
  %vm1162 = vweird.f32 %v1156
  %vm1163 = vmor %vm1161, %vm1162
  %v1164 = vsel %vm1163, %v1156, %v1160
  %v1165 = vand.u32 2147483647, %v1106
  %vm1166 = vcmp.eq.f32.partialorder %v1165, 8.507059e+37
  %v1167 = vand.u32 %v1106, 2147483648
  %v1168 = vor.u32 1.1754944e-38, %v1167
  %v1169 = vsel %vm1166, %v1168, %v1164
  %v1170 = vmul.f32 1.0, %v1169
  %v1171 = vrcp.pop %v1107
  %v1172 = vmul.f32 %v1107, %v1171
  %v1173 = vsub.f32 1.0, %v1172
  %v1174 = vmul.f32 %v1171, %v1173
  %v1175 = vadd.f32 %v1171, %v1174
  %vm1176 = vweird.f32 %v1107
  %vm1177 = vweird.f32 %v1171
  %vm1178 = vmor %vm1176, %vm1177
  %v1179 = vsel %vm1178, %v1171, %v1175
  %v1180 = vand.u32 2147483647, %v1107
  %vm1181 = vcmp.eq.f32.partialorder %v1180, 8.507059e+37
  %v1182 = vand.u32 %v1107, 2147483648
  %v1183 = vor.u32 1.1754944e-38, %v1182
  %v1184 = vsel %vm1181, %v1183, %v1179
  %v1185 = vmul.f32 1.0, %v1184
  %v1186 = vrcp.pop %v1108
  %v1187 = vmul.f32 %v1108, %v1186
  %v1188 = vsub.f32 1.0, %v1187
  %v1189 = vmul.f32 %v1186, %v1188
  %v1190 = vadd.f32 %v1186, %v1189
  %vm1191 = vweird.f32 %v1108
  %vm1192 = vweird.f32 %v1186
  %vm1193 = vmor %vm1191, %vm1192
  %v1194 = vsel %vm1193, %v1186, %v1190
  %v1195 = vand.u32 2147483647, %v1108
  %vm1196 = vcmp.eq.f32.partialorder %v1195, 8.507059e+37
  %v1197 = vand.u32 %v1108, 2147483648
  %v1198 = vor.u32 1.1754944e-38, %v1197
  %v1199 = vsel %vm1196, %v1198, %v1194
  %v1200 = vmul.f32 1.0, %v1199
  %v1201 = vrcp.pop %v1109
  %v1202 = vmul.f32 %v1109, %v1201
  %v1203 = vsub.f32 1.0, %v1202
  %v1204 = vmul.f32 %v1201, %v1203
  %v1205 = vadd.f32 %v1201, %v1204
  %vm1206 = vweird.f32 %v1109
  %vm1207 = vweird.f32 %v1201
  %vm1208 = vmor %vm1206, %vm1207
  %v1209 = vsel %vm1208, %v1201, %v1205
  %v1210 = vand.u32 2147483647, %v1109
  %vm1211 = vcmp.eq.f32.partialorder %v1210, 8.507059e+37
  %v1212 = vand.u32 %v1109, 2147483648
  %v1213 = vor.u32 1.1754944e-38, %v1212
  %v1214 = vsel %vm1211, %v1213, %v1209
  %v1215 = vmul.f32 1.0, %v1214
  %v1216 = vrcp.pop %v1110
  %v1217 = vmul.f32 %v1110, %v1216
  %v1218 = vsub.f32 1.0, %v1217
  %v1219 = vmul.f32 %v1216, %v1218
  %v1220 = vadd.f32 %v1216, %v1219
  %vm1221 = vweird.f32 %v1110
  %vm1222 = vweird.f32 %v1216
  %vm1223 = vmor %vm1221, %vm1222
  %v1224 = vsel %vm1223, %v1216, %v1220
  %v1225 = vand.u32 2147483647, %v1110
  %vm1226 = vcmp.eq.f32.partialorder %v1225, 8.507059e+37
  %v1227 = vand.u32 %v1110, 2147483648
  %v1228 = vor.u32 1.1754944e-38, %v1227
  %v1229 = vsel %vm1226, %v1228, %v1224
  %v1230 = vmul.f32 1.0, %v1229
  %1231 = vst.msk [vmem:[%s7] sm:$0xff] %vm422, %v399
  %1232 = vst.msk [vmem:[%s7 + $0x8] sm:$0xff] %vm422, %v402
  %1233 = vst.msk [vmem:[%s7 + $0x10] sm:$0xff] %vm422, %v405
  %1234 = vst.msk [vmem:[%s7 + $0x18] sm:$0xff] %vm422, %v408
  %1235 = vst.msk [vmem:[%s7 + $0x20] sm:$0xff] %vm422, %v411
  %1236 = vst.msk [vmem:[%s7 + $0x28] sm:$0xff] %vm422, %v414
  %1237 = vst.msk [vmem:[%s7 + $0x30] sm:$0xff] %vm422, %v417
  %1238 = vst.msk [vmem:[%s7 + $0x38] sm:$0xff] %vm422, %v420
  %1239 = vst.msk [vmem:[%s8] sm:$0xff] %vm422, %v991
  %1240 = vst.msk [vmem:[%s8 + $0x8] sm:$0xff] %vm422, %v994
  %1241 = vst.msk [vmem:[%s8 + $0x10] sm:$0xff] %vm422, %v997
  %1242 = vst.msk [vmem:[%s8 + $0x18] sm:$0xff] %vm422, %v1000
  %1243 = vst.msk [vmem:[%s8 + $0x20] sm:$0xff] %vm422, %v1003
  %1244 = vst.msk [vmem:[%s8 + $0x28] sm:$0xff] %vm422, %v1006
  %1245 = vst.msk [vmem:[%s8 + $0x30] sm:$0xff] %vm422, %v1009
  %1246 = vst.msk [vmem:[%s8 + $0x38] sm:$0xff] %vm422, %v1012
  %v1247 = vadd.f32 %v534, %v1125
  %v1248 = vadd.f32 %v549, %v1140
  %v1249 = vadd.f32 %v564, %v1155
  %v1250 = vadd.f32 %v579, %v1170
  %v1251 = vadd.f32 %v594, %v1185
  %v1252 = vadd.f32 %v609, %v1200
  %v1253 = vadd.f32 %v624, %v1215
  %v1254 = vadd.f32 %v639, %v1230
  %v1255 = vmul.f32 %v1247, 0.5
  %v1256 = vmul.f32 %v1248, 0.5
  %v1257 = vmul.f32 %v1249, 0.5
  %v1258 = vmul.f32 %v1250, 0.5
  %v1259 = vmul.f32 %v1251, 0.5
  %v1260 = vmul.f32 %v1252, 0.5
  %v1261 = vmul.f32 %v1253, 0.5
  %v1262 = vmul.f32 %v1254, 0.5
  %1263 = vst.msk [vmem:[%s9] sm:$0xff] %vm129, %v1255
  %1264 = vst.msk [vmem:[%s9 + $0x8] sm:$0xff] %vm129, %v1256
  %1265 = vst.msk [vmem:[%s9 + $0x10] sm:$0xff] %vm129, %v1257
  %1266 = vst.msk [vmem:[%s9 + $0x18] sm:$0xff] %vm129, %v1258
  %1267 = vst.msk [vmem:[%s9 + $0x20] sm:$0xff] %vm129, %v1259
  %1268 = vst.msk [vmem:[%s9 + $0x28] sm:$0xff] %vm129, %v1260
  %1269 = vst.msk [vmem:[%s9 + $0x30] sm:$0xff] %vm129, %v1261
  %1270 = vst.msk [vmem:[%s9 + $0x38] sm:$0xff] %vm129, %v1262
  %v1271 = vadd.f32 %v172, %v771
  %v1272 = vadd.f32 %v175, %v774
  %v1273 = vadd.f32 %v178, %v777
  %v1274 = vadd.f32 %v181, %v780
  %v1275 = vadd.f32 %v184, %v783
  %v1276 = vadd.f32 %v187, %v786
  %v1277 = vadd.f32 %v190, %v789
  %v1278 = vadd.f32 %v193, %v792
  %v1279 = vmul.f32 %v1271, 0.5
  %v1280 = vmul.f32 %v1272, 0.5
  %v1281 = vmul.f32 %v1273, 0.5
  %v1282 = vmul.f32 %v1274, 0.5
  %v1283 = vmul.f32 %v1275, 0.5
  %v1284 = vmul.f32 %v1276, 0.5
  %v1285 = vmul.f32 %v1277, 0.5
  %v1286 = vmul.f32 %v1278, 0.5
  %1287 = vst.msk [vmem:[%s10] sm:$0xff] %vm55, %v1279
  %1288 = vst.msk [vmem:[%s10 + $0x8] sm:$0xff] %vm55, %v1280
  %1289 = vst.msk [vmem:[%s10 + $0x10] sm:$0xff] %vm55, %v1281
  %1290 = vst.msk [vmem:[%s10 + $0x18] sm:$0xff] %vm55, %v1282
  %1291 = vst.msk [vmem:[%s10 + $0x20] sm:$0xff] %vm55, %v1283
  %1292 = vst.msk [vmem:[%s10 + $0x28] sm:$0xff] %vm55, %v1284
  %1293 = vst.msk [vmem:[%s10 + $0x30] sm:$0xff] %vm55, %v1285
  %1294 = vst.msk [vmem:[%s10 + $0x38] sm:$0xff] %vm55, %v1286
  %v1295 = vadd.f32 %v290, %v885
  %v1296 = vadd.f32 %v293, %v888
  %v1297 = vadd.f32 %v296, %v891
  %v1298 = vadd.f32 %v299, %v894
  %v1299 = vadd.f32 %v302, %v897
  %v1300 = vadd.f32 %v305, %v900
  %v1301 = vadd.f32 %v308, %v903
  %v1302 = vadd.f32 %v311, %v906
  %v1303 = vmul.f32 %v1295, 0.5
  %v1304 = vmul.f32 %v1296, 0.5
  %v1305 = vmul.f32 %v1297, 0.5
  %v1306 = vmul.f32 %v1298, 0.5
  %v1307 = vmul.f32 %v1299, 0.5
  %v1308 = vmul.f32 %v1300, 0.5
  %v1309 = vmul.f32 %v1301, 0.5
  %v1310 = vmul.f32 %v1302, 0.5
  %1311 = vst.msk [vmem:[%s11] sm:$0xff] %vm315, %v1303
  %1312 = vst.msk [vmem:[%s11 + $0x8] sm:$0xff] %vm315, %v1304
  %1313 = vst.msk [vmem:[%s11 + $0x10] sm:$0xff] %vm315, %v1305
  %1314 = vst.msk [vmem:[%s11 + $0x18] sm:$0xff] %vm315, %v1306
  %1315 = vst.msk [vmem:[%s11 + $0x20] sm:$0xff] %vm315, %v1307
  %1316 = vst.msk [vmem:[%s11 + $0x28] sm:$0xff] %vm315, %v1308
  %1317 = vst.msk [vmem:[%s11 + $0x30] sm:$0xff] %vm315, %v1309
  %1318 = vst.msk [vmem:[%s11 + $0x38] sm:$0xff] %vm315, %v1310
  %v1319 = vadd.f32 %v399, %v991
  %v1320 = vadd.f32 %v402, %v994
  %v1321 = vadd.f32 %v405, %v997
  %v1322 = vadd.f32 %v408, %v1000
  %v1323 = vadd.f32 %v411, %v1003
  %v1324 = vadd.f32 %v414, %v1006
  %v1325 = vadd.f32 %v417, %v1009
  %v1326 = vadd.f32 %v420, %v1012
  %v1327 = vmul.f32 %v1319, 0.5
  %v1328 = vmul.f32 %v1320, 0.5
  %v1329 = vmul.f32 %v1321, 0.5
  %v1330 = vmul.f32 %v1322, 0.5
  %v1331 = vmul.f32 %v1323, 0.5
  %v1332 = vmul.f32 %v1324, 0.5
  %v1333 = vmul.f32 %v1325, 0.5
  %v1334 = vmul.f32 %v1326, 0.5
  %1335 = vst.msk [vmem:[%s12] sm:$0xff] %vm422, %v1327
  %1336 = vst.msk [vmem:[%s12 + $0x8] sm:$0xff] %vm422, %v1328
  %1337 = vst.msk [vmem:[%s12 + $0x10] sm:$0xff] %vm422, %v1329
  %1338 = vst.msk [vmem:[%s12 + $0x18] sm:$0xff] %vm422, %v1330
  %1339 = vst.msk [vmem:[%s12 + $0x20] sm:$0xff] %vm422, %v1331
  %1340 = vst.msk [vmem:[%s12 + $0x28] sm:$0xff] %vm422, %v1332
  %1341 = vst.msk [vmem:[%s12 + $0x30] sm:$0xff] %vm422, %v1333
  %1342 = vst.msk [vmem:[%s12 + $0x38] sm:$0xff] %vm422, %v1334
  %v1343 = vadd.f32 %v121, %v721
  %v1344 = vadd.f32 %v122, %v722
  %v1345 = vadd.f32 %v123, %v723
  %v1346 = vadd.f32 %v124, %v724
  %v1347 = vadd.f32 %v125, %v725
  %v1348 = vadd.f32 %v126, %v726
  %v1349 = vadd.f32 %v127, %v727
  %v1350 = vadd.f32 %v128, %v728
  %v1351 = vmul.f32 %v1343, 0.5
  %v1352 = vmul.f32 %v1344, 0.5
  %v1353 = vmul.f32 %v1345, 0.5
  %v1354 = vmul.f32 %v1346, 0.5
  %v1355 = vmul.f32 %v1347, 0.5
  %v1356 = vmul.f32 %v1348, 0.5
  %v1357 = vmul.f32 %v1349, 0.5
  %v1358 = vmul.f32 %v1350, 0.5
  %1359 = vst.msk [vmem:[%s13] sm:$0xff] %vm55, %v1351
  %1360 = vst.msk [vmem:[%s13 + $0x8] sm:$0xff] %vm55, %v1352
  %1361 = vst.msk [vmem:[%s13 + $0x10] sm:$0xff] %vm55, %v1353
  %1362 = vst.msk [vmem:[%s13 + $0x18] sm:$0xff] %vm55, %v1354
  %1363 = vst.msk [vmem:[%s13 + $0x20] sm:$0xff] %vm55, %v1355
  %1364 = vst.msk [vmem:[%s13 + $0x28] sm:$0xff] %vm55, %v1356
  %1365 = vst.msk [vmem:[%s13 + $0x30] sm:$0xff] %vm55, %v1357
  %1366 = vst.msk [vmem:[%s13 + $0x38] sm:$0xff] %vm55, %v1358
  %v1367 = vadd.f32 %v264, %v859
  %v1368 = vadd.f32 %v265, %v860
  %v1369 = vadd.f32 %v266, %v861
  %v1370 = vadd.f32 %v267, %v862
  %v1371 = vadd.f32 %v268, %v863
  %v1372 = vadd.f32 %v269, %v864
  %v1373 = vadd.f32 %v270, %v865
  %v1374 = vadd.f32 %v271, %v866
  %v1375 = vmul.f32 %v1367, 0.5
  %v1376 = vmul.f32 %v1368, 0.5
  %v1377 = vmul.f32 %v1369, 0.5
  %v1378 = vmul.f32 %v1370, 0.5
  %v1379 = vmul.f32 %v1371, 0.5
  %v1380 = vmul.f32 %v1372, 0.5
  %v1381 = vmul.f32 %v1373, 0.5
  %v1382 = vmul.f32 %v1374, 0.5
  %1383 = vst.msk [vmem:[%s14] sm:$0xff] %vm315, %v1375
  %1384 = vst.msk [vmem:[%s14 + $0x8] sm:$0xff] %vm315, %v1376
  %1385 = vst.msk [vmem:[%s14 + $0x10] sm:$0xff] %vm315, %v1377
  %1386 = vst.msk [vmem:[%s14 + $0x18] sm:$0xff] %vm315, %v1378
  %1387 = vst.msk [vmem:[%s14 + $0x20] sm:$0xff] %vm315, %v1379
  %1388 = vst.msk [vmem:[%s14 + $0x28] sm:$0xff] %vm315, %v1380
  %1389 = vst.msk [vmem:[%s14 + $0x30] sm:$0xff] %vm315, %v1381
  %1390 = vst.msk [vmem:[%s14 + $0x38] sm:$0xff] %vm315, %v1382
  %v1391 = vadd.f32 %v358, %v950
  %v1392 = vadd.f32 %v361, %v953
  %v1393 = vadd.f32 %v364, %v956
  %v1394 = vadd.f32 %v367, %v959
  %v1395 = vadd.f32 %v370, %v962
  %v1396 = vadd.f32 %v373, %v965
  %v1397 = vadd.f32 %v376, %v968
  %v1398 = vadd.f32 %v379, %v971
  %v1399 = vmul.f32 %v1391, 0.5
  %v1400 = vmul.f32 %v1392, 0.5
  %v1401 = vmul.f32 %v1393, 0.5
  %v1402 = vmul.f32 %v1394, 0.5
  %v1403 = vmul.f32 %v1395, 0.5
  %v1404 = vmul.f32 %v1396, 0.5
  %v1405 = vmul.f32 %v1397, 0.5
  %v1406 = vmul.f32 %v1398, 0.5
  %1407 = vst.msk [vmem:[%s15] sm:$0xff] %vm422, %v1399
  %1408 = vst.msk [vmem:[%s15 + $0x8] sm:$0xff] %vm422, %v1400
  %1409 = vst.msk [vmem:[%s15 + $0x10] sm:$0xff] %vm422, %v1401
  %1410 = vst.msk [vmem:[%s15 + $0x18] sm:$0xff] %vm422, %v1402
  %1411 = vst.msk [vmem:[%s15 + $0x20] sm:$0xff] %vm422, %v1403
  %1412 = vst.msk [vmem:[%s15 + $0x28] sm:$0xff] %vm422, %v1404
  %1413 = vst.msk [vmem:[%s15 + $0x30] sm:$0xff] %vm422, %v1405
  %1414 = vst.msk [vmem:[%s15 + $0x38] sm:$0xff] %vm422, %v1406
  // Predicated region
  $region30: #{dcrn_forward.6} parent=0 // pred_check
    _
  $region31: #{dcrn_forward.6} parent=0 // pred_check_branch
    %1416 = sbr.rel (0) target = $region33
  $region32: #{dcrn_forward.6} parent=0 // pred_region
    _
  $region33: #{dcrn_forward.6} parent=0 // pred_fallthru
    _
  // Predicated region
  $region34: #{dcrn_forward.6} parent=0 // pred_check
    _
  $region35: #{dcrn_forward.6} parent=0 // pred_check_branch
    %1418 = sbr.rel (0) target = $region37
  $region36: #{dcrn_forward.6} parent=0 // pred_region
    _
  $region37: #{dcrn_forward.6} parent=0 // pred_fallthru
    _
  // Predicated region
  $region38: #{dcrn_forward.6} parent=0 // pred_check
    _
  $region39: #{dcrn_forward.6} parent=0 // pred_check_branch
    %1420 = sbr.rel (0) target = $region41
  $region40: #{dcrn_forward.6} parent=0 // pred_region
    _
  $region41: #{dcrn_forward.6} parent=0 // pred_fallthru
    _
  // Predicated region
  $region42: #{dcrn_forward.6} parent=0 // pred_check
    _
  $region43: #{dcrn_forward.6} parent=0 // pred_check_branch
    %1422 = sbr.rel (0) target = $region45
  $region44: #{dcrn_forward.6} parent=0 // pred_region
    _
  $region45: #{dcrn_forward.6} parent=0 // pred_fallthru
    _
  // Predicated region
  $region46: #{dcrn_forward.6} parent=0 // pred_check
    _
  $region47: #{dcrn_forward.6} parent=0 // pred_check_branch
    %1424 = sbr.rel (0) target = $region49
  $region48: #{dcrn_forward.6} parent=0 // pred_region
    _
  $region49: #{dcrn_forward.6} parent=0 // pred_fallthru
    _
  // Predicated region
  $region50: #{dcrn_forward.6} parent=0 // pred_check
    _
  $region51: #{dcrn_forward.6} parent=0 // pred_check_branch
    %1426 = sbr.rel (0) target = $region53
  $region52: #{dcrn_forward.6} parent=0 // pred_region
    _
  $region53: #{dcrn_forward.6} parent=0 // pred_fallthru
    _
  // Predicated region
  $region54: #{dcrn_forward.6} parent=0 // pred_check
    _
  $region55: #{dcrn_forward.6} parent=0 // pred_check_branch
    %1428 = sbr.rel (0) target = $region57
  $region56: #{dcrn_forward.6} parent=0 // pred_region
    _
  $region57: #{dcrn_forward.6} parent=0 // pred_fallthru
    _
  // Predicated region
  $region58: #{dcrn_forward.6} parent=0 // pred_check
    _
  $region59: #{dcrn_forward.6} parent=0 // pred_check_branch
    %1430 = sbr.rel (0) target = $region61
  $region60: #{dcrn_forward.6} parent=0 // pred_region
    _
  $region61: #{dcrn_forward.6} parent=0 // pred_fallthru
    _
  // Predicated region
  $region62: #{dcrn_forward.6} parent=0 // pred_check
    _
  $region63: #{dcrn_forward.6} parent=0 // pred_check_branch
    %1432 = sbr.rel (0) target = $region65
  $region64: #{dcrn_forward.6} parent=0 // pred_region
    _
  $region65: #{dcrn_forward.6} parent=0 // pred_fallthru
    _
  // Predicated region
  $region66: #{dcrn_forward.6} parent=0 // pred_check
    _
  $region67: #{dcrn_forward.6} parent=0 // pred_check_branch
    %1434 = sbr.rel (0) target = $region69
  $region68: #{dcrn_forward.6} parent=0 // pred_region
    _
  $region69: #{dcrn_forward.6} parent=0 // pred_fallthru
    _
  // Predicated region
  $region70: #{dcrn_forward.6} parent=0 // pred_check
    _
  $region71: #{dcrn_forward.6} parent=0 // pred_check_branch
    %1436 = sbr.rel (0) target = $region73
  $region72: #{dcrn_forward.6} parent=0 // pred_region
    _
  $region73: #{dcrn_forward.6} parent=0 // pred_fallthru
    _
  // Predicated region
  $region74: #{dcrn_forward.6} parent=0 // pred_check
    _
  $region75: #{dcrn_forward.6} parent=0 // pred_check_branch
    %1438 = sbr.rel (0) target = $region77
  $region76: #{dcrn_forward.6} parent=0 // pred_region
    _
  $region77: #{dcrn_forward.6} parent=0 // pred_fallthru
    _
  // Predicated region
  $region78: #{dcrn_forward.6} parent=0 // pred_check
    _
  $region79: #{dcrn_forward.6} parent=0 // pred_check_branch
    %1440 = sbr.rel (0) target = $region81
  $region80: #{dcrn_forward.6} parent=0 // pred_region
    _
  $region81: #{dcrn_forward.6} parent=0 // pred_fallthru
    _
  // Predicated region
  $region82: #{dcrn_forward.6} parent=0 // pred_check
    _
  $region83: #{dcrn_forward.6} parent=0 // pred_check_branch
    %1442 = sbr.rel (0) target = $region85
  $region84: #{dcrn_forward.6} parent=0 // pred_region
    _
  $region85: #{dcrn_forward.6} parent=0 // pred_fallthru
    _
  // Predicated region
  $region86: #{dcrn_forward.6} parent=0 // pred_check
    _
  $region87: #{dcrn_forward.6} parent=0 // pred_check_branch
    %1444 = sbr.rel (0) target = $region89
  $region88: #{dcrn_forward.6} parent=0 // pred_region
    _
  $region89: #{dcrn_forward.6} parent=0 // pred_fallthru
    _
  // Predicated region
  $region90: #{dcrn_forward.6} parent=0 // pred_check
    _
  $region91: #{dcrn_forward.6} parent=0 // pred_check_branch
    %1446 = sbr.rel (0) target = $region93
  $region92: #{dcrn_forward.6} parent=0 // pred_region
    _
  $region93: #{dcrn_forward.6} parent=0 // pred_fallthru
    _
  // Predicated region
  $region94: #{dcrn_forward.6} parent=0 // pred_check
    _
  $region95: #{dcrn_forward.6} parent=0 // pred_check_branch
    %1448 = sbr.rel (0) target = $region97
  $region96: #{dcrn_forward.6} parent=0 // pred_region
    _
  $region97: #{dcrn_forward.6} parent=0 // pred_fallthru
    _
  // Predicated region
  $region98: #{dcrn_forward.6} parent=0 // pred_check
    _
  $region99: #{dcrn_forward.6} parent=0 // pred_check_branch
    %1450 = sbr.rel (0) target = $region101
  $region100: #{dcrn_forward.6} parent=0 // pred_region
    _
  $region101: #{dcrn_forward.6} parent=0 // pred_fallthru
    _

// kernel: dcrn_forward.7
$region0: #{dcrn_forward.7}
  #allocation0 [shape = 'u32[]', space=smem, size = 0x4, offset = 0x4, fixed_abs, tag = 'smem constant byte address 0x4 - core index']
  #allocation1 [shape = 'u32[72,128]{1,0:T(1,128)}', space=vmem, size = 0x9000, scoped, tag = 'internal scratch']
  #allocation2 [shape = 'f32[1,1]{1,0:T(1,128)S(6)}', space=smem, size = 0x200, scoped, tag = 'scoped memory for dcrn_forward.7']
  %s0 = inlined_call_operand.vmem [shape: f32[64,8], index: 0, kind: input, shape index: {}]
  %s1 = inlined_call_operand.vmem [shape: f32[64,8], index: 1, kind: input, shape index: {}]
  %s2 = inlined_call_operand.vmem [shape: f32[64,8], index: 2, kind: input, shape index: {}]
  %s3 = inlined_call_operand.vmem [shape: f32[64,8], index: 3, kind: input, shape index: {}]
  %s4 = inlined_call_operand.vmem [shape: f32[64,64], index: 4, kind: input, shape index: {}]
  %s5 = inlined_call_operand.vmem [shape: f32[4,8], index: 5, kind: input, shape index: {}]
  %s6 = inlined_call_operand.<no memory space> [shape: f32[1,1], index: 6, kind: input, shape index: {}]
  %s7 = inlined_call_operand.vmem [shape: f32[64,8], index: 7, kind: output, shape index: {0}]
  %s8 = inlined_call_operand.vmem [shape: f32[64,4], index: 8, kind: output, shape index: {1}]
  %s9 = inlined_call_operand.vmem [shape: f32[64,4], index: 9, kind: output, shape index: {2}]
  %s10 = inlined_call_operand.vmem [shape: f32[64,4], index: 10, kind: output, shape index: {3}]
  %11 = xla_tuple %s7, %s8, %s9, %s10
  %s12 = sld [smem:[#allocation0]]
  $region62: #{dcrn_forward.7} parent=0
    _
  %s14 = ssub.s32 1, %s12
  %s15 = scalar_select 0, %s14, %s12
  %16 = sst [smem:[#allocation2]] %s6
  // Predicated region
  $region2: #{dcrn_forward.7} parent=0 // pred_check
    _
  $region3: #{dcrn_forward.7} parent=0 // pred_check_branch
    %18 = sbr.rel (0) target = $region5
  $region4: #{dcrn_forward.7} parent=0 // pred_region
    _
  $region5: #{dcrn_forward.7} parent=0 // pred_fallthru
    _
  // Predicated region
  $region6: #{dcrn_forward.7} parent=0 // pred_check
    _
  $region7: #{dcrn_forward.7} parent=0 // pred_check_branch
    %20 = sbr.rel (0) target = $region9
  $region8: #{dcrn_forward.7} parent=0 // pred_region
    _
  $region9: #{dcrn_forward.7} parent=0 // pred_fallthru
    _
  // Predicated region
  $region10: #{dcrn_forward.7} parent=0 // pred_check
    _
  $region11: #{dcrn_forward.7} parent=0 // pred_check_branch
    %22 = sbr.rel (0) target = $region13
  $region12: #{dcrn_forward.7} parent=0 // pred_region
    _
  $region13: #{dcrn_forward.7} parent=0 // pred_fallthru
    _
  // Predicated region
  $region14: #{dcrn_forward.7} parent=0 // pred_check
    _
  $region15: #{dcrn_forward.7} parent=0 // pred_check_branch
    %24 = sbr.rel (0) target = $region17
  $region16: #{dcrn_forward.7} parent=0 // pred_region
    _
  $region17: #{dcrn_forward.7} parent=0 // pred_fallthru
    _
  // Predicated region
  $region18: #{dcrn_forward.7} parent=0 // pred_check
    _
  $region19: #{dcrn_forward.7} parent=0 // pred_check_branch
    %26 = sbr.rel (0) target = $region21
  $region20: #{dcrn_forward.7} parent=0 // pred_region
    _
  $region21: #{dcrn_forward.7} parent=0 // pred_fallthru
    _
  // Predicated region
  $region22: #{dcrn_forward.7} parent=0 // pred_check
    _
  $region23: #{dcrn_forward.7} parent=0 // pred_check_branch
    %28 = sbr.rel (0) target = $region25
  $region24: #{dcrn_forward.7} parent=0 // pred_region
    _
  $region25: #{dcrn_forward.7} parent=0 // pred_fallthru
    _
  // Predicated region
  $region26: #{dcrn_forward.7} parent=0 // pred_check
    _
  $region27: #{dcrn_forward.7} parent=0 // pred_check_branch
    %30 = sbr.rel (0) target = $region29
  $region28: #{dcrn_forward.7} parent=0 // pred_region
    _
  $region29: #{dcrn_forward.7} parent=0 // pred_fallthru
    _
  %v31 = vld [vmem:[%s0] sm:$0xff]
  %v32 = vld [vmem:[%s0 + $0x8] sm:$0xff]
  %v33 = vld [vmem:[%s0 + $0x10] sm:$0xff]
  %v34 = vld [vmem:[%s0 + $0x18] sm:$0xff]
  %v35 = vld [vmem:[%s0 + $0x20] sm:$0xff]
  %v36 = vld [vmem:[%s0 + $0x28] sm:$0xff]
  %v37 = vld [vmem:[%s0 + $0x30] sm:$0xff]
  %v38 = vld [vmem:[%s0 + $0x38] sm:$0xff]
  %v39 = vld [vmem:[%s1] sm:$0xff]
  %v40 = vld [vmem:[%s1 + $0x8] sm:$0xff]
  %v41 = vld [vmem:[%s1 + $0x10] sm:$0xff]
  %v42 = vld [vmem:[%s1 + $0x18] sm:$0xff]
  %v43 = vld [vmem:[%s1 + $0x20] sm:$0xff]
  %v44 = vld [vmem:[%s1 + $0x28] sm:$0xff]
  %v45 = vld [vmem:[%s1 + $0x30] sm:$0xff]
  %v46 = vld [vmem:[%s1 + $0x38] sm:$0xff]
  %v47 = vld [vmem:[%s2] sm:$0xff]
  %v48 = vld [vmem:[%s2 + $0x8] sm:$0xff]
  %v49 = vld [vmem:[%s2 + $0x10] sm:$0xff]
  %v50 = vld [vmem:[%s2 + $0x18] sm:$0xff]
  %v51 = vld [vmem:[%s2 + $0x20] sm:$0xff]
  %v52 = vld [vmem:[%s2 + $0x28] sm:$0xff]
  %v53 = vld [vmem:[%s2 + $0x30] sm:$0xff]
  %v54 = vld [vmem:[%s2 + $0x38] sm:$0xff]
  %v55 = vmul.f32 %v47, %v31
  %v56 = vmul.f32 %v48, %v32
  %v57 = vmul.f32 %v49, %v33
  %v58 = vmul.f32 %v50, %v34
  %v59 = vmul.f32 %v51, %v35
  %v60 = vmul.f32 %v52, %v36
  %v61 = vmul.f32 %v53, %v37
  %v62 = vmul.f32 %v54, %v38
  %v63 = vld [vmem:[%s3] sm:$0xff]
  %v64 = vld [vmem:[%s3 + $0x8] sm:$0xff]
  %v65 = vld [vmem:[%s3 + $0x10] sm:$0xff]
  %v66 = vld [vmem:[%s3 + $0x18] sm:$0xff]
  %v67 = vld [vmem:[%s3 + $0x20] sm:$0xff]
  %v68 = vld [vmem:[%s3 + $0x28] sm:$0xff]
  %v69 = vld [vmem:[%s3 + $0x30] sm:$0xff]
  %v70 = vld [vmem:[%s3 + $0x38] sm:$0xff]
  %v71 = vmul.f32 %v63, %v39
  %v72 = vmul.f32 %v64, %v40
  %v73 = vmul.f32 %v65, %v41
  %v74 = vmul.f32 %v66, %v42
  %v75 = vmul.f32 %v67, %v43
  %v76 = vmul.f32 %v68, %v44
  %v77 = vmul.f32 %v69, %v45
  %v78 = vmul.f32 %v70, %v46
  %v79 = vadd.f32 %v55, %v71
  %v80 = vadd.f32 %v56, %v72
  %v81 = vadd.f32 %v57, %v73
  %v82 = vadd.f32 %v58, %v74
  %v83 = vadd.f32 %v59, %v75
  %v84 = vadd.f32 %v60, %v76
  %v85 = vadd.f32 %v61, %v77
  %v86 = vadd.f32 %v62, %v78
  %v87 = vld [vmem:[%s4] sm:$0xff]
  %v88 = vld [vmem:[%s4 + $0x8] sm:$0xff]
  %v89 = vld [vmem:[%s4 + $0x10] sm:$0xff]
  %v90 = vld [vmem:[%s4 + $0x18] sm:$0xff]
  %v91 = vld [vmem:[%s4 + $0x20] sm:$0xff]
  %v92 = vld [vmem:[%s4 + $0x28] sm:$0xff]
  %v93 = vld [vmem:[%s4 + $0x30] sm:$0xff]
  %v94 = vld [vmem:[%s4 + $0x38] sm:$0xff]
  %vm95 = vcmask 523264
  %v97 = vsel %vm95, %v87, 0
  %v100 = vsel %vm95, %v88, 0
  %v103 = vsel %vm95, %v89, 0
  %v106 = vsel %vm95, %v90, 0
  %v109 = vsel %vm95, %v91, 0
  %v112 = vsel %vm95, %v92, 0
  %v115 = vsel %vm95, %v93, 0
  %v118 = vsel %vm95, %v94, 0
  %120 = vmatpush.msra.mxu0 0.0
  %121 = vmatpush.msra.mxu0 0.0
  %122 = vmatpush.msra.mxu0 0.0
  %123 = vmatpush.msra.mxu0 0.0
  %124 = vmatpush.msra.mxu0 0.0
  %125 = vmatpush.msra.mxu0 0.0
  %126 = vmatpush.msra.mxu0 0.0
  %127 = vmatpush.msra.mxu0 0.0
  %128 = vmatpush.msra.mxu0 %v86
  %129 = vmatpush.msra.mxu0 %v85
  %130 = vmatpush.msra.mxu0 %v84
  %131 = vmatpush.msra.mxu0 %v83
  %132 = vmatpush.msra.mxu0 %v82
  %133 = vmatpush.msra.mxu0 %v81
  %134 = vmatpush.msra.mxu0 %v80
  %135 = vmatpush.msra.mxu0 %v79
  %136 = vmatmul.f32.gmra.mxu0 %v97
  %v137 = vpop.f32.mrf.mxu0
  %v138 = vadd.f32 0.0, %v137
  %139 = vmatmul.f32.gmra.mxu0 %v100
  %v140 = vpop.f32.mrf.mxu0
  %v141 = vadd.f32 0.0, %v140
  %142 = vmatmul.f32.gmra.mxu0 %v103
  %v143 = vpop.f32.mrf.mxu0
  %v144 = vadd.f32 0.0, %v143
  %145 = vmatmul.f32.gmra.mxu0 %v106
  %v146 = vpop.f32.mrf.mxu0
  %v147 = vadd.f32 0.0, %v146
  %148 = vmatmul.f32.gmra.mxu0 %v109
  %v149 = vpop.f32.mrf.mxu0
  %v150 = vadd.f32 0.0, %v149
  %151 = vmatmul.f32.gmra.mxu0 %v112
  %v152 = vpop.f32.mrf.mxu0
  %v153 = vadd.f32 0.0, %v152
  %154 = vmatmul.f32.gmra.mxu0 %v115
  %v155 = vpop.f32.mrf.mxu0
  %v156 = vadd.f32 0.0, %v155
  %157 = vmatmul.f32.gmra.mxu0 %v118
  %v158 = vpop.f32.mrf.mxu0
  %v159 = vadd.f32 0.0, %v158
  %160 = vdwg.mxu0
  %vm161 = vcmask 64512
  %v163 = vsel %vm161, %v138, 0
  %v166 = vsel %vm161, %v141, 0
  %v169 = vsel %vm161, %v144, 0
  %v172 = vsel %vm161, %v147, 0
  %v175 = vsel %vm161, %v150, 0
  %v178 = vsel %vm161, %v153, 0
  %v181 = vsel %vm161, %v156, 0
  %v184 = vsel %vm161, %v159, 0
  %186 = vmatpush.xpose.msra.mxu0 0.0
  %187 = vmatpush.xpose.msra.mxu0 0.0
  %188 = vmatpush.xpose.msra.mxu0 0.0
  %189 = vmatpush.xpose.msra.mxu0 0.0
  %190 = vmatpush.xpose.msra.mxu0 0.0
  %191 = vmatpush.xpose.msra.mxu0 0.0
  %192 = vmatpush.xpose.msra.mxu0 0.0
  %193 = vmatpush.xpose.msra.mxu0 0.0
  %194 = vmatpush.xpose.msra.mxu0 %v184
  %195 = vmatpush.xpose.msra.mxu0 %v181
  %196 = vmatpush.xpose.msra.mxu0 %v178
  %197 = vmatpush.xpose.msra.mxu0 %v175
  %198 = vmatpush.xpose.msra.mxu0 %v172
  %199 = vmatpush.xpose.msra.mxu0 %v169
  %200 = vmatpush.xpose.msra.mxu0 %v166
  %201 = vmatpush.xpose.msra.mxu0 %v163
  %202 = vmatmul.f32.gmra.mxu0 %v163
  %v203 = vpop.f32.mrf.mxu0
  %v204 = vadd.f32 0.0, %v203
  %205 = vmatmul.f32.gmra.mxu0 %v166
  %v206 = vpop.f32.mrf.mxu0
  %v207 = vadd.f32 0.0, %v206
  %208 = vmatmul.f32.gmra.mxu0 %v169
  %v209 = vpop.f32.mrf.mxu0
  %v210 = vadd.f32 0.0, %v209
  %211 = vmatmul.f32.gmra.mxu0 %v172
  %v212 = vpop.f32.mrf.mxu0
  %v213 = vadd.f32 0.0, %v212
  %214 = vmatmul.f32.gmra.mxu0 %v175
  %v215 = vpop.f32.mrf.mxu0
  %v216 = vadd.f32 0.0, %v215
  %217 = vmatmul.f32.gmra.mxu0 %v178
  %v218 = vpop.f32.mrf.mxu0
  %v219 = vadd.f32 0.0, %v218
  %220 = vmatmul.f32.gmra.mxu0 %v181
  %v221 = vpop.f32.mrf.mxu0
  %v222 = vadd.f32 0.0, %v221
  %223 = vmatmul.f32.gmra.mxu0 %v184
  %v224 = vpop.f32.mrf.mxu0
  %v225 = vadd.f32 0.0, %v224
  %226 = vdwg.mxu0
  %v227 = vsel %vm95, %v204, -inf
  %228 = vmax.xlane.f32.xlu0 %v227
  %v229 = vpop.xlane.xlu0 %228
  %v230 = vsel %vm95, %v207, -inf
  %231 = vmax.xlane.f32.xlu0 %v230
  %v232 = vpop.xlane.xlu0 %231
  %v233 = vsel %vm95, %v210, -inf
  %234 = vmax.xlane.f32.xlu0 %v233
  %v235 = vpop.xlane.xlu0 %234
  %v236 = vsel %vm95, %v213, -inf
  %237 = vmax.xlane.f32.xlu0 %v236
  %v238 = vpop.xlane.xlu0 %237
  %v239 = vsel %vm95, %v216, -inf
  %240 = vmax.xlane.f32.xlu0 %v239
  %v241 = vpop.xlane.xlu0 %240
  %v242 = vsel %vm95, %v219, -inf
  %243 = vmax.xlane.f32.xlu0 %v242
  %v244 = vpop.xlane.xlu0 %243
  %v245 = vsel %vm95, %v222, -inf
  %246 = vmax.xlane.f32.xlu0 %v245
  %v247 = vpop.xlane.xlu0 %246
  %v248 = vsel %vm95, %v225, -inf
  %249 = vmax.xlane.f32.xlu0 %v248
  %v250 = vpop.xlane.xlu0 %249
  %v251 = vsub.f32 %v204, %v229
  %v252 = vsub.f32 %v207, %v232
  %v253 = vsub.f32 %v210, %v235
  %v254 = vsub.f32 %v213, %v238
  %v255 = vsub.f32 %v216, %v241
  %v256 = vsub.f32 %v219, %v244
  %v257 = vsub.f32 %v222, %v247
  %v258 = vsub.f32 %v225, %v250
  %v259 = vmul.f32 %v251, 1.442695
  %v260 = vpow.pop %v259
  %v261 = vmul.f32 %v252, 1.442695
  %v262 = vpow.pop %v261
  %v263 = vmul.f32 %v253, 1.442695
  %v264 = vpow.pop %v263
  %v265 = vmul.f32 %v254, 1.442695
  %v266 = vpow.pop %v265
  %v267 = vmul.f32 %v255, 1.442695
  %v268 = vpow.pop %v267
  %v269 = vmul.f32 %v256, 1.442695
  %v270 = vpow.pop %v269
  %v271 = vmul.f32 %v257, 1.442695
  %v272 = vpow.pop %v271
  %v273 = vmul.f32 %v258, 1.442695
  %v274 = vpow.pop %v273
  %v275 = vsel %vm95, %v260, 0.0
  %276 = vadd.xlane.f32.xlu0 %v275
  %v277 = vpop.xlane.xlu0 %276
  %v278 = vsel %vm95, %v262, 0.0
  %279 = vadd.xlane.f32.xlu0 %v278
  %v280 = vpop.xlane.xlu0 %279
  %v281 = vsel %vm95, %v264, 0.0
  %282 = vadd.xlane.f32.xlu0 %v281
  %v283 = vpop.xlane.xlu0 %282
  %v284 = vsel %vm95, %v266, 0.0
  %285 = vadd.xlane.f32.xlu0 %v284
  %v286 = vpop.xlane.xlu0 %285
  %v287 = vsel %vm95, %v268, 0.0
  %288 = vadd.xlane.f32.xlu0 %v287
  %v289 = vpop.xlane.xlu0 %288
  %v290 = vsel %vm95, %v270, 0.0
  %291 = vadd.xlane.f32.xlu0 %v290
  %v292 = vpop.xlane.xlu0 %291
  %v293 = vsel %vm95, %v272, 0.0
  %294 = vadd.xlane.f32.xlu0 %v293
  %v295 = vpop.xlane.xlu0 %294
  %v296 = vsel %vm95, %v274, 0.0
  %297 = vadd.xlane.f32.xlu0 %v296
  %v298 = vpop.xlane.xlu0 %297
  %v299 = vrcp.pop %v277
  %v300 = vrcp.pop %v280
  %v301 = vrcp.pop %v283
  %v302 = vrcp.pop %v286
  %v303 = vrcp.pop %v289
  %v304 = vrcp.pop %v292
  %v305 = vrcp.pop %v295
  %v306 = vrcp.pop %v298
  %v307 = vmul.f32 %v260, %v299
  %v308 = vmul.f32 %v262, %v300
  %v309 = vmul.f32 %v264, %v301
  %v310 = vmul.f32 %v266, %v302
  %v311 = vmul.f32 %v268, %v303
  %v312 = vmul.f32 %v270, %v304
  %v313 = vmul.f32 %v272, %v305
  %v314 = vmul.f32 %v274, %v306
  %v316 = vsel %vm95, %v307, 0
  %v319 = vsel %vm95, %v308, 0
  %v322 = vsel %vm95, %v309, 0
  %v325 = vsel %vm95, %v310, 0
  %v328 = vsel %vm95, %v311, 0
  %v331 = vsel %vm95, %v312, 0
  %v334 = vsel %vm95, %v313, 0
  %v337 = vsel %vm95, %v314, 0
  %339 = vmatpush.msra.mxu0 0.0
  %340 = vmatpush.msra.mxu0 0.0
  %341 = vmatpush.msra.mxu0 0.0
  %342 = vmatpush.msra.mxu0 0.0
  %343 = vmatpush.msra.mxu0 0.0
  %344 = vmatpush.msra.mxu0 0.0
  %345 = vmatpush.msra.mxu0 0.0
  %346 = vmatpush.msra.mxu0 0.0
  %347 = vmatpush.msra.mxu0 %v159
  %348 = vmatpush.msra.mxu0 %v156
  %349 = vmatpush.msra.mxu0 %v153
  %350 = vmatpush.msra.mxu0 %v150
  %351 = vmatpush.msra.mxu0 %v147
  %352 = vmatpush.msra.mxu0 %v144
  %353 = vmatpush.msra.mxu0 %v141
  %354 = vmatpush.msra.mxu0 %v138
  %355 = vmatmul.f32.gmra.mxu0 %v316
  %v356 = vpop.f32.mrf.mxu0
  %v357 = vadd.f32 0.0, %v356
  %358 = vmatmul.f32.gmra.mxu0 %v319
  %v359 = vpop.f32.mrf.mxu0
  %v360 = vadd.f32 0.0, %v359
  %361 = vmatmul.f32.gmra.mxu0 %v322
  %v362 = vpop.f32.mrf.mxu0
  %v363 = vadd.f32 0.0, %v362
  %364 = vmatmul.f32.gmra.mxu0 %v325
  %v365 = vpop.f32.mrf.mxu0
  %v366 = vadd.f32 0.0, %v365
  %367 = vmatmul.f32.gmra.mxu0 %v328
  %v368 = vpop.f32.mrf.mxu0
  %v369 = vadd.f32 0.0, %v368
  %370 = vmatmul.f32.gmra.mxu0 %v331
  %v371 = vpop.f32.mrf.mxu0
  %v372 = vadd.f32 0.0, %v371
  %373 = vmatmul.f32.gmra.mxu0 %v334
  %v374 = vpop.f32.mrf.mxu0
  %v375 = vadd.f32 0.0, %v374
  %376 = vmatmul.f32.gmra.mxu0 %v337
  %v377 = vpop.f32.mrf.mxu0
  %v378 = vadd.f32 0.0, %v377
  %379 = vdwg.mxu0
  %s380 = sld [smem:[#allocation2]]
  %v381 = vstv %s380
  %v382 = vmul.f32 %v381, %v357
  %v383 = vmul.f32 %v381, %v360
  %v384 = vmul.f32 %v381, %v363
  %v385 = vmul.f32 %v381, %v366
  %v386 = vmul.f32 %v381, %v369
  %v387 = vmul.f32 %v381, %v372
  %v388 = vmul.f32 %v381, %v375
  %v389 = vmul.f32 %v381, %v378
  %v390 = vadd.f32 %v382, %v138
  %v391 = vadd.f32 %v383, %v141
  %v392 = vadd.f32 %v384, %v144
  %v393 = vadd.f32 %v385, %v147
  %v394 = vadd.f32 %v386, %v150
  %v395 = vadd.f32 %v387, %v153
  %v396 = vadd.f32 %v388, %v156
  %v397 = vadd.f32 %v389, %v159
  %398 = vst.msk [vmem:[%s7] sm:$0xff] %vm161, %v390
  %399 = vst.msk [vmem:[%s7 + $0x8] sm:$0xff] %vm161, %v391
  %400 = vst.msk [vmem:[%s7 + $0x10] sm:$0xff] %vm161, %v392
  %401 = vst.msk [vmem:[%s7 + $0x18] sm:$0xff] %vm161, %v393
  %402 = vst.msk [vmem:[%s7 + $0x20] sm:$0xff] %vm161, %v394
  %403 = vst.msk [vmem:[%s7 + $0x28] sm:$0xff] %vm161, %v395
  %404 = vst.msk [vmem:[%s7 + $0x30] sm:$0xff] %vm161, %v396
  %405 = vst.msk [vmem:[%s7 + $0x38] sm:$0xff] %vm161, %v397
  %v406 = vld [vmem:[%s5] sm:$0xf]
  %v407 = vmul.f32 %v406, %v406
  %v409 = vsel %vm161, 1.0, 0
  %v412 = vsel %vm161, %v407, 0
  %414 = vmatpush.xpose.msra.mxu0 0.0
  %415 = vmatpush.xpose.msra.mxu0 0.0
  %416 = vmatpush.xpose.msra.mxu0 0.0
  %417 = vmatpush.xpose.msra.mxu0 0.0
  %418 = vmatpush.xpose.msra.mxu0 0.0
  %419 = vmatpush.xpose.msra.mxu0 0.0
  %420 = vmatpush.xpose.msra.mxu0 0.0
  %421 = vmatpush.xpose.msra.mxu0 0.0
  %422 = vmatpush.xpose.msra.mxu0 0.0
  %423 = vmatpush.xpose.msra.mxu0 0.0
  %424 = vmatpush.xpose.msra.mxu0 0.0
  %425 = vmatpush.xpose.msra.mxu0 0.0
  %426 = vmatpush.xpose.msra.mxu0 0.0
  %427 = vmatpush.xpose.msra.mxu0 0.0
  %428 = vmatpush.xpose.msra.mxu0 0.0
  %429 = vmatpush.xpose.msra.mxu0 %v412
  %430 = vmatmul.f32.gmra.mxu0 %v409
  %v431 = vpop.f32.mrf.mxu0
  %v432 = vadd.f32 0.0, %v431
  %433 = vdwg.mxu0
  %v434 = vmul.f32 %v390, %v390
  %v435 = vmul.f32 %v391, %v391
  %v436 = vmul.f32 %v392, %v392
  %v437 = vmul.f32 %v393, %v393
  %v438 = vmul.f32 %v394, %v394
  %v439 = vmul.f32 %v395, %v395
  %v440 = vmul.f32 %v396, %v396
  %v441 = vmul.f32 %v397, %v397
  %v442 = vsel %vm161, %v434, 0.0
  %443 = vadd.xlane.f32.xlu0 %v442
  %v444 = vpop.xlane.xlu0 %443
  %v445 = vsel %vm161, %v435, 0.0
  %446 = vadd.xlane.f32.xlu0 %v445
  %v447 = vpop.xlane.xlu0 %446
  %v448 = vsel %vm161, %v436, 0.0
  %449 = vadd.xlane.f32.xlu0 %v448
  %v450 = vpop.xlane.xlu0 %449
  %v451 = vsel %vm161, %v437, 0.0
  %452 = vadd.xlane.f32.xlu0 %v451
  %v453 = vpop.xlane.xlu0 %452
  %v454 = vsel %vm161, %v438, 0.0
  %455 = vadd.xlane.f32.xlu0 %v454
  %v456 = vpop.xlane.xlu0 %455
  %v457 = vsel %vm161, %v439, 0.0
  %458 = vadd.xlane.f32.xlu0 %v457
  %v459 = vpop.xlane.xlu0 %458
  %v460 = vsel %vm161, %v440, 0.0
  %461 = vadd.xlane.f32.xlu0 %v460
  %v462 = vpop.xlane.xlu0 %461
  %v463 = vsel %vm161, %v441, 0.0
  %464 = vadd.xlane.f32.xlu0 %v463
  %v465 = vpop.xlane.xlu0 %464
  %v467 = vsel %vm161, %v390, 0
  %v470 = vsel %vm161, %v391, 0
  %v473 = vsel %vm161, %v392, 0
  %v476 = vsel %vm161, %v393, 0
  %v479 = vsel %vm161, %v394, 0
  %v482 = vsel %vm161, %v395, 0
  %v485 = vsel %vm161, %v396, 0
  %v488 = vsel %vm161, %v397, 0
  %v491 = vsel %vm161, %v406, 0
  %493 = vmatpush.xpose.msra.mxu0 0.0
  %494 = vmatpush.xpose.msra.mxu0 0.0
  %495 = vmatpush.xpose.msra.mxu0 0.0
  %496 = vmatpush.xpose.msra.mxu0 0.0
  %497 = vmatpush.xpose.msra.mxu0 0.0
  %498 = vmatpush.xpose.msra.mxu0 0.0
  %499 = vmatpush.xpose.msra.mxu0 0.0
  %500 = vmatpush.xpose.msra.mxu0 0.0
  %501 = vmatpush.xpose.msra.mxu0 0.0
  %502 = vmatpush.xpose.msra.mxu0 0.0
  %503 = vmatpush.xpose.msra.mxu0 0.0
  %504 = vmatpush.xpose.msra.mxu0 0.0
  %505 = vmatpush.xpose.msra.mxu0 0.0
  %506 = vmatpush.xpose.msra.mxu0 0.0
  %507 = vmatpush.xpose.msra.mxu0 0.0
  %508 = vmatpush.xpose.msra.mxu0 %v491
  %509 = vmatmul.f32.gmra.mxu0 %v467
  %v510 = vpop.f32.mrf.mxu0
  %v511 = vadd.f32 0.0, %v510
  %512 = vmatmul.f32.gmra.mxu0 %v470
  %v513 = vpop.f32.mrf.mxu0
  %v514 = vadd.f32 0.0, %v513
  %515 = vmatmul.f32.gmra.mxu0 %v473
  %v516 = vpop.f32.mrf.mxu0
  %v517 = vadd.f32 0.0, %v516
  %518 = vmatmul.f32.gmra.mxu0 %v476
  %v519 = vpop.f32.mrf.mxu0
  %v520 = vadd.f32 0.0, %v519
  %521 = vmatmul.f32.gmra.mxu0 %v479
  %v522 = vpop.f32.mrf.mxu0
  %v523 = vadd.f32 0.0, %v522
  %524 = vmatmul.f32.gmra.mxu0 %v482
  %v525 = vpop.f32.mrf.mxu0
  %v526 = vadd.f32 0.0, %v525
  %527 = vmatmul.f32.gmra.mxu0 %v485
  %v528 = vpop.f32.mrf.mxu0
  %v529 = vadd.f32 0.0, %v528
  %530 = vmatmul.f32.gmra.mxu0 %v488
  %v531 = vpop.f32.mrf.mxu0
  %v532 = vadd.f32 0.0, %v531
  %533 = vdwg.mxu0
  %v534 = vmul.f32 %v511, 2.0
  %v535 = vmul.f32 %v514, 2.0
  %v536 = vmul.f32 %v517, 2.0
  %v537 = vmul.f32 %v520, 2.0
  %v538 = vmul.f32 %v523, 2.0
  %v539 = vmul.f32 %v526, 2.0
  %v540 = vmul.f32 %v529, 2.0
  %v541 = vmul.f32 %v532, 2.0
  %v542 = vsub.f32 %v444, %v534
  %v543 = vsub.f32 %v447, %v535
  %v544 = vsub.f32 %v450, %v536
  %v545 = vsub.f32 %v453, %v537
  %v546 = vsub.f32 %v456, %v538
  %v547 = vsub.f32 %v459, %v539
  %v548 = vsub.f32 %v462, %v540
  %v549 = vsub.f32 %v465, %v541
  %v550 = vperm.slane %v432, 0
  %v551 = vadd.f32 %v542, %v550
  %v552 = vadd.f32 %v543, %v550
  %v553 = vadd.f32 %v544, %v550
  %v554 = vadd.f32 %v545, %v550
  %v555 = vadd.f32 %v546, %v550
  %v556 = vadd.f32 %v547, %v550
  %v557 = vadd.f32 %v548, %v550
  %v558 = vadd.f32 %v549, %v550
  %v559 = vmax.f32 %v551, 0.0
  %v560 = vmax.f32 %v552, 0.0
  %v561 = vmax.f32 %v553, 0.0
  %v562 = vmax.f32 %v554, 0.0
  %v563 = vmax.f32 %v555, 0.0
  %v564 = vmax.f32 %v556, 0.0
  %v565 = vmax.f32 %v557, 0.0
  %v566 = vmax.f32 %v558, 0.0
  %v567 = vadd.f32 %v559, 1.0
  %v568 = vadd.f32 %v560, 1.0
  %v569 = vadd.f32 %v561, 1.0
  %v570 = vadd.f32 %v562, 1.0
  %v571 = vadd.f32 %v563, 1.0
  %v572 = vadd.f32 %v564, 1.0
  %v573 = vadd.f32 %v565, 1.0
  %v574 = vadd.f32 %v566, 1.0
  %v575 = vrcp.pop %v567
  %v576 = vrcp.pop %v568
  %v577 = vrcp.pop %v569
  %v578 = vrcp.pop %v570
  %v579 = vrcp.pop %v571
  %v580 = vrcp.pop %v572
  %v581 = vrcp.pop %v573
  %v582 = vrcp.pop %v574
  %vm583 = vcmask 31744
  %v584 = vsel %vm583, %v575, 0.0
  %585 = vadd.xlane.f32.xlu0 %v584
  %v586 = vpop.xlane.xlu0 %585
  %v587 = vsel %vm583, %v576, 0.0
  %588 = vadd.xlane.f32.xlu0 %v587
  %v589 = vpop.xlane.xlu0 %588
  %v590 = vsel %vm583, %v577, 0.0
  %591 = vadd.xlane.f32.xlu0 %v590
  %v592 = vpop.xlane.xlu0 %591
  %v593 = vsel %vm583, %v578, 0.0
  %594 = vadd.xlane.f32.xlu0 %v593
  %v595 = vpop.xlane.xlu0 %594
  %v596 = vsel %vm583, %v579, 0.0
  %597 = vadd.xlane.f32.xlu0 %v596
  %v598 = vpop.xlane.xlu0 %597
  %v599 = vsel %vm583, %v580, 0.0
  %600 = vadd.xlane.f32.xlu0 %v599
  %v601 = vpop.xlane.xlu0 %600
  %v602 = vsel %vm583, %v581, 0.0
  %603 = vadd.xlane.f32.xlu0 %v602
  %v604 = vpop.xlane.xlu0 %603
  %v605 = vsel %vm583, %v582, 0.0
  %606 = vadd.xlane.f32.xlu0 %v605
  %v607 = vpop.xlane.xlu0 %606
  %v608 = vrcp.pop %v586
  %v609 = vrcp.pop %v589
  %v610 = vrcp.pop %v592
  %v611 = vrcp.pop %v595
  %v612 = vrcp.pop %v598
  %v613 = vrcp.pop %v601
  %v614 = vrcp.pop %v604
  %v615 = vrcp.pop %v607
  %v616 = vmul.f32 %v575, %v608
  %v617 = vmul.f32 %v576, %v609
  %v618 = vmul.f32 %v577, %v610
  %v619 = vmul.f32 %v578, %v611
  %v620 = vmul.f32 %v579, %v612
  %v621 = vmul.f32 %v580, %v613
  %v622 = vmul.f32 %v581, %v614
  %v623 = vmul.f32 %v582, %v615
  %624 = vst.msk [vmem:[%s8] sm:$0xff] %vm583, %v616
  %625 = vst.msk [vmem:[%s8 + $0x8] sm:$0xff] %vm583, %v617
  %626 = vst.msk [vmem:[%s8 + $0x10] sm:$0xff] %vm583, %v618
  %627 = vst.msk [vmem:[%s8 + $0x18] sm:$0xff] %vm583, %v619
  %628 = vst.msk [vmem:[%s8 + $0x20] sm:$0xff] %vm583, %v620
  %629 = vst.msk [vmem:[%s8 + $0x28] sm:$0xff] %vm583, %v621
  %630 = vst.msk [vmem:[%s8 + $0x30] sm:$0xff] %vm583, %v622
  %631 = vst.msk [vmem:[%s8 + $0x38] sm:$0xff] %vm583, %v623
  %v632 = vmul.f32 %v31, %v31
  %v633 = vmul.f32 %v32, %v32
  %v634 = vmul.f32 %v33, %v33
  %v635 = vmul.f32 %v34, %v34
  %v636 = vmul.f32 %v35, %v35
  %v637 = vmul.f32 %v36, %v36
  %v638 = vmul.f32 %v37, %v37
  %v639 = vmul.f32 %v38, %v38
  %v640 = vsel %vm161, %v632, 0.0
  %641 = vadd.xlane.f32.xlu0 %v640
  %v642 = vpop.xlane.xlu0 %641
  %v643 = vsel %vm161, %v633, 0.0
  %644 = vadd.xlane.f32.xlu0 %v643
  %v645 = vpop.xlane.xlu0 %644
  %v646 = vsel %vm161, %v634, 0.0
  %647 = vadd.xlane.f32.xlu0 %v646
  %v648 = vpop.xlane.xlu0 %647
  %v649 = vsel %vm161, %v635, 0.0
  %650 = vadd.xlane.f32.xlu0 %v649
  %v651 = vpop.xlane.xlu0 %650
  %v652 = vsel %vm161, %v636, 0.0
  %653 = vadd.xlane.f32.xlu0 %v652
  %v654 = vpop.xlane.xlu0 %653
  %v655 = vsel %vm161, %v637, 0.0
  %656 = vadd.xlane.f32.xlu0 %v655
  %v657 = vpop.xlane.xlu0 %656
  %v658 = vsel %vm161, %v638, 0.0
  %659 = vadd.xlane.f32.xlu0 %v658
  %v660 = vpop.xlane.xlu0 %659
  %v661 = vsel %vm161, %v639, 0.0
  %662 = vadd.xlane.f32.xlu0 %v661
  %v663 = vpop.xlane.xlu0 %662
  %v665 = vsel %vm161, %v31, 0
  %v668 = vsel %vm161, %v32, 0
  %v671 = vsel %vm161, %v33, 0
  %v674 = vsel %vm161, %v34, 0
  %v677 = vsel %vm161, %v35, 0
  %v680 = vsel %vm161, %v36, 0
  %v683 = vsel %vm161, %v37, 0
  %v686 = vsel %vm161, %v38, 0
  %688 = vmatpush.xpose.msra.mxu0 0.0
  %689 = vmatpush.xpose.msra.mxu0 0.0
  %690 = vmatpush.xpose.msra.mxu0 0.0
  %691 = vmatpush.xpose.msra.mxu0 0.0
  %692 = vmatpush.xpose.msra.mxu0 0.0
  %693 = vmatpush.xpose.msra.mxu0 0.0
  %694 = vmatpush.xpose.msra.mxu0 0.0
  %695 = vmatpush.xpose.msra.mxu0 0.0
  %696 = vmatpush.xpose.msra.mxu0 0.0
  %697 = vmatpush.xpose.msra.mxu0 0.0
  %698 = vmatpush.xpose.msra.mxu0 0.0
  %699 = vmatpush.xpose.msra.mxu0 0.0
  %700 = vmatpush.xpose.msra.mxu0 0.0
  %701 = vmatpush.xpose.msra.mxu0 0.0
  %702 = vmatpush.xpose.msra.mxu0 0.0
  %703 = vmatpush.xpose.msra.mxu0 %v491
  %704 = vmatmul.f32.gmra.mxu0 %v665
  %v705 = vpop.f32.mrf.mxu0
  %v706 = vadd.f32 0.0, %v705
  %707 = vmatmul.f32.gmra.mxu0 %v668
  %v708 = vpop.f32.mrf.mxu0
  %v709 = vadd.f32 0.0, %v708
  %710 = vmatmul.f32.gmra.mxu0 %v671
  %v711 = vpop.f32.mrf.mxu0
  %v712 = vadd.f32 0.0, %v711
  %713 = vmatmul.f32.gmra.mxu0 %v674
  %v714 = vpop.f32.mrf.mxu0
  %v715 = vadd.f32 0.0, %v714
  %716 = vmatmul.f32.gmra.mxu0 %v677
  %v717 = vpop.f32.mrf.mxu0
  %v718 = vadd.f32 0.0, %v717
  %719 = vmatmul.f32.gmra.mxu0 %v680
  %v720 = vpop.f32.mrf.mxu0
  %v721 = vadd.f32 0.0, %v720
  %722 = vmatmul.f32.gmra.mxu0 %v683
  %v723 = vpop.f32.mrf.mxu0
  %v724 = vadd.f32 0.0, %v723
  %725 = vmatmul.f32.gmra.mxu0 %v686
  %v726 = vpop.f32.mrf.mxu0
  %v727 = vadd.f32 0.0, %v726
  %728 = vdwg.mxu0
  %v729 = vmul.f32 %v706, 2.0
  %v730 = vmul.f32 %v709, 2.0
  %v731 = vmul.f32 %v712, 2.0
  %v732 = vmul.f32 %v715, 2.0
  %v733 = vmul.f32 %v718, 2.0
  %v734 = vmul.f32 %v721, 2.0
  %v735 = vmul.f32 %v724, 2.0
  %v736 = vmul.f32 %v727, 2.0
  %v737 = vsub.f32 %v642, %v729
  %v738 = vsub.f32 %v645, %v730
  %v739 = vsub.f32 %v648, %v731
  %v740 = vsub.f32 %v651, %v732
  %v741 = vsub.f32 %v654, %v733
  %v742 = vsub.f32 %v657, %v734
  %v743 = vsub.f32 %v660, %v735
  %v744 = vsub.f32 %v663, %v736
  %v745 = vadd.f32 %v737, %v550
  %v746 = vadd.f32 %v738, %v550
  %v747 = vadd.f32 %v739, %v550
  %v748 = vadd.f32 %v740, %v550
  %v749 = vadd.f32 %v741, %v550
  %v750 = vadd.f32 %v742, %v550
  %v751 = vadd.f32 %v743, %v550
  %v752 = vadd.f32 %v744, %v550
  %v753 = vmax.f32 %v745, 0.0
  %v754 = vmax.f32 %v746, 0.0
  %v755 = vmax.f32 %v747, 0.0
  %v756 = vmax.f32 %v748, 0.0
  %v757 = vmax.f32 %v749, 0.0
  %v758 = vmax.f32 %v750, 0.0
  %v759 = vmax.f32 %v751, 0.0
  %v760 = vmax.f32 %v752, 0.0
  %v761 = vadd.f32 %v753, 1.0
  %v762 = vadd.f32 %v754, 1.0
  %v763 = vadd.f32 %v755, 1.0
  %v764 = vadd.f32 %v756, 1.0
  %v765 = vadd.f32 %v757, 1.0
  %v766 = vadd.f32 %v758, 1.0
  %v767 = vadd.f32 %v759, 1.0
  %v768 = vadd.f32 %v760, 1.0
  %v769 = vrcp.pop %v761
  %v770 = vrcp.pop %v762
  %v771 = vrcp.pop %v763
  %v772 = vrcp.pop %v764
  %v773 = vrcp.pop %v765
  %v774 = vrcp.pop %v766
  %v775 = vrcp.pop %v767
  %v776 = vrcp.pop %v768
  %v777 = vsel %vm583, %v769, 0.0
  %778 = vadd.xlane.f32.xlu0 %v777
  %v779 = vpop.xlane.xlu0 %778
  %v780 = vsel %vm583, %v770, 0.0
  %781 = vadd.xlane.f32.xlu0 %v780
  %v782 = vpop.xlane.xlu0 %781
  %v783 = vsel %vm583, %v771, 0.0
  %784 = vadd.xlane.f32.xlu0 %v783
  %v785 = vpop.xlane.xlu0 %784
  %v786 = vsel %vm583, %v772, 0.0
  %787 = vadd.xlane.f32.xlu0 %v786
  %v788 = vpop.xlane.xlu0 %787
  %v789 = vsel %vm583, %v773, 0.0
  %790 = vadd.xlane.f32.xlu0 %v789
  %v791 = vpop.xlane.xlu0 %790
  %v792 = vsel %vm583, %v774, 0.0
  %793 = vadd.xlane.f32.xlu0 %v792
  %v794 = vpop.xlane.xlu0 %793
  %v795 = vsel %vm583, %v775, 0.0
  %796 = vadd.xlane.f32.xlu0 %v795
  %v797 = vpop.xlane.xlu0 %796
  %v798 = vsel %vm583, %v776, 0.0
  %799 = vadd.xlane.f32.xlu0 %v798
  %v800 = vpop.xlane.xlu0 %799
  %v801 = vrcp.pop %v779
  %v802 = vrcp.pop %v782
  %v803 = vrcp.pop %v785
  %v804 = vrcp.pop %v788
  %v805 = vrcp.pop %v791
  %v806 = vrcp.pop %v794
  %v807 = vrcp.pop %v797
  %v808 = vrcp.pop %v800
  %v809 = vmul.f32 %v769, %v801
  %v810 = vmul.f32 %v770, %v802
  %v811 = vmul.f32 %v771, %v803
  %v812 = vmul.f32 %v772, %v804
  %v813 = vmul.f32 %v773, %v805
  %v814 = vmul.f32 %v774, %v806
  %v815 = vmul.f32 %v775, %v807
  %v816 = vmul.f32 %v776, %v808
  %817 = vst.msk [vmem:[%s9] sm:$0xff] %vm583, %v809
  %818 = vst.msk [vmem:[%s9 + $0x8] sm:$0xff] %vm583, %v810
  %819 = vst.msk [vmem:[%s9 + $0x10] sm:$0xff] %vm583, %v811
  %820 = vst.msk [vmem:[%s9 + $0x18] sm:$0xff] %vm583, %v812
  %821 = vst.msk [vmem:[%s9 + $0x20] sm:$0xff] %vm583, %v813
  %822 = vst.msk [vmem:[%s9 + $0x28] sm:$0xff] %vm583, %v814
  %823 = vst.msk [vmem:[%s9 + $0x30] sm:$0xff] %vm583, %v815
  %824 = vst.msk [vmem:[%s9 + $0x38] sm:$0xff] %vm583, %v816
  %v825 = vmul.f32 %v39, %v39
  %v826 = vmul.f32 %v40, %v40
  %v827 = vmul.f32 %v41, %v41
  %v828 = vmul.f32 %v42, %v42
  %v829 = vmul.f32 %v43, %v43
  %v830 = vmul.f32 %v44, %v44
  %v831 = vmul.f32 %v45, %v45
  %v832 = vmul.f32 %v46, %v46
  %v833 = vsel %vm161, %v825, 0.0
  %834 = vadd.xlane.f32.xlu0 %v833
  %v835 = vpop.xlane.xlu0 %834
  %v836 = vsel %vm161, %v826, 0.0
  %837 = vadd.xlane.f32.xlu0 %v836
  %v838 = vpop.xlane.xlu0 %837
  %v839 = vsel %vm161, %v827, 0.0
  %840 = vadd.xlane.f32.xlu0 %v839
  %v841 = vpop.xlane.xlu0 %840
  %v842 = vsel %vm161, %v828, 0.0
  %843 = vadd.xlane.f32.xlu0 %v842
  %v844 = vpop.xlane.xlu0 %843
  %v845 = vsel %vm161, %v829, 0.0
  %846 = vadd.xlane.f32.xlu0 %v845
  %v847 = vpop.xlane.xlu0 %846
  %v848 = vsel %vm161, %v830, 0.0
  %849 = vadd.xlane.f32.xlu0 %v848
  %v850 = vpop.xlane.xlu0 %849
  %v851 = vsel %vm161, %v831, 0.0
  %852 = vadd.xlane.f32.xlu0 %v851
  %v853 = vpop.xlane.xlu0 %852
  %v854 = vsel %vm161, %v832, 0.0
  %855 = vadd.xlane.f32.xlu0 %v854
  %v856 = vpop.xlane.xlu0 %855
  %v858 = vsel %vm161, %v39, 0
  %v861 = vsel %vm161, %v40, 0
  %v864 = vsel %vm161, %v41, 0
  %v867 = vsel %vm161, %v42, 0
  %v870 = vsel %vm161, %v43, 0
  %v873 = vsel %vm161, %v44, 0
  %v876 = vsel %vm161, %v45, 0
  %v879 = vsel %vm161, %v46, 0
  %881 = vmatpush.xpose.msra.mxu0 0.0
  %882 = vmatpush.xpose.msra.mxu0 0.0
  %883 = vmatpush.xpose.msra.mxu0 0.0
  %884 = vmatpush.xpose.msra.mxu0 0.0
  %885 = vmatpush.xpose.msra.mxu0 0.0
  %886 = vmatpush.xpose.msra.mxu0 0.0
  %887 = vmatpush.xpose.msra.mxu0 0.0
  %888 = vmatpush.xpose.msra.mxu0 0.0
  %889 = vmatpush.xpose.msra.mxu0 0.0
  %890 = vmatpush.xpose.msra.mxu0 0.0
  %891 = vmatpush.xpose.msra.mxu0 0.0
  %892 = vmatpush.xpose.msra.mxu0 0.0
  %893 = vmatpush.xpose.msra.mxu0 0.0
  %894 = vmatpush.xpose.msra.mxu0 0.0
  %895 = vmatpush.xpose.msra.mxu0 0.0
  %896 = vmatpush.xpose.msra.mxu0 %v491
  %897 = vmatmul.f32.gmra.mxu0 %v858
  %v898 = vpop.f32.mrf.mxu0
  %v899 = vadd.f32 0.0, %v898
  %900 = vmatmul.f32.gmra.mxu0 %v861
  %v901 = vpop.f32.mrf.mxu0
  %v902 = vadd.f32 0.0, %v901
  %903 = vmatmul.f32.gmra.mxu0 %v864
  %v904 = vpop.f32.mrf.mxu0
  %v905 = vadd.f32 0.0, %v904
  %906 = vmatmul.f32.gmra.mxu0 %v867
  %v907 = vpop.f32.mrf.mxu0
  %v908 = vadd.f32 0.0, %v907
  %909 = vmatmul.f32.gmra.mxu0 %v870
  %v910 = vpop.f32.mrf.mxu0
  %v911 = vadd.f32 0.0, %v910
  %912 = vmatmul.f32.gmra.mxu0 %v873
  %v913 = vpop.f32.mrf.mxu0
  %v914 = vadd.f32 0.0, %v913
  %915 = vmatmul.f32.gmra.mxu0 %v876
  %v916 = vpop.f32.mrf.mxu0
  %v917 = vadd.f32 0.0, %v916
  %918 = vmatmul.f32.gmra.mxu0 %v879
  %v919 = vpop.f32.mrf.mxu0
  %v920 = vadd.f32 0.0, %v919
  %921 = vdwg.mxu0
  %v922 = vmul.f32 %v899, 2.0
  %v923 = vmul.f32 %v902, 2.0
  %v924 = vmul.f32 %v905, 2.0
  %v925 = vmul.f32 %v908, 2.0
  %v926 = vmul.f32 %v911, 2.0
  %v927 = vmul.f32 %v914, 2.0
  %v928 = vmul.f32 %v917, 2.0
  %v929 = vmul.f32 %v920, 2.0
  %v930 = vsub.f32 %v835, %v922
  %v931 = vsub.f32 %v838, %v923
  %v932 = vsub.f32 %v841, %v924
  %v933 = vsub.f32 %v844, %v925
  %v934 = vsub.f32 %v847, %v926
  %v935 = vsub.f32 %v850, %v927
  %v936 = vsub.f32 %v853, %v928
  %v937 = vsub.f32 %v856, %v929
  %v938 = vadd.f32 %v930, %v550
  %v939 = vadd.f32 %v931, %v550
  %v940 = vadd.f32 %v932, %v550
  %v941 = vadd.f32 %v933, %v550
  %v942 = vadd.f32 %v934, %v550
  %v943 = vadd.f32 %v935, %v550
  %v944 = vadd.f32 %v936, %v550
  %v945 = vadd.f32 %v937, %v550
  %v946 = vmax.f32 %v938, 0.0
  %v947 = vmax.f32 %v939, 0.0
  %v948 = vmax.f32 %v940, 0.0
  %v949 = vmax.f32 %v941, 0.0
  %v950 = vmax.f32 %v942, 0.0
  %v951 = vmax.f32 %v943, 0.0
  %v952 = vmax.f32 %v944, 0.0
  %v953 = vmax.f32 %v945, 0.0
  %v954 = vadd.f32 %v946, 1.0
  %v955 = vadd.f32 %v947, 1.0
  %v956 = vadd.f32 %v948, 1.0
  %v957 = vadd.f32 %v949, 1.0
  %v958 = vadd.f32 %v950, 1.0
  %v959 = vadd.f32 %v951, 1.0
  %v960 = vadd.f32 %v952, 1.0
  %v961 = vadd.f32 %v953, 1.0
  %v962 = vrcp.pop %v954
  %v963 = vrcp.pop %v955
  %v964 = vrcp.pop %v956
  %v965 = vrcp.pop %v957
  %v966 = vrcp.pop %v958
  %v967 = vrcp.pop %v959
  %v968 = vrcp.pop %v960
  %v969 = vrcp.pop %v961
  %v970 = vsel %vm583, %v962, 0.0
  %971 = vadd.xlane.f32.xlu0 %v970
  %v972 = vpop.xlane.xlu0 %971
  %v973 = vsel %vm583, %v963, 0.0
  %974 = vadd.xlane.f32.xlu0 %v973
  %v975 = vpop.xlane.xlu0 %974
  %v976 = vsel %vm583, %v964, 0.0
  %977 = vadd.xlane.f32.xlu0 %v976
  %v978 = vpop.xlane.xlu0 %977
  %v979 = vsel %vm583, %v965, 0.0
  %980 = vadd.xlane.f32.xlu0 %v979
  %v981 = vpop.xlane.xlu0 %980
  %v982 = vsel %vm583, %v966, 0.0
  %983 = vadd.xlane.f32.xlu0 %v982
  %v984 = vpop.xlane.xlu0 %983
  %v985 = vsel %vm583, %v967, 0.0
  %986 = vadd.xlane.f32.xlu0 %v985
  %v987 = vpop.xlane.xlu0 %986
  %v988 = vsel %vm583, %v968, 0.0
  %989 = vadd.xlane.f32.xlu0 %v988
  %v990 = vpop.xlane.xlu0 %989
  %v991 = vsel %vm583, %v969, 0.0
  %992 = vadd.xlane.f32.xlu0 %v991
  %v993 = vpop.xlane.xlu0 %992
  %v994 = vrcp.pop %v972
  %v995 = vrcp.pop %v975
  %v996 = vrcp.pop %v978
  %v997 = vrcp.pop %v981
  %v998 = vrcp.pop %v984
  %v999 = vrcp.pop %v987
  %v1000 = vrcp.pop %v990
  %v1001 = vrcp.pop %v993
  %v1002 = vmul.f32 %v962, %v994
  %v1003 = vmul.f32 %v963, %v995
  %v1004 = vmul.f32 %v964, %v996
  %v1005 = vmul.f32 %v965, %v997
  %v1006 = vmul.f32 %v966, %v998
  %v1007 = vmul.f32 %v967, %v999
  %v1008 = vmul.f32 %v968, %v1000
  %v1009 = vmul.f32 %v969, %v1001
  %1010 = vst.msk [vmem:[%s10] sm:$0xff] %vm583, %v1002
  %1011 = vst.msk [vmem:[%s10 + $0x8] sm:$0xff] %vm583, %v1003
  %1012 = vst.msk [vmem:[%s10 + $0x10] sm:$0xff] %vm583, %v1004
  %1013 = vst.msk [vmem:[%s10 + $0x18] sm:$0xff] %vm583, %v1005
  %1014 = vst.msk [vmem:[%s10 + $0x20] sm:$0xff] %vm583, %v1006
  %1015 = vst.msk [vmem:[%s10 + $0x28] sm:$0xff] %vm583, %v1007
  %1016 = vst.msk [vmem:[%s10 + $0x30] sm:$0xff] %vm583, %v1008
  %1017 = vst.msk [vmem:[%s10 + $0x38] sm:$0xff] %vm583, %v1009
  // Predicated region
  $region30: #{dcrn_forward.7} parent=0 // pred_check
    _
  $region31: #{dcrn_forward.7} parent=0 // pred_check_branch
    %1019 = sbr.rel (0) target = $region33
  $region32: #{dcrn_forward.7} parent=0 // pred_region
    _
  $region33: #{dcrn_forward.7} parent=0 // pred_fallthru
    _
  // Predicated region
  $region34: #{dcrn_forward.7} parent=0 // pred_check
    _
  $region35: #{dcrn_forward.7} parent=0 // pred_check_branch
    %1021 = sbr.rel (0) target = $region37
  $region36: #{dcrn_forward.7} parent=0 // pred_region
    _
  $region37: #{dcrn_forward.7} parent=0 // pred_fallthru
    _
  // Predicated region
  $region38: #{dcrn_forward.7} parent=0 // pred_check
    _
  $region39: #{dcrn_forward.7} parent=0 // pred_check_branch
    %1023 = sbr.rel (0) target = $region41
  $region40: #{dcrn_forward.7} parent=0 // pred_region
    _
  $region41: #{dcrn_forward.7} parent=0 // pred_fallthru
    _
  // Predicated region
  $region42: #{dcrn_forward.7} parent=0 // pred_check
    _
  $region43: #{dcrn_forward.7} parent=0 // pred_check_branch
    %1025 = sbr.rel (0) target = $region45
  $region44: #{dcrn_forward.7} parent=0 // pred_region
    _
  $region45: #{dcrn_forward.7} parent=0 // pred_fallthru
    _
  // Predicated region
  $region46: #{dcrn_forward.7} parent=0 // pred_check
    _
  $region47: #{dcrn_forward.7} parent=0 // pred_check_branch
    %1027 = sbr.rel (0) target = $region49
  $region48: #{dcrn_forward.7} parent=0 // pred_region
    _
  $region49: #{dcrn_forward.7} parent=0 // pred_fallthru
    _
  // Predicated region
  $region50: #{dcrn_forward.7} parent=0 // pred_check
    _
  $region51: #{dcrn_forward.7} parent=0 // pred_check_branch
    %1029 = sbr.rel (0) target = $region53
  $region52: #{dcrn_forward.7} parent=0 // pred_region
    _
  $region53: #{dcrn_forward.7} parent=0 // pred_fallthru
    _
  // Predicated region
  $region54: #{dcrn_forward.7} parent=0 // pred_check
    _
  $region55: #{dcrn_forward.7} parent=0 // pred_check_branch
    %1031 = sbr.rel (0) target = $region57
  $region56: #{dcrn_forward.7} parent=0 // pred_region
    _
  $region57: #{dcrn_forward.7} parent=0 // pred_fallthru
    _
  // Predicated region
  $region58: #{dcrn_forward.7} parent=0 // pred_check
    _
  $region59: #{dcrn_forward.7} parent=0 // pred_check_branch
    %1033 = sbr.rel (0) target = $region61
  $region60: #{dcrn_forward.7} parent=0 // pred_region
    _
  $region61: #{dcrn_forward.7} parent=0 // pred_fallthru
    _

// kernel: dcrn_forward.9
$region0: #{dcrn_forward.9}
  #allocation0 [shape = 'u32[]', space=smem, size = 0x4, offset = 0x4, fixed_abs, tag = 'smem constant byte address 0x4 - core index']
  #allocation1 [shape = 'u32[72,128]{1,0:T(1,128)}', space=vmem, size = 0x9000, scoped, tag = 'internal scratch']
  %s0 = inlined_call_operand.vmem [shape: f32[64,8], index: 0, kind: input, shape index: {}]
  %s1 = inlined_call_operand.vmem [shape: f32[64,64], index: 1, kind: input, shape index: {}]
  %s2 = inlined_call_operand.vmem [shape: f32[64,64], index: 2, kind: input, shape index: {}]
  %s3 = inlined_call_operand.vmem [shape: f32[8,16], index: 3, kind: input, shape index: {}]
  %s4 = inlined_call_operand.vmem [shape: f32[16,32], index: 4, kind: input, shape index: {}]
  %s5 = inlined_call_operand.vmem [shape: f32[32,32], index: 5, kind: input, shape index: {}]
  %s6 = inlined_call_operand.vmem [shape: f32[64,32], index: 6, kind: output, shape index: {0}]
  %s7 = inlined_call_operand.hbm [shape: f32[64,64], index: 7, kind: output, shape index: {1}]
  %s8 = inlined_call_operand.hbm [shape: f32[64,64], index: 8, kind: output, shape index: {2}]
  %s9 = inlined_call_operand.vmem [shape: f32[64,16], index: 9, kind: output, shape index: {3}]
  %s10 = inlined_call_operand.vmem [shape: f32[64,32], index: 10, kind: output, shape index: {4}]
  %s11 = inlined_call_operand.vmem [shape: f32[64,16], index: 11, kind: output, shape index: {5}]
  %s12 = inlined_call_operand.vmem [shape: f32[64,32], index: 12, kind: output, shape index: {6}]
  %s13 = inlined_call_operand.vmem [shape: f32[64,32], index: 13, kind: output, shape index: {7}]
  %14 = xla_tuple %s6, %s7, %s8, %s9, %s10, %s11, %s12, %s13
  %s15 = sld [smem:[#allocation0]]
  $region90: #{dcrn_forward.9} parent=0
    _
  %s17 = ssub.s32 1, %s15
  %s18 = scalar_select 0, %s17, %s15
  $region1: #{dcrn_forward.9} parent=0
    #allocation2 [shape = 'u8[32768]{0}', space=vmem, size = 0x8000, scoped, tag = 'output window, operand 1, single buffered']
    #allocation3 [shape = 's32[1]{0}', space=sflag, size = 0x4, scoped, tag = 'scoped memory for dcrn_forward.9']
    #allocation4 [shape = 'u8[32768]{0}', space=vmem, size = 0x8000, scoped, tag = 'output window, operand 2, single buffered']
    #allocation5 [shape = 's32[1]{0}', space=sflag, size = 0x4, scoped, tag = 'scoped memory for dcrn_forward.9']
    %19 = vsyncpa [#allocation3], 0
    %20 = vsyncpa [#allocation5], 0
    // Predicated region
    $region2: #{dcrn_forward.9} parent=1 // pred_check
      _
    $region3: #{dcrn_forward.9} parent=1 // pred_check_branch
      %22 = sbr.rel (0) target = $region5
    $region4: #{dcrn_forward.9} parent=1 // pred_region
      _
    $region5: #{dcrn_forward.9} parent=1 // pred_fallthru
      _
    // Predicated region
    $region6: #{dcrn_forward.9} parent=1 // pred_check
      _
    $region7: #{dcrn_forward.9} parent=1 // pred_check_branch
      %24 = sbr.rel (0) target = $region9
    $region8: #{dcrn_forward.9} parent=1 // pred_region
      _
    $region9: #{dcrn_forward.9} parent=1 // pred_fallthru
      _
    // Predicated region
    $region10: #{dcrn_forward.9} parent=1 // pred_check
      _
    $region11: #{dcrn_forward.9} parent=1 // pred_check_branch
      %26 = sbr.rel (0) target = $region13
    $region12: #{dcrn_forward.9} parent=1 // pred_region
      _
    $region13: #{dcrn_forward.9} parent=1 // pred_fallthru
      _
    // Predicated region
    $region14: #{dcrn_forward.9} parent=1 // pred_check
      _
    $region15: #{dcrn_forward.9} parent=1 // pred_check_branch
      %28 = sbr.rel (0) target = $region17
    $region16: #{dcrn_forward.9} parent=1 // pred_region
      _
    $region17: #{dcrn_forward.9} parent=1 // pred_fallthru
      _
    // Predicated region
    $region18: #{dcrn_forward.9} parent=1 // pred_check
      _
    $region19: #{dcrn_forward.9} parent=1 // pred_check_branch
      %30 = sbr.rel (0) target = $region21
    $region20: #{dcrn_forward.9} parent=1 // pred_region
      _
    $region21: #{dcrn_forward.9} parent=1 // pred_fallthru
      _
    // Predicated region
    $region22: #{dcrn_forward.9} parent=1 // pred_check
      _
    $region23: #{dcrn_forward.9} parent=1 // pred_check_branch
      %32 = sbr.rel (0) target = $region25
    $region24: #{dcrn_forward.9} parent=1 // pred_region
      _
    $region25: #{dcrn_forward.9} parent=1 // pred_fallthru
      _
    %v33 = vld [vmem:[%s1] sm:$0xff]
    %v34 = vld [vmem:[%s1 + $0x8] sm:$0xff]
    %v35 = vld [vmem:[%s1 + $0x10] sm:$0xff]
    %v36 = vld [vmem:[%s1 + $0x18] sm:$0xff]
    %v37 = vld [vmem:[%s1 + $0x20] sm:$0xff]
    %v38 = vld [vmem:[%s1 + $0x28] sm:$0xff]
    %v39 = vld [vmem:[%s1 + $0x30] sm:$0xff]
    %v40 = vld [vmem:[%s1 + $0x38] sm:$0xff]
    %v41 = vld [vmem:[%s0] sm:$0xff]
    %v42 = vld [vmem:[%s0 + $0x8] sm:$0xff]
    %v43 = vld [vmem:[%s0 + $0x10] sm:$0xff]
    %v44 = vld [vmem:[%s0 + $0x18] sm:$0xff]
    %v45 = vld [vmem:[%s0 + $0x20] sm:$0xff]
    %v46 = vld [vmem:[%s0 + $0x28] sm:$0xff]
    %v47 = vld [vmem:[%s0 + $0x30] sm:$0xff]
    %v48 = vld [vmem:[%s0 + $0x38] sm:$0xff]
    %v49 = vld [vmem:[%s3] sm:$0xff]
    %vm50 = vcmask 64512
    %v52 = vsel %vm50, %v41, 0
    %v55 = vsel %vm50, %v42, 0
    %v58 = vsel %vm50, %v43, 0
    %v61 = vsel %vm50, %v44, 0
    %v64 = vsel %vm50, %v45, 0
    %v67 = vsel %vm50, %v46, 0
    %v70 = vsel %vm50, %v47, 0
    %v73 = vsel %vm50, %v48, 0
    %75 = vmatpush.msra.mxu0 0.0
    %76 = vmatpush.msra.mxu0 0.0
    %77 = vmatpush.msra.mxu0 0.0
    %78 = vmatpush.msra.mxu0 0.0
    %79 = vmatpush.msra.mxu0 0.0
    %80 = vmatpush.msra.mxu0 0.0
    %81 = vmatpush.msra.mxu0 0.0
    %82 = vmatpush.msra.mxu0 0.0
    %83 = vmatpush.msra.mxu0 0.0
    %84 = vmatpush.msra.mxu0 0.0
    %85 = vmatpush.msra.mxu0 0.0
    %86 = vmatpush.msra.mxu0 0.0
    %87 = vmatpush.msra.mxu0 0.0
    %88 = vmatpush.msra.mxu0 0.0
    %89 = vmatpush.msra.mxu0 0.0
    %90 = vmatpush.msra.mxu0 %v49
    %91 = vmatmul.f32.gmra.mxu0 %v52
    %v92 = vpop.f32.mrf.mxu0
    %v93 = vadd.f32 0.0, %v92
    %94 = vmatmul.f32.gmra.mxu0 %v55
    %v95 = vpop.f32.mrf.mxu0
    %v96 = vadd.f32 0.0, %v95
    %97 = vmatmul.f32.gmra.mxu0 %v58
    %v98 = vpop.f32.mrf.mxu0
    %v99 = vadd.f32 0.0, %v98
    %100 = vmatmul.f32.gmra.mxu0 %v61
    %v101 = vpop.f32.mrf.mxu0
    %v102 = vadd.f32 0.0, %v101
    %103 = vmatmul.f32.gmra.mxu0 %v64
    %v104 = vpop.f32.mrf.mxu0
    %v105 = vadd.f32 0.0, %v104
    %106 = vmatmul.f32.gmra.mxu0 %v67
    %v107 = vpop.f32.mrf.mxu0
    %v108 = vadd.f32 0.0, %v107
    %109 = vmatmul.f32.gmra.mxu0 %v70
    %v110 = vpop.f32.mrf.mxu0
    %v111 = vadd.f32 0.0, %v110
    %112 = vmatmul.f32.gmra.mxu0 %v73
    %v113 = vpop.f32.mrf.mxu0
    %v114 = vadd.f32 0.0, %v113
    %115 = vdwg.mxu0
    %v116 = vtanh.pop %v93
    %v117 = vtanh.pop %v96
    %v118 = vtanh.pop %v99
    %v119 = vtanh.pop %v102
    %v120 = vtanh.pop %v105
    %v121 = vtanh.pop %v108
    %v122 = vtanh.pop %v111
    %v123 = vtanh.pop %v114
    %vm124 = vcmask 523264
    %v126 = vsel %vm124, %v33, 0
    %v129 = vsel %vm124, %v34, 0
    %v132 = vsel %vm124, %v35, 0
    %v135 = vsel %vm124, %v36, 0
    %v138 = vsel %vm124, %v37, 0
    %v141 = vsel %vm124, %v38, 0
    %v144 = vsel %vm124, %v39, 0
    %v147 = vsel %vm124, %v40, 0
    %149 = vmatpush.msra.mxu0 0.0
    %150 = vmatpush.msra.mxu0 0.0
    %151 = vmatpush.msra.mxu0 0.0
    %152 = vmatpush.msra.mxu0 0.0
    %153 = vmatpush.msra.mxu0 0.0
    %154 = vmatpush.msra.mxu0 0.0
    %155 = vmatpush.msra.mxu0 0.0
    %156 = vmatpush.msra.mxu0 0.0
    %157 = vmatpush.msra.mxu0 %v123
    %158 = vmatpush.msra.mxu0 %v122
    %159 = vmatpush.msra.mxu0 %v121
    %160 = vmatpush.msra.mxu0 %v120
    %161 = vmatpush.msra.mxu0 %v119
    %162 = vmatpush.msra.mxu0 %v118
    %163 = vmatpush.msra.mxu0 %v117
    %164 = vmatpush.msra.mxu0 %v116
    %165 = vmatmul.f32.gmra.mxu0 %v126
    %v166 = vpop.f32.mrf.mxu0
    %v167 = vadd.f32 0.0, %v166
    %168 = vmatmul.f32.gmra.mxu0 %v129
    %v169 = vpop.f32.mrf.mxu0
    %v170 = vadd.f32 0.0, %v169
    %171 = vmatmul.f32.gmra.mxu0 %v132
    %v172 = vpop.f32.mrf.mxu0
    %v173 = vadd.f32 0.0, %v172
    %174 = vmatmul.f32.gmra.mxu0 %v135
    %v175 = vpop.f32.mrf.mxu0
    %v176 = vadd.f32 0.0, %v175
    %177 = vmatmul.f32.gmra.mxu0 %v138
    %v178 = vpop.f32.mrf.mxu0
    %v179 = vadd.f32 0.0, %v178
    %180 = vmatmul.f32.gmra.mxu0 %v141
    %v181 = vpop.f32.mrf.mxu0
    %v182 = vadd.f32 0.0, %v181
    %183 = vmatmul.f32.gmra.mxu0 %v144
    %v184 = vpop.f32.mrf.mxu0
    %v185 = vadd.f32 0.0, %v184
    %186 = vmatmul.f32.gmra.mxu0 %v147
    %v187 = vpop.f32.mrf.mxu0
    %v188 = vadd.f32 0.0, %v187
    %189 = vdwg.mxu0
    %v190 = vld [vmem:[%s4] sm:$0xff]
    %v191 = vld [vmem:[%s4 + $0x8] sm:$0xff]
    %vm192 = vcmask 130048
    %v194 = vsel %vm192, %v167, 0
    %v197 = vsel %vm192, %v170, 0
    %v200 = vsel %vm192, %v173, 0
    %v203 = vsel %vm192, %v176, 0
    %v206 = vsel %vm192, %v179, 0
    %v209 = vsel %vm192, %v182, 0
    %v212 = vsel %vm192, %v185, 0
    %v215 = vsel %vm192, %v188, 0
    %217 = vmatpush.msra.mxu0 0.0
    %218 = vmatpush.msra.mxu0 0.0
    %219 = vmatpush.msra.mxu0 0.0
    %220 = vmatpush.msra.mxu0 0.0
    %221 = vmatpush.msra.mxu0 0.0
    %222 = vmatpush.msra.mxu0 0.0
    %223 = vmatpush.msra.mxu0 0.0
    %224 = vmatpush.msra.mxu0 0.0
    %225 = vmatpush.msra.mxu0 0.0
    %226 = vmatpush.msra.mxu0 0.0
    %227 = vmatpush.msra.mxu0 0.0
    %228 = vmatpush.msra.mxu0 0.0
    %229 = vmatpush.msra.mxu0 0.0
    %230 = vmatpush.msra.mxu0 0.0
    %231 = vmatpush.msra.mxu0 %v191
    %232 = vmatpush.msra.mxu0 %v190
    %233 = vmatmul.f32.gmra.mxu0 %v194
    %v234 = vpop.f32.mrf.mxu0
    %v235 = vadd.f32 0.0, %v234
    %236 = vmatmul.f32.gmra.mxu0 %v197
    %v237 = vpop.f32.mrf.mxu0
    %v238 = vadd.f32 0.0, %v237
    %239 = vmatmul.f32.gmra.mxu0 %v200
    %v240 = vpop.f32.mrf.mxu0
    %v241 = vadd.f32 0.0, %v240
    %242 = vmatmul.f32.gmra.mxu0 %v203
    %v243 = vpop.f32.mrf.mxu0
    %v244 = vadd.f32 0.0, %v243
    %245 = vmatmul.f32.gmra.mxu0 %v206
    %v246 = vpop.f32.mrf.mxu0
    %v247 = vadd.f32 0.0, %v246
    %248 = vmatmul.f32.gmra.mxu0 %v209
    %v249 = vpop.f32.mrf.mxu0
    %v250 = vadd.f32 0.0, %v249
    %251 = vmatmul.f32.gmra.mxu0 %v212
    %v252 = vpop.f32.mrf.mxu0
    %v253 = vadd.f32 0.0, %v252
    %254 = vmatmul.f32.gmra.mxu0 %v215
    %v255 = vpop.f32.mrf.mxu0
    %v256 = vadd.f32 0.0, %v255
    %257 = vdwg.mxu0
    %v258 = vtanh.pop %v235
    %v259 = vtanh.pop %v238
    %v260 = vtanh.pop %v241
    %v261 = vtanh.pop %v244
    %v262 = vtanh.pop %v247
    %v263 = vtanh.pop %v250
    %v264 = vtanh.pop %v253
    %v265 = vtanh.pop %v256
    %266 = vmatpush.msra.mxu0 0.0
    %267 = vmatpush.msra.mxu0 0.0
    %268 = vmatpush.msra.mxu0 0.0
    %269 = vmatpush.msra.mxu0 0.0
    %270 = vmatpush.msra.mxu0 0.0
    %271 = vmatpush.msra.mxu0 0.0
    %272 = vmatpush.msra.mxu0 0.0
    %273 = vmatpush.msra.mxu0 0.0
    %274 = vmatpush.msra.mxu0 %v265
    %275 = vmatpush.msra.mxu0 %v264
    %276 = vmatpush.msra.mxu0 %v263
    %277 = vmatpush.msra.mxu0 %v262
    %278 = vmatpush.msra.mxu0 %v261
    %279 = vmatpush.msra.mxu0 %v260
    %280 = vmatpush.msra.mxu0 %v259
    %281 = vmatpush.msra.mxu0 %v258
    %282 = vmatmul.f32.gmra.mxu0 %v126
    %v283 = vpop.f32.mrf.mxu0
    %v284 = vadd.f32 0.0, %v283
    %285 = vmatmul.f32.gmra.mxu0 %v129
    %v286 = vpop.f32.mrf.mxu0
    %v287 = vadd.f32 0.0, %v286
    %288 = vmatmul.f32.gmra.mxu0 %v132
    %v289 = vpop.f32.mrf.mxu0
    %v290 = vadd.f32 0.0, %v289
    %291 = vmatmul.f32.gmra.mxu0 %v135
    %v292 = vpop.f32.mrf.mxu0
    %v293 = vadd.f32 0.0, %v292
    %294 = vmatmul.f32.gmra.mxu0 %v138
    %v295 = vpop.f32.mrf.mxu0
    %v296 = vadd.f32 0.0, %v295
    %297 = vmatmul.f32.gmra.mxu0 %v141
    %v298 = vpop.f32.mrf.mxu0
    %v299 = vadd.f32 0.0, %v298
    %300 = vmatmul.f32.gmra.mxu0 %v144
    %v301 = vpop.f32.mrf.mxu0
    %v302 = vadd.f32 0.0, %v301
    %303 = vmatmul.f32.gmra.mxu0 %v147
    %v304 = vpop.f32.mrf.mxu0
    %v305 = vadd.f32 0.0, %v304
    %306 = vdwg.mxu0
    %v307 = vld [vmem:[%s5] sm:$0xff]
    %v308 = vld [vmem:[%s5 + $0x8] sm:$0xff]
    %v309 = vld [vmem:[%s5 + $0x10] sm:$0xff]
    %v310 = vld [vmem:[%s5 + $0x18] sm:$0xff]
    %vm311 = vcmask 261120
    %v313 = vsel %vm311, %v284, 0
    %v316 = vsel %vm311, %v287, 0
    %v319 = vsel %vm311, %v290, 0
    %v322 = vsel %vm311, %v293, 0
    %v325 = vsel %vm311, %v296, 0
    %v328 = vsel %vm311, %v299, 0
    %v331 = vsel %vm311, %v302, 0
    %v334 = vsel %vm311, %v305, 0
    %336 = vmatpush.msra.mxu0 0.0
    %337 = vmatpush.msra.mxu0 0.0
    %338 = vmatpush.msra.mxu0 0.0
    %339 = vmatpush.msra.mxu0 0.0
    %340 = vmatpush.msra.mxu0 0.0
    %341 = vmatpush.msra.mxu0 0.0
    %342 = vmatpush.msra.mxu0 0.0
    %343 = vmatpush.msra.mxu0 0.0
    %344 = vmatpush.msra.mxu0 0.0
    %345 = vmatpush.msra.mxu0 0.0
    %346 = vmatpush.msra.mxu0 0.0
    %347 = vmatpush.msra.mxu0 0.0
    %348 = vmatpush.msra.mxu0 %v310
    %349 = vmatpush.msra.mxu0 %v309
    %350 = vmatpush.msra.mxu0 %v308
    %351 = vmatpush.msra.mxu0 %v307
    %352 = vmatmul.f32.gmra.mxu0 %v313
    %v353 = vpop.f32.mrf.mxu0
    %v354 = vadd.f32 0.0, %v353
    %355 = vmatmul.f32.gmra.mxu0 %v316
    %v356 = vpop.f32.mrf.mxu0
    %v357 = vadd.f32 0.0, %v356
    %358 = vmatmul.f32.gmra.mxu0 %v319
    %v359 = vpop.f32.mrf.mxu0
    %v360 = vadd.f32 0.0, %v359
    %361 = vmatmul.f32.gmra.mxu0 %v322
    %v362 = vpop.f32.mrf.mxu0
    %v363 = vadd.f32 0.0, %v362
    %364 = vmatmul.f32.gmra.mxu0 %v325
    %v365 = vpop.f32.mrf.mxu0
    %v366 = vadd.f32 0.0, %v365
    %367 = vmatmul.f32.gmra.mxu0 %v328
    %v368 = vpop.f32.mrf.mxu0
    %v369 = vadd.f32 0.0, %v368
    %370 = vmatmul.f32.gmra.mxu0 %v331
    %v371 = vpop.f32.mrf.mxu0
    %v372 = vadd.f32 0.0, %v371
    %373 = vmatmul.f32.gmra.mxu0 %v334
    %v374 = vpop.f32.mrf.mxu0
    %v375 = vadd.f32 0.0, %v374
    %376 = vdwg.mxu0
    %v377 = vtanh.pop %v354
    %v378 = vtanh.pop %v357
    %v379 = vtanh.pop %v360
    %v380 = vtanh.pop %v363
    %v381 = vtanh.pop %v366
    %v382 = vtanh.pop %v369
    %v383 = vtanh.pop %v372
    %v384 = vtanh.pop %v375
    %385 = vmatpush.msra.mxu0 0.0
    %386 = vmatpush.msra.mxu0 0.0
    %387 = vmatpush.msra.mxu0 0.0
    %388 = vmatpush.msra.mxu0 0.0
    %389 = vmatpush.msra.mxu0 0.0
    %390 = vmatpush.msra.mxu0 0.0
    %391 = vmatpush.msra.mxu0 0.0
    %392 = vmatpush.msra.mxu0 0.0
    %393 = vmatpush.msra.mxu0 %v384
    %394 = vmatpush.msra.mxu0 %v383
    %395 = vmatpush.msra.mxu0 %v382
    %396 = vmatpush.msra.mxu0 %v381
    %397 = vmatpush.msra.mxu0 %v380
    %398 = vmatpush.msra.mxu0 %v379
    %399 = vmatpush.msra.mxu0 %v378
    %400 = vmatpush.msra.mxu0 %v377
    %401 = vmatmul.f32.gmra.mxu0 %v126
    %v402 = vpop.f32.mrf.mxu0
    %v403 = vadd.f32 0.0, %v402
    %404 = vmatmul.f32.gmra.mxu0 %v129
    %v405 = vpop.f32.mrf.mxu0
    %v406 = vadd.f32 0.0, %v405
    %407 = vmatmul.f32.gmra.mxu0 %v132
    %v408 = vpop.f32.mrf.mxu0
    %v409 = vadd.f32 0.0, %v408
    %410 = vmatmul.f32.gmra.mxu0 %v135
    %v411 = vpop.f32.mrf.mxu0
    %v412 = vadd.f32 0.0, %v411
    %413 = vmatmul.f32.gmra.mxu0 %v138
    %v414 = vpop.f32.mrf.mxu0
    %v415 = vadd.f32 0.0, %v414
    %416 = vmatmul.f32.gmra.mxu0 %v141
    %v417 = vpop.f32.mrf.mxu0
    %v418 = vadd.f32 0.0, %v417
    %419 = vmatmul.f32.gmra.mxu0 %v144
    %v420 = vpop.f32.mrf.mxu0
    %v421 = vadd.f32 0.0, %v420
    %422 = vmatmul.f32.gmra.mxu0 %v147
    %v423 = vpop.f32.mrf.mxu0
    %v424 = vadd.f32 0.0, %v423
    %425 = vdwg.mxu0
    %v427 = vsel %vm311, %v403, 0
    %v430 = vsel %vm311, %v406, 0
    %v433 = vsel %vm311, %v409, 0
    %v436 = vsel %vm311, %v412, 0
    %v439 = vsel %vm311, %v415, 0
    %v442 = vsel %vm311, %v418, 0
    %v445 = vsel %vm311, %v421, 0
    %v448 = vsel %vm311, %v424, 0
    %450 = vmatpush.xpose.msra.mxu0 0.0
    %451 = vmatpush.xpose.msra.mxu0 0.0
    %452 = vmatpush.xpose.msra.mxu0 0.0
    %453 = vmatpush.xpose.msra.mxu0 0.0
    %454 = vmatpush.xpose.msra.mxu0 0.0
    %455 = vmatpush.xpose.msra.mxu0 0.0
    %456 = vmatpush.xpose.msra.mxu0 0.0
    %457 = vmatpush.xpose.msra.mxu0 0.0
    %458 = vmatpush.xpose.msra.mxu0 %v448
    %459 = vmatpush.xpose.msra.mxu0 %v445
    %460 = vmatpush.xpose.msra.mxu0 %v442
    %461 = vmatpush.xpose.msra.mxu0 %v439
    %462 = vmatpush.xpose.msra.mxu0 %v436
    %463 = vmatpush.xpose.msra.mxu0 %v433
    %464 = vmatpush.xpose.msra.mxu0 %v430
    %465 = vmatpush.xpose.msra.mxu0 %v427
    %466 = vmatmul.f32.gmra.mxu0 %v427
    %v467 = vpop.f32.mrf.mxu0
    %v468 = vadd.f32 0.0, %v467
    %469 = vmatmul.f32.gmra.mxu0 %v430
    %v470 = vpop.f32.mrf.mxu0
    %v471 = vadd.f32 0.0, %v470
    %472 = vmatmul.f32.gmra.mxu0 %v433
    %v473 = vpop.f32.mrf.mxu0
    %v474 = vadd.f32 0.0, %v473
    %475 = vmatmul.f32.gmra.mxu0 %v436
    %v476 = vpop.f32.mrf.mxu0
    %v477 = vadd.f32 0.0, %v476
    %478 = vmatmul.f32.gmra.mxu0 %v439
    %v479 = vpop.f32.mrf.mxu0
    %v480 = vadd.f32 0.0, %v479
    %481 = vmatmul.f32.gmra.mxu0 %v442
    %v482 = vpop.f32.mrf.mxu0
    %v483 = vadd.f32 0.0, %v482
    %484 = vmatmul.f32.gmra.mxu0 %v445
    %v485 = vpop.f32.mrf.mxu0
    %v486 = vadd.f32 0.0, %v485
    %487 = vmatmul.f32.gmra.mxu0 %v448
    %v488 = vpop.f32.mrf.mxu0
    %v489 = vadd.f32 0.0, %v488
    %490 = vdwg.mxu0
    %v491 = vxor.u32 %v468, 2147483648
    %v492 = vxor.u32 %v471, 2147483648
    %v493 = vxor.u32 %v474, 2147483648
    %v494 = vxor.u32 %v477, 2147483648
    %v495 = vxor.u32 %v480, 2147483648
    %v496 = vxor.u32 %v483, 2147483648
    %v497 = vxor.u32 %v486, 2147483648
    %v498 = vxor.u32 %v489, 2147483648
    %v499 = vmul.f32 %v491, 1.442695
    %v500 = vpow.pop %v499
    %v501 = vmul.f32 %v492, 1.442695
    %v502 = vpow.pop %v501
    %v503 = vmul.f32 %v493, 1.442695
    %v504 = vpow.pop %v503
    %v505 = vmul.f32 %v494, 1.442695
    %v506 = vpow.pop %v505
    %v507 = vmul.f32 %v495, 1.442695
    %v508 = vpow.pop %v507
    %v509 = vmul.f32 %v496, 1.442695
    %v510 = vpow.pop %v509
    %v511 = vmul.f32 %v497, 1.442695
    %v512 = vpow.pop %v511
    %v513 = vmul.f32 %v498, 1.442695
    %v514 = vpow.pop %v513
    %v515 = vadd.f32 %v500, 1.0
    %v516 = vadd.f32 %v502, 1.0
    %v517 = vadd.f32 %v504, 1.0
    %v518 = vadd.f32 %v506, 1.0
    %v519 = vadd.f32 %v508, 1.0
    %v520 = vadd.f32 %v510, 1.0
    %v521 = vadd.f32 %v512, 1.0
    %v522 = vadd.f32 %v514, 1.0
    %v523 = vrcp.pop %v515
    %v524 = vmul.f32 %v515, %v523
    %v525 = vsub.f32 1.0, %v524
    %v526 = vmul.f32 %v523, %v525
    %v527 = vadd.f32 %v523, %v526
    %vm528 = vweird.f32 %v515
    %vm529 = vweird.f32 %v523
    %vm530 = vmor %vm528, %vm529
    %v531 = vsel %vm530, %v523, %v527
    %v532 = vand.u32 2147483647, %v515
    %vm533 = vcmp.eq.f32.partialorder %v532, 8.507059e+37
    %v534 = vand.u32 %v515, 2147483648
    %v535 = vor.u32 1.1754944e-38, %v534
    %v536 = vsel %vm533, %v535, %v531
    %v537 = vmul.f32 1.0, %v536
    %v538 = vrcp.pop %v516
    %v539 = vmul.f32 %v516, %v538
    %v540 = vsub.f32 1.0, %v539
    %v541 = vmul.f32 %v538, %v540
    %v542 = vadd.f32 %v538, %v541
    %vm543 = vweird.f32 %v516
    %vm544 = vweird.f32 %v538
    %vm545 = vmor %vm543, %vm544
    %v546 = vsel %vm545, %v538, %v542
    %v547 = vand.u32 2147483647, %v516
    %vm548 = vcmp.eq.f32.partialorder %v547, 8.507059e+37
    %v549 = vand.u32 %v516, 2147483648
    %v550 = vor.u32 1.1754944e-38, %v549
    %v551 = vsel %vm548, %v550, %v546
    %v552 = vmul.f32 1.0, %v551
    %v553 = vrcp.pop %v517
    %v554 = vmul.f32 %v517, %v553
    %v555 = vsub.f32 1.0, %v554
    %v556 = vmul.f32 %v553, %v555
    %v557 = vadd.f32 %v553, %v556
    %vm558 = vweird.f32 %v517
    %vm559 = vweird.f32 %v553
    %vm560 = vmor %vm558, %vm559
    %v561 = vsel %vm560, %v553, %v557
    %v562 = vand.u32 2147483647, %v517
    %vm563 = vcmp.eq.f32.partialorder %v562, 8.507059e+37
    %v564 = vand.u32 %v517, 2147483648
    %v565 = vor.u32 1.1754944e-38, %v564
    %v566 = vsel %vm563, %v565, %v561
    %v567 = vmul.f32 1.0, %v566
    %v568 = vrcp.pop %v518
    %v569 = vmul.f32 %v518, %v568
    %v570 = vsub.f32 1.0, %v569
    %v571 = vmul.f32 %v568, %v570
    %v572 = vadd.f32 %v568, %v571
    %vm573 = vweird.f32 %v518
    %vm574 = vweird.f32 %v568
    %vm575 = vmor %vm573, %vm574
    %v576 = vsel %vm575, %v568, %v572
    %v577 = vand.u32 2147483647, %v518
    %vm578 = vcmp.eq.f32.partialorder %v577, 8.507059e+37
    %v579 = vand.u32 %v518, 2147483648
    %v580 = vor.u32 1.1754944e-38, %v579
    %v581 = vsel %vm578, %v580, %v576
    %v582 = vmul.f32 1.0, %v581
    %v583 = vrcp.pop %v519
    %v584 = vmul.f32 %v519, %v583
    %v585 = vsub.f32 1.0, %v584
    %v586 = vmul.f32 %v583, %v585
    %v587 = vadd.f32 %v583, %v586
    %vm588 = vweird.f32 %v519
    %vm589 = vweird.f32 %v583
    %vm590 = vmor %vm588, %vm589
    %v591 = vsel %vm590, %v583, %v587
    %v592 = vand.u32 2147483647, %v519
    %vm593 = vcmp.eq.f32.partialorder %v592, 8.507059e+37
    %v594 = vand.u32 %v519, 2147483648
    %v595 = vor.u32 1.1754944e-38, %v594
    %v596 = vsel %vm593, %v595, %v591
    %v597 = vmul.f32 1.0, %v596
    %v598 = vrcp.pop %v520
    %v599 = vmul.f32 %v520, %v598
    %v600 = vsub.f32 1.0, %v599
    %v601 = vmul.f32 %v598, %v600
    %v602 = vadd.f32 %v598, %v601
    %vm603 = vweird.f32 %v520
    %vm604 = vweird.f32 %v598
    %vm605 = vmor %vm603, %vm604
    %v606 = vsel %vm605, %v598, %v602
    %v607 = vand.u32 2147483647, %v520
    %vm608 = vcmp.eq.f32.partialorder %v607, 8.507059e+37
    %v609 = vand.u32 %v520, 2147483648
    %v610 = vor.u32 1.1754944e-38, %v609
    %v611 = vsel %vm608, %v610, %v606
    %v612 = vmul.f32 1.0, %v611
    %v613 = vrcp.pop %v521
    %v614 = vmul.f32 %v521, %v613
    %v615 = vsub.f32 1.0, %v614
    %v616 = vmul.f32 %v613, %v615
    %v617 = vadd.f32 %v613, %v616
    %vm618 = vweird.f32 %v521
    %vm619 = vweird.f32 %v613
    %vm620 = vmor %vm618, %vm619
    %v621 = vsel %vm620, %v613, %v617
    %v622 = vand.u32 2147483647, %v521
    %vm623 = vcmp.eq.f32.partialorder %v622, 8.507059e+37
    %v624 = vand.u32 %v521, 2147483648
    %v625 = vor.u32 1.1754944e-38, %v624
    %v626 = vsel %vm623, %v625, %v621
    %v627 = vmul.f32 1.0, %v626
    %v628 = vrcp.pop %v522
    %v629 = vmul.f32 %v522, %v628
    %v630 = vsub.f32 1.0, %v629
    %v631 = vmul.f32 %v628, %v630
    %v632 = vadd.f32 %v628, %v631
    %vm633 = vweird.f32 %v522
    %vm634 = vweird.f32 %v628
    %vm635 = vmor %vm633, %vm634
    %v636 = vsel %vm635, %v628, %v632
    %v637 = vand.u32 2147483647, %v522
    %vm638 = vcmp.eq.f32.partialorder %v637, 8.507059e+37
    %v639 = vand.u32 %v522, 2147483648
    %v640 = vor.u32 1.1754944e-38, %v639
    %v641 = vsel %vm638, %v640, %v636
    %v642 = vmul.f32 1.0, %v641
    %643 = vst.msk [vmem:[%s6] sm:$0xff] %vm311, %v403
    %644 = vst.msk [vmem:[%s6 + $0x8] sm:$0xff] %vm311, %v406
    %645 = vst.msk [vmem:[%s6 + $0x10] sm:$0xff] %vm311, %v409
    %646 = vst.msk [vmem:[%s6 + $0x18] sm:$0xff] %vm311, %v412
    %647 = vst.msk [vmem:[%s6 + $0x20] sm:$0xff] %vm311, %v415
    %648 = vst.msk [vmem:[%s6 + $0x28] sm:$0xff] %vm311, %v418
    %649 = vst.msk [vmem:[%s6 + $0x30] sm:$0xff] %vm311, %v421
    %650 = vst.msk [vmem:[%s6 + $0x38] sm:$0xff] %vm311, %v424
    %651 = vst.msk [vmem:[#allocation2] sm:$0xff] %vm124, %v537
    %652 = vst.msk [vmem:[#allocation2 + $0x8] sm:$0xff] %vm124, %v552
    %653 = vst.msk [vmem:[#allocation2 + $0x10] sm:$0xff] %vm124, %v567
    %654 = vst.msk [vmem:[#allocation2 + $0x18] sm:$0xff] %vm124, %v582
    %655 = vst.msk [vmem:[#allocation2 + $0x20] sm:$0xff] %vm124, %v597
    %656 = vst.msk [vmem:[#allocation2 + $0x28] sm:$0xff] %vm124, %v612
    %657 = vst.msk [vmem:[#allocation2 + $0x30] sm:$0xff] %vm124, %v627
    %658 = vst.msk [vmem:[#allocation2 + $0x38] sm:$0xff] %vm124, %v642
    %v659 = vld [vmem:[%s2] sm:$0xff]
    %v660 = vld [vmem:[%s2 + $0x8] sm:$0xff]
    %v661 = vld [vmem:[%s2 + $0x10] sm:$0xff]
    %v662 = vld [vmem:[%s2 + $0x18] sm:$0xff]
    %v663 = vld [vmem:[%s2 + $0x20] sm:$0xff]
    %v664 = vld [vmem:[%s2 + $0x28] sm:$0xff]
    %v665 = vld [vmem:[%s2 + $0x30] sm:$0xff]
    %v666 = vld [vmem:[%s2 + $0x38] sm:$0xff]
    %v667 = vadd.f32 %v659, %v537
    %v668 = vadd.f32 %v660, %v552
    %v669 = vadd.f32 %v661, %v567
    %v670 = vadd.f32 %v662, %v582
    %v671 = vadd.f32 %v663, %v597
    %v672 = vadd.f32 %v664, %v612
    %v673 = vadd.f32 %v665, %v627
    %v674 = vadd.f32 %v666, %v642
    %675 = vst.msk [vmem:[#allocation4] sm:$0xff] %vm124, %v667
    %676 = vst.msk [vmem:[#allocation4 + $0x8] sm:$0xff] %vm124, %v668
    %677 = vst.msk [vmem:[#allocation4 + $0x10] sm:$0xff] %vm124, %v669
    %678 = vst.msk [vmem:[#allocation4 + $0x18] sm:$0xff] %vm124, %v670
    %679 = vst.msk [vmem:[#allocation4 + $0x20] sm:$0xff] %vm124, %v671
    %680 = vst.msk [vmem:[#allocation4 + $0x28] sm:$0xff] %vm124, %v672
    %681 = vst.msk [vmem:[#allocation4 + $0x30] sm:$0xff] %vm124, %v673
    %682 = vst.msk [vmem:[#allocation4 + $0x38] sm:$0xff] %vm124, %v674
    %683 = vst.msk [vmem:[%s9] sm:$0xff] %vm192, %v167
    %684 = vst.msk [vmem:[%s9 + $0x8] sm:$0xff] %vm192, %v170
    %685 = vst.msk [vmem:[%s9 + $0x10] sm:$0xff] %vm192, %v173
    %686 = vst.msk [vmem:[%s9 + $0x18] sm:$0xff] %vm192, %v176
    %687 = vst.msk [vmem:[%s9 + $0x20] sm:$0xff] %vm192, %v179
    %688 = vst.msk [vmem:[%s9 + $0x28] sm:$0xff] %vm192, %v182
    %689 = vst.msk [vmem:[%s9 + $0x30] sm:$0xff] %vm192, %v185
    %690 = vst.msk [vmem:[%s9 + $0x38] sm:$0xff] %vm192, %v188
    %691 = vst.msk [vmem:[%s10] sm:$0xff] %vm311, %v284
    %692 = vst.msk [vmem:[%s10 + $0x8] sm:$0xff] %vm311, %v287
    %693 = vst.msk [vmem:[%s10 + $0x10] sm:$0xff] %vm311, %v290
    %694 = vst.msk [vmem:[%s10 + $0x18] sm:$0xff] %vm311, %v293
    %695 = vst.msk [vmem:[%s10 + $0x20] sm:$0xff] %vm311, %v296
    %696 = vst.msk [vmem:[%s10 + $0x28] sm:$0xff] %vm311, %v299
    %697 = vst.msk [vmem:[%s10 + $0x30] sm:$0xff] %vm311, %v302
    %698 = vst.msk [vmem:[%s10 + $0x38] sm:$0xff] %vm311, %v305
    %699 = vst.msk [vmem:[%s11] sm:$0xff] %vm192, %v116
    %700 = vst.msk [vmem:[%s11 + $0x8] sm:$0xff] %vm192, %v117
    %701 = vst.msk [vmem:[%s11 + $0x10] sm:$0xff] %vm192, %v118
    %702 = vst.msk [vmem:[%s11 + $0x18] sm:$0xff] %vm192, %v119
    %703 = vst.msk [vmem:[%s11 + $0x20] sm:$0xff] %vm192, %v120
    %704 = vst.msk [vmem:[%s11 + $0x28] sm:$0xff] %vm192, %v121
    %705 = vst.msk [vmem:[%s11 + $0x30] sm:$0xff] %vm192, %v122
    %706 = vst.msk [vmem:[%s11 + $0x38] sm:$0xff] %vm192, %v123
    %707 = vst.msk [vmem:[%s12] sm:$0xff] %vm311, %v258
    %708 = vst.msk [vmem:[%s12 + $0x8] sm:$0xff] %vm311, %v259
    %709 = vst.msk [vmem:[%s12 + $0x10] sm:$0xff] %vm311, %v260
    %710 = vst.msk [vmem:[%s12 + $0x18] sm:$0xff] %vm311, %v261
    %711 = vst.msk [vmem:[%s12 + $0x20] sm:$0xff] %vm311, %v262
    %712 = vst.msk [vmem:[%s12 + $0x28] sm:$0xff] %vm311, %v263
    %713 = vst.msk [vmem:[%s12 + $0x30] sm:$0xff] %vm311, %v264
    %714 = vst.msk [vmem:[%s12 + $0x38] sm:$0xff] %vm311, %v265
    %715 = vst.msk [vmem:[%s13] sm:$0xff] %vm311, %v377
    %716 = vst.msk [vmem:[%s13 + $0x8] sm:$0xff] %vm311, %v378
    %717 = vst.msk [vmem:[%s13 + $0x10] sm:$0xff] %vm311, %v379
    %718 = vst.msk [vmem:[%s13 + $0x18] sm:$0xff] %vm311, %v380
    %719 = vst.msk [vmem:[%s13 + $0x20] sm:$0xff] %vm311, %v381
    %720 = vst.msk [vmem:[%s13 + $0x28] sm:$0xff] %vm311, %v382
    %721 = vst.msk [vmem:[%s13 + $0x30] sm:$0xff] %vm311, %v383
    %722 = vst.msk [vmem:[%s13 + $0x38] sm:$0xff] %vm311, %v384
    // Predicated region
    $region26: #{dcrn_forward.9} parent=1 // pred_check
      _
    $region27: #{dcrn_forward.9} parent=1 // pred_check_branch
      %724 = sbr.rel (0) target = $region29
    $region28: #{dcrn_forward.9} parent=1 // pred_region
      _
    $region29: #{dcrn_forward.9} parent=1 // pred_fallthru
      _
    // Predicated region
    $region30: #{dcrn_forward.9} parent=1 // pred_check
      _
    $region31: #{dcrn_forward.9} parent=1 // pred_check_branch
      %726 = sbr.rel (0) target = $region33
    $region32: #{dcrn_forward.9} parent=1 // pred_region
      %728 = vsyncadd [#allocation3], 0
      %s729 = sshll.u32 [#allocation2], 4
      %s730 = int_to_ptr.vmem [resolvable:$true] %s729
      %s731 = sshll.u32 %s7, 4
      %s732 = int_to_ptr.hbm [resolvable:$true] %s731
      %737 = dma.vmem_to_hbm [thread:$0]  %s730, 1024, %s732, [#allocation3], 128, 128, 8
    $region33: #{dcrn_forward.9} parent=1 // pred_fallthru
      _
    // Predicated region
    $region34: #{dcrn_forward.9} parent=1 // pred_check
      _
    $region35: #{dcrn_forward.9} parent=1 // pred_check_branch
      %739 = sbr.rel (0) target = $region37
    $region36: #{dcrn_forward.9} parent=1 // pred_region
      %741 = vsyncadd [#allocation5], 0
      %s742 = sshll.u32 [#allocation4], 4
      %s743 = int_to_ptr.vmem [resolvable:$true] %s742
      %s744 = sshll.u32 %s8, 4
      %s745 = int_to_ptr.hbm [resolvable:$true] %s744
      %750 = dma.vmem_to_hbm [thread:$0]  %s743, 1024, %s745, [#allocation5], 128, 128, 8
    $region37: #{dcrn_forward.9} parent=1 // pred_fallthru
      _
    // Predicated region
    $region38: #{dcrn_forward.9} parent=1 // pred_check
      _
    $region39: #{dcrn_forward.9} parent=1 // pred_check_branch
      %752 = sbr.rel (0) target = $region41
    $region40: #{dcrn_forward.9} parent=1 // pred_region
      _
    $region41: #{dcrn_forward.9} parent=1 // pred_fallthru
      _
    // Predicated region
    $region42: #{dcrn_forward.9} parent=1 // pred_check
      _
    $region43: #{dcrn_forward.9} parent=1 // pred_check_branch
      %754 = sbr.rel (0) target = $region45
    $region44: #{dcrn_forward.9} parent=1 // pred_region
      _
    $region45: #{dcrn_forward.9} parent=1 // pred_fallthru
      _
    // Predicated region
    $region46: #{dcrn_forward.9} parent=1 // pred_check
      _
    $region47: #{dcrn_forward.9} parent=1 // pred_check_branch
      %756 = sbr.rel (0) target = $region49
    $region48: #{dcrn_forward.9} parent=1 // pred_region
      _
    $region49: #{dcrn_forward.9} parent=1 // pred_fallthru
      _
    // Predicated region
    $region50: #{dcrn_forward.9} parent=1 // pred_check
      _
    $region51: #{dcrn_forward.9} parent=1 // pred_check_branch
      %758 = sbr.rel (0) target = $region53
    $region52: #{dcrn_forward.9} parent=1 // pred_region
      _
    $region53: #{dcrn_forward.9} parent=1 // pred_fallthru
      _
    // Predicated region
    $region54: #{dcrn_forward.9} parent=1 // pred_check
      _
    $region55: #{dcrn_forward.9} parent=1 // pred_check_branch
      %760 = sbr.rel (0) target = $region57
    $region56: #{dcrn_forward.9} parent=1 // pred_region
      _
    $region57: #{dcrn_forward.9} parent=1 // pred_fallthru
      _
    // Predicated region
    $region58: #{dcrn_forward.9} parent=1 // pred_check
      _
    $region59: #{dcrn_forward.9} parent=1 // pred_check_branch
      %762 = sbr.rel (0) target = $region61
    $region60: #{dcrn_forward.9} parent=1 // pred_region
      _
    $region61: #{dcrn_forward.9} parent=1 // pred_fallthru
      _
    // Predicated region
    $region62: #{dcrn_forward.9} parent=1 // pred_check
      _
    $region63: #{dcrn_forward.9} parent=1 // pred_check_branch
      %764 = sbr.rel (0) target = $region65
    $region64: #{dcrn_forward.9} parent=1 // pred_region
      %766 = dma.done [#allocation3], 1024
    $region65: #{dcrn_forward.9} parent=1 // pred_fallthru
      _
    // Predicated region
    $region66: #{dcrn_forward.9} parent=1 // pred_check
      _
    $region67: #{dcrn_forward.9} parent=1 // pred_check_branch
      %768 = sbr.rel (0) target = $region69
    $region68: #{dcrn_forward.9} parent=1 // pred_region
      %770 = dma.done [#allocation5], 1024
    $region69: #{dcrn_forward.9} parent=1 // pred_fallthru
      _
    // Predicated region
    $region70: #{dcrn_forward.9} parent=1 // pred_check
      _
    $region71: #{dcrn_forward.9} parent=1 // pred_check_branch
      %772 = sbr.rel (0) target = $region73
    $region72: #{dcrn_forward.9} parent=1 // pred_region
      _
    $region73: #{dcrn_forward.9} parent=1 // pred_fallthru
      _
    // Predicated region
    $region74: #{dcrn_forward.9} parent=1 // pred_check
      _
    $region75: #{dcrn_forward.9} parent=1 // pred_check_branch
      %774 = sbr.rel (0) target = $region77
    $region76: #{dcrn_forward.9} parent=1 // pred_region
      _
    $region77: #{dcrn_forward.9} parent=1 // pred_fallthru
      _
    // Predicated region
    $region78: #{dcrn_forward.9} parent=1 // pred_check
      _
    $region79: #{dcrn_forward.9} parent=1 // pred_check_branch
      %776 = sbr.rel (0) target = $region81
    $region80: #{dcrn_forward.9} parent=1 // pred_region
      _
    $region81: #{dcrn_forward.9} parent=1 // pred_fallthru
      _
    // Predicated region
    $region82: #{dcrn_forward.9} parent=1 // pred_check
      _
    $region83: #{dcrn_forward.9} parent=1 // pred_check_branch
      %778 = sbr.rel (0) target = $region85
    $region84: #{dcrn_forward.9} parent=1 // pred_region
      _
    $region85: #{dcrn_forward.9} parent=1 // pred_fallthru
      _
    // Predicated region
    $region86: #{dcrn_forward.9} parent=1 // pred_check
      _
    $region87: #{dcrn_forward.9} parent=1 // pred_check_branch
      %780 = sbr.rel (0) target = $region89
    $region88: #{dcrn_forward.9} parent=1 // pred_region
      _
    $region89: #{dcrn_forward.9} parent=1 // pred_fallthru
      _
    %781 = vsyncpa [#allocation3], 1
    %782 = vsyncpa [#allocation5], 1

</llo_original>
